<compile_context>
chip_gen: v7x
topology: tpu7x:2x2x1
jax: 0.10.0
libtpu: 0.0.40
codegen_flags: <defaults>
</compile_context>

<pallas_src>
import jax
import jax.numpy as jnp
from jax import lax
from jax.experimental import pallas as pl
from jax.experimental.pallas import tpu as pltpu
import numpy as np


def _lstm_kernel(x_ref,      # (Bb*T, I)   f32   row = b*T + t (batch-major, no transpose)
                 wih0_ref,   # (I, 4H)     bf16  W_ih_l0, gate order (i,f,o,g)
                 b0_ref,     # (1, 4H)     f32   b_ih_l0 + b_hh_l0
                 wbig_ref,   # (2H, 8H)    bf16  [[W_hh0, W_ih1],[0, W_hh1]]
                 b1_ref,     # (1, 4H)     f32   b_ih_l1 + b_hh_l1
                 wfc_ref,    # (H, O)      bf16
                 bfc_ref,    # (1, O)      f32
                 out_ref,    # (Bb, O)     f32
                 gx_ref):    # (Bb, T, 4H) f32   VMEM scratch: precomputed layer-0 input gates
    Bb, T, H4 = gx_ref.shape
    H = H4 // 4
    O = wfc_ref.shape[1]
    bf16 = jnp.bfloat16
    f32 = jnp.float32

    # ---- hoisted out of the recurrence: load weights once, broadcast biases once
    # (JAX does not CSE broadcast_in_dim; inside the loop these would re-issue per step).
    wbig = wbig_ref[...]                                   # (2H, 8H) bf16
    b1 = jnp.broadcast_to(b1_ref[...], (Bb, H4))           # (Bb, 4H) f32
    bfc = jnp.broadcast_to(bfc_ref[...], (Bb, O))          # (Bb, O)  f32

    # ---- layer-0 input projection for all timesteps in ONE batched MXU matmul
    # (collapses T tiny K=I matmuls into one op that is off the serial chain).
    gx = (jnp.dot(x_ref[...].astype(bf16), wih0_ref[...],
                  preferred_element_type=f32) + b0_ref[...])        # (Bb*T, 4H)
    gx_ref[...] = gx.reshape(Bb, T, H4)                              # gx[:, t, :] = x_t@Wih0 + b0

    def apply_gates(g4, c):
        # packed gate order (i, f, o, g): one sigmoid over 3H lanes, one tanh over H lanes.
        sig = jax.nn.sigmoid(g4[:, :3 * H])
        g = jnp.tanh(g4[:, 3 * H:])
        i = sig[:, 0 * H:1 * H]
        f = sig[:, 1 * H:2 * H]
        o = sig[:, 2 * H:3 * H]
        c_new = f * c + i * g
        h_new = o * jnp.tanh(c_new)
        return h_new, c_new

    zeros = jnp.zeros((Bb, H), f32)

    # ---- skewed recurrence: iteration t computes layer-0 step t AND layer-1 step t-1,
    # fused into a single block-diagonal (Bb, 2H)@(2H, 8H) matmul (one dependent MXU op
    # per step).  Prologue: layer-0 step 0 (h0_{-1} = 0 -> no recurrent matmul needed).
    h0, c0 = apply_gates(gx_ref[:, 0, :], zeros)
    h1, c1 = zeros, zeros

    # Fully unrolled (T is small & static) so the scheduler can overlap the next step's
    # gx load / gate slicing with the current step's MXU drain and EUP work.
    for t in range(1, T):
        hh = jnp.concatenate([h0, h1], axis=1).astype(bf16)          # (Bb, 2H)
        big = jnp.dot(hh, wbig, preferred_element_type=f32)          # (Bb, 8H)
        g0 = big[:, :H4] + gx_ref[:, t, :]                           # layer-0 gates, step t
        g1 = big[:, H4:] + b1                                        # layer-1 gates, step t-1
        h0, c0 = apply_gates(g0, c0)
        h1, c1 = apply_gates(g1, c1)

    # Epilogue: layer-1 step T-1 (consumes the final h0).
    hh = jnp.concatenate([h0, h1], axis=1).astype(bf16)
    g1 = jnp.dot(hh, wbig, preferred_element_type=f32)[:, H4:] + b1
    h1, _ = apply_gates(g1, c1)

    # Final Linear on the last timestep of the top layer.
    out_ref[...] = jnp.dot(h1.astype(bf16), wfc_ref[...],
                           preferred_element_type=f32) + bfc


def _num_tensorcores():
    """Batch blocks == TensorCores per chip (v7x: 2, v5e/v6e: 1).  Splitting a serial
    recurrence beyond the TC count only creates extra sequential grid iterations."""
    try:
        kind = jax.devices()[0].device_kind.lower()
    except Exception:
        return 1
    return 2 if "v7" in kind else 1


def lstm_forward(x, kp, *, num_blocks=None):
    """x: (B, T, I) float32 (batch_first, as in PyTorch).  Returns (B, O) float32."""
    B, T, I = x.shape
    H4 = kp["b0"].shape[1]
    O = kp["wfc"].shape[1]

    if num_blocks is None:
        num_blocks = _num_tensorcores()
    if num_blocks < 1 or B % num_blocks != 0:
        num_blocks = 1
    bb = B // num_blocks

    # Free row-major reshape (no transpose, no copy): row index = b*T + t.
    x2 = x.reshape(B * T, I)

    return pl.pallas_call(
        _lstm_kernel,
        out_shape=jax.ShapeDtypeStruct((B, O), jnp.float32),
        grid_spec=pltpu.PrefetchScalarGridSpec(
            num_scalar_prefetch=0,
            grid=(num_blocks,),
            in_specs=[
                pl.BlockSpec((bb * T, I), lambda b: (b, 0)),        # x rows for batch block b
                pl.BlockSpec(kp["wih0"].shape, lambda b: (0, 0)),   # weights: whole array,
                pl.BlockSpec(kp["b0"].shape, lambda b: (0, 0)),     # same block every grid step
                pl.BlockSpec(kp["w_big"].shape, lambda b: (0, 0)),
                pl.BlockSpec(kp["b1"].shape, lambda b: (0, 0)),
                pl.BlockSpec(kp["wfc"].shape, lambda b: (0, 0)),
                pl.BlockSpec(kp["bfc"].shape, lambda b: (0, 0)),
            ],
            out_specs=pl.BlockSpec((bb, O), lambda b: (b, 0)),
            scratch_shapes=[pltpu.VMEM((bb, T, H4), jnp.float32)],  # precomputed input gates
        ),
        compiler_params=pltpu.CompilerParams(
            dimension_semantics=("parallel",),   # one batch block per TensorCore on v7x
        ),
    )(x2, kp["wih0"], kp["b0"], kp["w_big"], kp["b1"], kp["wfc"], kp["bfc"])


def make_params(key, input_size, hidden_size, output_size):
    """Raw f32 params, PyTorch-style U(-1/sqrt(H), 1/sqrt(H)) init, torch gate order
    (i, f, g, o).  Weights pre-transposed to (in, 4H); the two LSTM bias vectors per
    layer are pre-summed (exact, semantics-preserving)."""
    H = hidden_size
    bound = 1.0 / np.sqrt(H)
    ks = jax.random.split(key, 10)
    u = lambda k, shape: jax.random.uniform(k, shape, jnp.float32, -bound, bound)

    wih0 = u(ks[0], (4 * H, input_size)).T      # (I, 4H)
    whh0 = u(ks[1], (4 * H, H)).T               # (H, 4H)
    b0 = (u(ks[2], (4 * H,)) + u(ks[3], (4 * H,))).reshape(1, 4 * H)
    wih1 = u(ks[4], (4 * H, H)).T               # (H, 4H)
    whh1 = u(ks[5], (4 * H, H)).T               # (H, 4H)
    b1 = (u(ks[6], (4 * H,)) + u(ks[7], (4 * H,))).reshape(1, 4 * H)
    wfc = u(ks[8], (output_size, H)).T          # (H, O)
    bfc = u(ks[9], (output_size,)).reshape(1, output_size)
    return dict(wih0=wih0, whh0=whh0, b0=b0, wih1=wih1, whh1=whh1, b1=b1,
                wfc=wfc, bfc=bfc)


def _reorder_ifgo_to_ifog(a):
    """Reorder the last (4H) axis from torch's (i, f, g, o) to (i, f, o, g) so the three
    sigmoid gates are contiguous lanes inside the kernel."""
    i, f, g, o = jnp.split(a, 4, axis=-1)
    return jnp.concatenate([i, f, o, g], axis=-1)


def pack_params(p):
    """Kernel-ready params: gate columns reordered to (i,f,o,g); recurrent weights of both
    layers packed into one block-diagonal (2H, 8H) matrix so the skewed per-step update is
    a single MXU matmul; matmul operands cast to bf16 (gate math / accumulation stay f32)."""
    r = _reorder_ifgo_to_ifog
    wih0 = r(p["wih0"])            # (I, 4H)
    whh0 = r(p["whh0"])            # (H, 4H)
    wih1 = r(p["wih1"])            # (H, 4H)
    whh1 = r(p["whh1"])            # (H, 4H)
    b0 = r(p["b0"])                # (1, 4H)
    b1 = r(p["b1"])                # (1, 4H)
    zeros = jnp.zeros_like(whh1)
    # [h0, h1] @ w_big = [ h0 @ W_hh0 | h0 @ W_ih1 + h1 @ W_hh1 ]
    w_big = jnp.concatenate(
        [jnp.concatenate([whh0, wih1], axis=1),     # rows 0:H
         jnp.concatenate([zeros, whh1], axis=1)],   # rows H:2H
        axis=0)                                     # (2H, 8H)
    return dict(wih0=wih0.astype(jnp.bfloat16), b0=b0,
                w_big=w_big.astype(jnp.bfloat16), b1=b1,
                wfc=p["wfc"].astype(jnp.bfloat16), bfc=p["bfc"])


def lstm_forward_ref(x, p):
    """Pure-JAX reference of the same forward (torch gate order, unskewed).  Matmul
    operands are rounded through bf16 to mirror the kernel's bf16-operand /
    f32-accumulate MXU path, so the comparison stays tight."""
    # TODO(synk): against a true f32 torch.nn.LSTM the kernel differs at ~bf16 precision
    # (bf16 MXU operands are the accepted contract here).
    B, T, I = x.shape
    H = p["whh0"].shape[0]
    r = lambda a: a.astype(jnp.bfloat16).astype(jnp.float32)

    def run_layer(seq, wih, whh, b):
        wih_r, whh_r = r(wih), r(whh)

        def step(carry, x_t):
            h, c = carry
            g = r(x_t) @ wih_r + r(h) @ whh_r + b
            i = jax.nn.sigmoid(g[:, 0 * H:1 * H])
            f = jax.nn.sigmoid(g[:, 1 * H:2 * H])
            gg = jnp.tanh(g[:, 2 * H:3 * H])
            o = jax.nn.sigmoid(g[:, 3 * H:4 * H])
            c = f * c + i * gg
            h = o * jnp.tanh(c)
            return (h, c), h

        z = jnp.zeros((B, H), jnp.float32)
        _, hs = lax.scan(step, (z, z), jnp.transpose(seq, (1, 0, 2)))
        return jnp.transpose(hs, (1, 0, 2))

    h0 = run_layer(x, p["wih0"], p["whh0"], p["b0"])
    h1 = run_layer(h0, p["wih1"], p["whh1"], p["b1"])
    return r(h1[:, -1, :]) @ r(p["wfc"]) + p["bfc"]


if __name__ == "__main__":
    # Shapes consistent with the module: hidden_size=64, num_layers=2,
    # output_size == input_size; small batch/seq.
    B, T, I, H = 16, 8, 4, 64
    O = I

    key = jax.random.PRNGKey(0)
    k_x, k_p = jax.random.split(key)
    x = jax.random.normal(k_x, (B, T, I), jnp.float32)

    raw = make_params(k_p, I, H, O)
    packed = pack_params(raw)

    out = jax.block_until_ready(lstm_forward(x, packed))
    ref = jax.block_until_ready(lstm_forward_ref(x, raw))

    assert out.shape == (B, O)
    np.testing.assert_allclose(np.asarray(out), np.asarray(ref),
                               rtol=2e-3, atol=2e-3)
    print("KERNEL_OK")
</pallas_src>

<mosaic_0001>
module attributes {stable_mosaic.version = 11 : i64} {
  func.func @_lstm_kernel(%arg0: i32, %arg1: memref<128x4xf32, #tpu.memory_space<vmem>>, %arg2: memref<4x256xbf16, #tpu.memory_space<vmem>>, %arg3: memref<1x256xf32, #tpu.memory_space<vmem>>, %arg4: memref<128x512xbf16, #tpu.memory_space<vmem>>, %arg5: memref<1x256xf32, #tpu.memory_space<vmem>>, %arg6: memref<64x4xbf16, #tpu.memory_space<vmem>>, %arg7: memref<1x4xf32, #tpu.memory_space<vmem>>, %arg8: memref<16x4xf32, #tpu.memory_space<vmem>>, %arg9: memref<16x8x256xf32, #tpu.memory_space<vmem>>) attributes {dimension_semantics = [#tpu.dimension_semantics<parallel>], iteration_bounds = array<i64: 1>, scalar_prefetch = 0 : i64, scratch_operands = 1 : i64, tpu.core_type = #tpu.core_type<tc>, window_params = [{transform_indices = @transform_0, window_bounds = array<i64: 128, 4>}, {pipeline_mode = #tpu.pipeline_mode<synchronous>, transform_indices = @transform_1, window_bounds = array<i64: 4, 256>}, {pipeline_mode = #tpu.pipeline_mode<synchronous>, transform_indices = @transform_2, window_bounds = array<i64: 1, 256>}, {pipeline_mode = #tpu.pipeline_mode<synchronous>, transform_indices = @transform_3, window_bounds = array<i64: 128, 512>}, {pipeline_mode = #tpu.pipeline_mode<synchronous>, transform_indices = @transform_4, window_bounds = array<i64: 1, 256>}, {pipeline_mode = #tpu.pipeline_mode<synchronous>, transform_indices = @transform_5, window_bounds = array<i64: 64, 4>}, {pipeline_mode = #tpu.pipeline_mode<synchronous>, transform_indices = @transform_6, window_bounds = array<i64: 1, 4>}, {transform_indices = @transform_7, window_bounds = array<i64: 16, 4>}]} {
    %c0 = arith.constant 0 : index
    %c0_0 = arith.constant 0 : index
    %0 = vector.load %arg4[%c0, %c0_0] : memref<128x512xbf16, #tpu.memory_space<vmem>>, vector<128x512xbf16>
    %c0_1 = arith.constant 0 : index
    %c0_2 = arith.constant 0 : index
    %1 = vector.load %arg5[%c0_1, %c0_2] : memref<1x256xf32, #tpu.memory_space<vmem>>, vector<1x256xf32>
    %2 = vector.shape_cast %1 : vector<1x256xf32> to vector<1x256xf32>
    %3 = vector.broadcast %2 : vector<1x256xf32> to vector<16x256xf32>
    %c0_3 = arith.constant 0 : index
    %c0_4 = arith.constant 0 : index
    %4 = vector.load %arg7[%c0_3, %c0_4] : memref<1x4xf32, #tpu.memory_space<vmem>>, vector<1x4xf32>
    %5 = vector.shape_cast %4 : vector<1x4xf32> to vector<1x4xf32>
    %6 = vector.broadcast %5 : vector<1x4xf32> to vector<16x4xf32>
    %c0_5 = arith.constant 0 : index
    %c0_6 = arith.constant 0 : index
    %7 = vector.load %arg1[%c0_5, %c0_6] : memref<128x4xf32, #tpu.memory_space<vmem>>, vector<128x4xf32>
    %8 = arith.truncf %7 : vector<128x4xf32> to vector<128x4xbf16>
    %c0_7 = arith.constant 0 : index
    %c0_8 = arith.constant 0 : index
    %9 = vector.load %arg2[%c0_7, %c0_8] : memref<4x256xbf16, #tpu.memory_space<vmem>>, vector<4x256xbf16>
    %cst = arith.constant dense<0.000000e+00> : vector<128x256xf32>
    %10 = tpu.matmul %8, %9, %cst {dimension_numbers = #tpu.dot_dimension_numbers<[1], [0], [0], [1], [0, 0, 1, 1], [], []>} : vector<128x4xbf16>, vector<4x256xbf16>, vector<128x256xf32> -> vector<128x256xf32>
    %c0_9 = arith.constant 0 : index
    %c0_10 = arith.constant 0 : index
    %11 = vector.load %arg3[%c0_9, %c0_10] : memref<1x256xf32, #tpu.memory_space<vmem>>, vector<1x256xf32>
    %12 = vector.broadcast %11 : vector<1x256xf32> to vector<128x256xf32>
    %13 = arith.addf %10, %12 : vector<128x256xf32>
    %14 = vector.shape_cast %13 : vector<128x256xf32> to vector<16x8x256xf32>
    %c0_11 = arith.constant 0 : index
    %c0_12 = arith.constant 0 : index
    %c0_13 = arith.constant 0 : index
    %15 = vector.load %arg9[%c0_11, %c0_12, %c0_13] : memref<16x8x256xf32, #tpu.memory_space<vmem>>, vector<16x8x256xf32>
    tpu.vector_store %arg9[%c0_11, %c0_12, %c0_13], %14 {strides = array<i32>} : memref<16x8x256xf32, #tpu.memory_space<vmem>>, vector<16x8x256xf32>,
    %cst_14 = arith.constant 0.000000e+00 : f32
    %16 = vector.broadcast %cst_14 : f32 to vector<16x64xf32>
    %c0_15 = arith.constant 0 : index
    %c0_16 = arith.constant 0 : index
    %c0_17 = arith.constant 0 : index
    %17 = vector.load %arg9[%c0_15, %c0_16, %c0_17] : memref<16x8x256xf32, #tpu.memory_space<vmem>>, vector<16x1x256xf32>
    %18 = vector.shape_cast %17 : vector<16x1x256xf32> to vector<16x256xf32>
    %19 = vector.extract_strided_slice %18 {offsets = [0, 0], sizes = [16, 192], strides = [1, 1]} : vector<16x256xf32> to vector<16x192xf32>
    %20 = arith.negf %19 : vector<16x192xf32>
    %21 = math.exp %20 : vector<16x192xf32>
    %cst_18 = arith.constant 1.000000e+00 : f32
    %22 = vector.broadcast %cst_18 : f32 to vector<16x192xf32>
    %23 = arith.addf %22, %21 : vector<16x192xf32>
    %24 = arith.divf %22, %23 : vector<16x192xf32>
    %25 = vector.extract_strided_slice %18 {offsets = [0, 192], sizes = [16, 64], strides = [1, 1]} : vector<16x256xf32> to vector<16x64xf32>
    %26 = math.tanh %25 : vector<16x64xf32>
    %27 = vector.extract_strided_slice %24 {offsets = [0, 0], sizes = [16, 64], strides = [1, 1]} : vector<16x192xf32> to vector<16x64xf32>
    %28 = vector.extract_strided_slice %24 {offsets = [0, 64], sizes = [16, 64], strides = [1, 1]} : vector<16x192xf32> to vector<16x64xf32>
    %29 = vector.extract_strided_slice %24 {offsets = [0, 128], sizes = [16, 64], strides = [1, 1]} : vector<16x192xf32> to vector<16x64xf32>
    %30 = arith.mulf %28, %16 : vector<16x64xf32>
    %31 = arith.mulf %27, %26 : vector<16x64xf32>
    %32 = arith.addf %30, %31 : vector<16x64xf32>
    %33 = math.tanh %32 : vector<16x64xf32>
    %34 = arith.mulf %29, %33 : vector<16x64xf32>
    %35 = tpu.concatenate %34, %16 in 1 : vector<16x64xf32>, vector<16x64xf32> -> vector<16x128xf32>
    %36 = arith.truncf %35 : vector<16x128xf32> to vector<16x128xbf16>
    %cst_19 = arith.constant dense<0.000000e+00> : vector<16x512xf32>
    %37 = tpu.matmul %36, %0, %cst_19 {dimension_numbers = #tpu.dot_dimension_numbers<[1], [0], [0], [1], [0, 0, 1, 1], [], []>} : vector<16x128xbf16>, vector<128x512xbf16>, vector<16x512xf32> -> vector<16x512xf32>
    %38 = vector.extract_strided_slice %37 {offsets = [0, 0], sizes = [16, 256], strides = [1, 1]} : vector<16x512xf32> to vector<16x256xf32>
    %c0_20 = arith.constant 0 : index
    %c1 = arith.constant 1 : index
    %c0_21 = arith.constant 0 : index
    %39 = vector.load %arg9[%c0_20, %c1, %c0_21] : memref<16x8x256xf32, #tpu.memory_space<vmem>>, vector<16x1x256xf32>
    %40 = vector.shape_cast %39 : vector<16x1x256xf32> to vector<16x256xf32>
    %41 = arith.addf %38, %40 : vector<16x256xf32>
    %42 = vector.extract_strided_slice %37 {offsets = [0, 256], sizes = [16, 256], strides = [1, 1]} : vector<16x512xf32> to vector<16x256xf32>
    %43 = arith.addf %42, %3 : vector<16x256xf32>
    %44 = vector.extract_strided_slice %41 {offsets = [0, 0], sizes = [16, 192], strides = [1, 1]} : vector<16x256xf32> to vector<16x192xf32>
    %45 = arith.negf %44 : vector<16x192xf32>
    %46 = math.exp %45 : vector<16x192xf32>
    %cst_22 = arith.constant 1.000000e+00 : f32
    %47 = vector.broadcast %cst_22 : f32 to vector<16x192xf32>
    %48 = arith.addf %47, %46 : vector<16x192xf32>
    %49 = arith.divf %47, %48 : vector<16x192xf32>
    %50 = vector.extract_strided_slice %41 {offsets = [0, 192], sizes = [16, 64], strides = [1, 1]} : vector<16x256xf32> to vector<16x64xf32>
    %51 = math.tanh %50 : vector<16x64xf32>
    %52 = vector.extract_strided_slice %49 {offsets = [0, 0], sizes = [16, 64], strides = [1, 1]} : vector<16x192xf32> to vector<16x64xf32>
    %53 = vector.extract_strided_slice %49 {offsets = [0, 64], sizes = [16, 64], strides = [1, 1]} : vector<16x192xf32> to vector<16x64xf32>
    %54 = vector.extract_strided_slice %49 {offsets = [0, 128], sizes = [16, 64], strides = [1, 1]} : vector<16x192xf32> to vector<16x64xf32>
    %55 = arith.mulf %53, %32 : vector<16x64xf32>
    %56 = arith.mulf %52, %51 : vector<16x64xf32>
    %57 = arith.addf %55, %56 : vector<16x64xf32>
    %58 = math.tanh %57 : vector<16x64xf32>
    %59 = arith.mulf %54, %58 : vector<16x64xf32>
    %60 = vector.extract_strided_slice %43 {offsets = [0, 0], sizes = [16, 192], strides = [1, 1]} : vector<16x256xf32> to vector<16x192xf32>
    %61 = arith.negf %60 : vector<16x192xf32>
    %62 = math.exp %61 : vector<16x192xf32>
    %cst_23 = arith.constant 1.000000e+00 : f32
    %63 = vector.broadcast %cst_23 : f32 to vector<16x192xf32>
    %64 = arith.addf %63, %62 : vector<16x192xf32>
    %65 = arith.divf %63, %64 : vector<16x192xf32>
    %66 = vector.extract_strided_slice %43 {offsets = [0, 192], sizes = [16, 64], strides = [1, 1]} : vector<16x256xf32> to vector<16x64xf32>
    %67 = math.tanh %66 : vector<16x64xf32>
    %68 = vector.extract_strided_slice %65 {offsets = [0, 0], sizes = [16, 64], strides = [1, 1]} : vector<16x192xf32> to vector<16x64xf32>
    %69 = vector.extract_strided_slice %65 {offsets = [0, 64], sizes = [16, 64], strides = [1, 1]} : vector<16x192xf32> to vector<16x64xf32>
    %70 = vector.extract_strided_slice %65 {offsets = [0, 128], sizes = [16, 64], strides = [1, 1]} : vector<16x192xf32> to vector<16x64xf32>
    %71 = arith.mulf %69, %16 : vector<16x64xf32>
    %72 = arith.mulf %68, %67 : vector<16x64xf32>
    %73 = arith.addf %71, %72 : vector<16x64xf32>
    %74 = math.tanh %73 : vector<16x64xf32>
    %75 = arith.mulf %70, %74 : vector<16x64xf32>
    %76 = tpu.concatenate %59, %75 in 1 : vector<16x64xf32>, vector<16x64xf32> -> vector<16x128xf32>
    %77 = arith.truncf %76 : vector<16x128xf32> to vector<16x128xbf16>
    %cst_24 = arith.constant dense<0.000000e+00> : vector<16x512xf32>
    %78 = tpu.matmul %77, %0, %cst_24 {dimension_numbers = #tpu.dot_dimension_numbers<[1], [0], [0], [1], [0, 0, 1, 1], [], []>} : vector<16x128xbf16>, vector<128x512xbf16>, vector<16x512xf32> -> vector<16x512xf32>
    %79 = vector.extract_strided_slice %78 {offsets = [0, 0], sizes = [16, 256], strides = [1, 1]} : vector<16x512xf32> to vector<16x256xf32>
    %c0_25 = arith.constant 0 : index
    %c2 = arith.constant 2 : index
    %c0_26 = arith.constant 0 : index
    %80 = vector.load %arg9[%c0_25, %c2, %c0_26] : memref<16x8x256xf32, #tpu.memory_space<vmem>>, vector<16x1x256xf32>
    %81 = vector.shape_cast %80 : vector<16x1x256xf32> to vector<16x256xf32>
    %82 = arith.addf %79, %81 : vector<16x256xf32>
    %83 = vector.extract_strided_slice %78 {offsets = [0, 256], sizes = [16, 256], strides = [1, 1]} : vector<16x512xf32> to vector<16x256xf32>
    %84 = arith.addf %83, %3 : vector<16x256xf32>
    %85 = vector.extract_strided_slice %82 {offsets = [0, 0], sizes = [16, 192], strides = [1, 1]} : vector<16x256xf32> to vector<16x192xf32>
    %86 = arith.negf %85 : vector<16x192xf32>
    %87 = math.exp %86 : vector<16x192xf32>
    %cst_27 = arith.constant 1.000000e+00 : f32
    %88 = vector.broadcast %cst_27 : f32 to vector<16x192xf32>
    %89 = arith.addf %88, %87 : vector<16x192xf32>
    %90 = arith.divf %88, %89 : vector<16x192xf32>
    %91 = vector.extract_strided_slice %82 {offsets = [0, 192], sizes = [16, 64], strides = [1, 1]} : vector<16x256xf32> to vector<16x64xf32>
    %92 = math.tanh %91 : vector<16x64xf32>
    %93 = vector.extract_strided_slice %90 {offsets = [0, 0], sizes = [16, 64], strides = [1, 1]} : vector<16x192xf32> to vector<16x64xf32>
    %94 = vector.extract_strided_slice %90 {offsets = [0, 64], sizes = [16, 64], strides = [1, 1]} : vector<16x192xf32> to vector<16x64xf32>
    %95 = vector.extract_strided_slice %90 {offsets = [0, 128], sizes = [16, 64], strides = [1, 1]} : vector<16x192xf32> to vector<16x64xf32>
    %96 = arith.mulf %94, %57 : vector<16x64xf32>
    %97 = arith.mulf %93, %92 : vector<16x64xf32>
    %98 = arith.addf %96, %97 : vector<16x64xf32>
    %99 = math.tanh %98 : vector<16x64xf32>
    %100 = arith.mulf %95, %99 : vector<16x64xf32>
    %101 = vector.extract_strided_slice %84 {offsets = [0, 0], sizes = [16, 192], strides = [1, 1]} : vector<16x256xf32> to vector<16x192xf32>
    %102 = arith.negf %101 : vector<16x192xf32>
    %103 = math.exp %102 : vector<16x192xf32>
    %cst_28 = arith.constant 1.000000e+00 : f32
    %104 = vector.broadcast %cst_28 : f32 to vector<16x192xf32>
    %105 = arith.addf %104, %103 : vector<16x192xf32>
    %106 = arith.divf %104, %105 : vector<16x192xf32>
    %107 = vector.extract_strided_slice %84 {offsets = [0, 192], sizes = [16, 64], strides = [1, 1]} : vector<16x256xf32> to vector<16x64xf32>
    %108 = math.tanh %107 : vector<16x64xf32>
    %109 = vector.extract_strided_slice %106 {offsets = [0, 0], sizes = [16, 64], strides = [1, 1]} : vector<16x192xf32> to vector<16x64xf32>
    %110 = vector.extract_strided_slice %106 {offsets = [0, 64], sizes = [16, 64], strides = [1, 1]} : vector<16x192xf32> to vector<16x64xf32>
    %111 = vector.extract_strided_slice %106 {offsets = [0, 128], sizes = [16, 64], strides = [1, 1]} : vector<16x192xf32> to vector<16x64xf32>
    %112 = arith.mulf %110, %73 : vector<16x64xf32>
    %113 = arith.mulf %109, %108 : vector<16x64xf32>
    %114 = arith.addf %112, %113 : vector<16x64xf32>
    %115 = math.tanh %114 : vector<16x64xf32>
    %116 = arith.mulf %111, %115 : vector<16x64xf32>
    %117 = tpu.concatenate %100, %116 in 1 : vector<16x64xf32>, vector<16x64xf32> -> vector<16x128xf32>
    %118 = arith.truncf %117 : vector<16x128xf32> to vector<16x128xbf16>
    %cst_29 = arith.constant dense<0.000000e+00> : vector<16x512xf32>
    %119 = tpu.matmul %118, %0, %cst_29 {dimension_numbers = #tpu.dot_dimension_numbers<[1], [0], [0], [1], [0, 0, 1, 1], [], []>} : vector<16x128xbf16>, vector<128x512xbf16>, vector<16x512xf32> -> vector<16x512xf32>
    %120 = vector.extract_strided_slice %119 {offsets = [0, 0], sizes = [16, 256], strides = [1, 1]} : vector<16x512xf32> to vector<16x256xf32>
    %c0_30 = arith.constant 0 : index
    %c3 = arith.constant 3 : index
    %c0_31 = arith.constant 0 : index
    %121 = vector.load %arg9[%c0_30, %c3, %c0_31] : memref<16x8x256xf32, #tpu.memory_space<vmem>>, vector<16x1x256xf32>
    %122 = vector.shape_cast %121 : vector<16x1x256xf32> to vector<16x256xf32>
    %123 = arith.addf %120, %122 : vector<16x256xf32>
    %124 = vector.extract_strided_slice %119 {offsets = [0, 256], sizes = [16, 256], strides = [1, 1]} : vector<16x512xf32> to vector<16x256xf32>
    %125 = arith.addf %124, %3 : vector<16x256xf32>
    %126 = vector.extract_strided_slice %123 {offsets = [0, 0], sizes = [16, 192], strides = [1, 1]} : vector<16x256xf32> to vector<16x192xf32>
    %127 = arith.negf %126 : vector<16x192xf32>
    %128 = math.exp %127 : vector<16x192xf32>
    %cst_32 = arith.constant 1.000000e+00 : f32
    %129 = vector.broadcast %cst_32 : f32 to vector<16x192xf32>
    %130 = arith.addf %129, %128 : vector<16x192xf32>
    %131 = arith.divf %129, %130 : vector<16x192xf32>
    %132 = vector.extract_strided_slice %123 {offsets = [0, 192], sizes = [16, 64], strides = [1, 1]} : vector<16x256xf32> to vector<16x64xf32>
    %133 = math.tanh %132 : vector<16x64xf32>
    %134 = vector.extract_strided_slice %131 {offsets = [0, 0], sizes = [16, 64], strides = [1, 1]} : vector<16x192xf32> to vector<16x64xf32>
    %135 = vector.extract_strided_slice %131 {offsets = [0, 64], sizes = [16, 64], strides = [1, 1]} : vector<16x192xf32> to vector<16x64xf32>
    %136 = vector.extract_strided_slice %131 {offsets = [0, 128], sizes = [16, 64], strides = [1, 1]} : vector<16x192xf32> to vector<16x64xf32>
    %137 = arith.mulf %135, %98 : vector<16x64xf32>
    %138 = arith.mulf %134, %133 : vector<16x64xf32>
    %139 = arith.addf %137, %138 : vector<16x64xf32>
    %140 = math.tanh %139 : vector<16x64xf32>
    %141 = arith.mulf %136, %140 : vector<16x64xf32>
    %142 = vector.extract_strided_slice %125 {offsets = [0, 0], sizes = [16, 192], strides = [1, 1]} : vector<16x256xf32> to vector<16x192xf32>
    %143 = arith.negf %142 : vector<16x192xf32>
    %144 = math.exp %143 : vector<16x192xf32>
    %cst_33 = arith.constant 1.000000e+00 : f32
    %145 = vector.broadcast %cst_33 : f32 to vector<16x192xf32>
    %146 = arith.addf %145, %144 : vector<16x192xf32>
    %147 = arith.divf %145, %146 : vector<16x192xf32>
    %148 = vector.extract_strided_slice %125 {offsets = [0, 192], sizes = [16, 64], strides = [1, 1]} : vector<16x256xf32> to vector<16x64xf32>
    %149 = math.tanh %148 : vector<16x64xf32>
    %150 = vector.extract_strided_slice %147 {offsets = [0, 0], sizes = [16, 64], strides = [1, 1]} : vector<16x192xf32> to vector<16x64xf32>
    %151 = vector.extract_strided_slice %147 {offsets = [0, 64], sizes = [16, 64], strides = [1, 1]} : vector<16x192xf32> to vector<16x64xf32>
    %152 = vector.extract_strided_slice %147 {offsets = [0, 128], sizes = [16, 64], strides = [1, 1]} : vector<16x192xf32> to vector<16x64xf32>
    %153 = arith.mulf %151, %114 : vector<16x64xf32>
    %154 = arith.mulf %150, %149 : vector<16x64xf32>
    %155 = arith.addf %153, %154 : vector<16x64xf32>
    %156 = math.tanh %155 : vector<16x64xf32>
    %157 = arith.mulf %152, %156 : vector<16x64xf32>
    %158 = tpu.concatenate %141, %157 in 1 : vector<16x64xf32>, vector<16x64xf32> -> vector<16x128xf32>
    %159 = arith.truncf %158 : vector<16x128xf32> to vector<16x128xbf16>
    %cst_34 = arith.constant dense<0.000000e+00> : vector<16x512xf32>
    %160 = tpu.matmul %159, %0, %cst_34 {dimension_numbers = #tpu.dot_dimension_numbers<[1], [0], [0], [1], [0, 0, 1, 1], [], []>} : vector<16x128xbf16>, vector<128x512xbf16>, vector<16x512xf32> -> vector<16x512xf32>
    %161 = vector.extract_strided_slice %160 {offsets = [0, 0], sizes = [16, 256], strides = [1, 1]} : vector<16x512xf32> to vector<16x256xf32>
    %c0_35 = arith.constant 0 : index
    %c4 = arith.constant 4 : index
    %c0_36 = arith.constant 0 : index
    %162 = vector.load %arg9[%c0_35, %c4, %c0_36] : memref<16x8x256xf32, #tpu.memory_space<vmem>>, vector<16x1x256xf32>
    %163 = vector.shape_cast %162 : vector<16x1x256xf32> to vector<16x256xf32>
    %164 = arith.addf %161, %163 : vector<16x256xf32>
    %165 = vector.extract_strided_slice %160 {offsets = [0, 256], sizes = [16, 256], strides = [1, 1]} : vector<16x512xf32> to vector<16x256xf32>
    %166 = arith.addf %165, %3 : vector<16x256xf32>
    %167 = vector.extract_strided_slice %164 {offsets = [0, 0], sizes = [16, 192], strides = [1, 1]} : vector<16x256xf32> to vector<16x192xf32>
    %168 = arith.negf %167 : vector<16x192xf32>
    %169 = math.exp %168 : vector<16x192xf32>
    %cst_37 = arith.constant 1.000000e+00 : f32
    %170 = vector.broadcast %cst_37 : f32 to vector<16x192xf32>
    %171 = arith.addf %170, %169 : vector<16x192xf32>
    %172 = arith.divf %170, %171 : vector<16x192xf32>
    %173 = vector.extract_strided_slice %164 {offsets = [0, 192], sizes = [16, 64], strides = [1, 1]} : vector<16x256xf32> to vector<16x64xf32>
    %174 = math.tanh %173 : vector<16x64xf32>
    %175 = vector.extract_strided_slice %172 {offsets = [0, 0], sizes = [16, 64], strides = [1, 1]} : vector<16x192xf32> to vector<16x64xf32>
    %176 = vector.extract_strided_slice %172 {offsets = [0, 64], sizes = [16, 64], strides = [1, 1]} : vector<16x192xf32> to vector<16x64xf32>
    %177 = vector.extract_strided_slice %172 {offsets = [0, 128], sizes = [16, 64], strides = [1, 1]} : vector<16x192xf32> to vector<16x64xf32>
    %178 = arith.mulf %176, %139 : vector<16x64xf32>
    %179 = arith.mulf %175, %174 : vector<16x64xf32>
    %180 = arith.addf %178, %179 : vector<16x64xf32>
    %181 = math.tanh %180 : vector<16x64xf32>
    %182 = arith.mulf %177, %181 : vector<16x64xf32>
    %183 = vector.extract_strided_slice %166 {offsets = [0, 0], sizes = [16, 192], strides = [1, 1]} : vector<16x256xf32> to vector<16x192xf32>
    %184 = arith.negf %183 : vector<16x192xf32>
    %185 = math.exp %184 : vector<16x192xf32>
    %cst_38 = arith.constant 1.000000e+00 : f32
    %186 = vector.broadcast %cst_38 : f32 to vector<16x192xf32>
    %187 = arith.addf %186, %185 : vector<16x192xf32>
    %188 = arith.divf %186, %187 : vector<16x192xf32>
    %189 = vector.extract_strided_slice %166 {offsets = [0, 192], sizes = [16, 64], strides = [1, 1]} : vector<16x256xf32> to vector<16x64xf32>
    %190 = math.tanh %189 : vector<16x64xf32>
    %191 = vector.extract_strided_slice %188 {offsets = [0, 0], sizes = [16, 64], strides = [1, 1]} : vector<16x192xf32> to vector<16x64xf32>
    %192 = vector.extract_strided_slice %188 {offsets = [0, 64], sizes = [16, 64], strides = [1, 1]} : vector<16x192xf32> to vector<16x64xf32>
    %193 = vector.extract_strided_slice %188 {offsets = [0, 128], sizes = [16, 64], strides = [1, 1]} : vector<16x192xf32> to vector<16x64xf32>
    %194 = arith.mulf %192, %155 : vector<16x64xf32>
    %195 = arith.mulf %191, %190 : vector<16x64xf32>
    %196 = arith.addf %194, %195 : vector<16x64xf32>
    %197 = math.tanh %196 : vector<16x64xf32>
    %198 = arith.mulf %193, %197 : vector<16x64xf32>
    %199 = tpu.concatenate %182, %198 in 1 : vector<16x64xf32>, vector<16x64xf32> -> vector<16x128xf32>
    %200 = arith.truncf %199 : vector<16x128xf32> to vector<16x128xbf16>
    %cst_39 = arith.constant dense<0.000000e+00> : vector<16x512xf32>
    %201 = tpu.matmul %200, %0, %cst_39 {dimension_numbers = #tpu.dot_dimension_numbers<[1], [0], [0], [1], [0, 0, 1, 1], [], []>} : vector<16x128xbf16>, vector<128x512xbf16>, vector<16x512xf32> -> vector<16x512xf32>
    %202 = vector.extract_strided_slice %201 {offsets = [0, 0], sizes = [16, 256], strides = [1, 1]} : vector<16x512xf32> to vector<16x256xf32>
    %c0_40 = arith.constant 0 : index
    %c5 = arith.constant 5 : index
    %c0_41 = arith.constant 0 : index
    %203 = vector.load %arg9[%c0_40, %c5, %c0_41] : memref<16x8x256xf32, #tpu.memory_space<vmem>>, vector<16x1x256xf32>
    %204 = vector.shape_cast %203 : vector<16x1x256xf32> to vector<16x256xf32>
    %205 = arith.addf %202, %204 : vector<16x256xf32>
    %206 = vector.extract_strided_slice %201 {offsets = [0, 256], sizes = [16, 256], strides = [1, 1]} : vector<16x512xf32> to vector<16x256xf32>
    %207 = arith.addf %206, %3 : vector<16x256xf32>
    %208 = vector.extract_strided_slice %205 {offsets = [0, 0], sizes = [16, 192], strides = [1, 1]} : vector<16x256xf32> to vector<16x192xf32>
    %209 = arith.negf %208 : vector<16x192xf32>
    %210 = math.exp %209 : vector<16x192xf32>
    %cst_42 = arith.constant 1.000000e+00 : f32
    %211 = vector.broadcast %cst_42 : f32 to vector<16x192xf32>
    %212 = arith.addf %211, %210 : vector<16x192xf32>
    %213 = arith.divf %211, %212 : vector<16x192xf32>
    %214 = vector.extract_strided_slice %205 {offsets = [0, 192], sizes = [16, 64], strides = [1, 1]} : vector<16x256xf32> to vector<16x64xf32>
    %215 = math.tanh %214 : vector<16x64xf32>
    %216 = vector.extract_strided_slice %213 {offsets = [0, 0], sizes = [16, 64], strides = [1, 1]} : vector<16x192xf32> to vector<16x64xf32>
    %217 = vector.extract_strided_slice %213 {offsets = [0, 64], sizes = [16, 64], strides = [1, 1]} : vector<16x192xf32> to vector<16x64xf32>
    %218 = vector.extract_strided_slice %213 {offsets = [0, 128], sizes = [16, 64], strides = [1, 1]} : vector<16x192xf32> to vector<16x64xf32>
    %219 = arith.mulf %217, %180 : vector<16x64xf32>
    %220 = arith.mulf %216, %215 : vector<16x64xf32>
    %221 = arith.addf %219, %220 : vector<16x64xf32>
    %222 = math.tanh %221 : vector<16x64xf32>
    %223 = arith.mulf %218, %222 : vector<16x64xf32>
    %224 = vector.extract_strided_slice %207 {offsets = [0, 0], sizes = [16, 192], strides = [1, 1]} : vector<16x256xf32> to vector<16x192xf32>
    %225 = arith.negf %224 : vector<16x192xf32>
    %226 = math.exp %225 : vector<16x192xf32>
    %cst_43 = arith.constant 1.000000e+00 : f32
    %227 = vector.broadcast %cst_43 : f32 to vector<16x192xf32>
    %228 = arith.addf %227, %226 : vector<16x192xf32>
    %229 = arith.divf %227, %228 : vector<16x192xf32>
    %230 = vector.extract_strided_slice %207 {offsets = [0, 192], sizes = [16, 64], strides = [1, 1]} : vector<16x256xf32> to vector<16x64xf32>
    %231 = math.tanh %230 : vector<16x64xf32>
    %232 = vector.extract_strided_slice %229 {offsets = [0, 0], sizes = [16, 64], strides = [1, 1]} : vector<16x192xf32> to vector<16x64xf32>
    %233 = vector.extract_strided_slice %229 {offsets = [0, 64], sizes = [16, 64], strides = [1, 1]} : vector<16x192xf32> to vector<16x64xf32>
    %234 = vector.extract_strided_slice %229 {offsets = [0, 128], sizes = [16, 64], strides = [1, 1]} : vector<16x192xf32> to vector<16x64xf32>
    %235 = arith.mulf %233, %196 : vector<16x64xf32>
    %236 = arith.mulf %232, %231 : vector<16x64xf32>
    %237 = arith.addf %235, %236 : vector<16x64xf32>
    %238 = math.tanh %237 : vector<16x64xf32>
    %239 = arith.mulf %234, %238 : vector<16x64xf32>
    %240 = tpu.concatenate %223, %239 in 1 : vector<16x64xf32>, vector<16x64xf32> -> vector<16x128xf32>
    %241 = arith.truncf %240 : vector<16x128xf32> to vector<16x128xbf16>
    %cst_44 = arith.constant dense<0.000000e+00> : vector<16x512xf32>
    %242 = tpu.matmul %241, %0, %cst_44 {dimension_numbers = #tpu.dot_dimension_numbers<[1], [0], [0], [1], [0, 0, 1, 1], [], []>} : vector<16x128xbf16>, vector<128x512xbf16>, vector<16x512xf32> -> vector<16x512xf32>
    %243 = vector.extract_strided_slice %242 {offsets = [0, 0], sizes = [16, 256], strides = [1, 1]} : vector<16x512xf32> to vector<16x256xf32>
    %c0_45 = arith.constant 0 : index
    %c6 = arith.constant 6 : index
    %c0_46 = arith.constant 0 : index
    %244 = vector.load %arg9[%c0_45, %c6, %c0_46] : memref<16x8x256xf32, #tpu.memory_space<vmem>>, vector<16x1x256xf32>
    %245 = vector.shape_cast %244 : vector<16x1x256xf32> to vector<16x256xf32>
    %246 = arith.addf %243, %245 : vector<16x256xf32>
    %247 = vector.extract_strided_slice %242 {offsets = [0, 256], sizes = [16, 256], strides = [1, 1]} : vector<16x512xf32> to vector<16x256xf32>
    %248 = arith.addf %247, %3 : vector<16x256xf32>
    %249 = vector.extract_strided_slice %246 {offsets = [0, 0], sizes = [16, 192], strides = [1, 1]} : vector<16x256xf32> to vector<16x192xf32>
    %250 = arith.negf %249 : vector<16x192xf32>
    %251 = math.exp %250 : vector<16x192xf32>
    %cst_47 = arith.constant 1.000000e+00 : f32
    %252 = vector.broadcast %cst_47 : f32 to vector<16x192xf32>
    %253 = arith.addf %252, %251 : vector<16x192xf32>
    %254 = arith.divf %252, %253 : vector<16x192xf32>
    %255 = vector.extract_strided_slice %246 {offsets = [0, 192], sizes = [16, 64], strides = [1, 1]} : vector<16x256xf32> to vector<16x64xf32>
    %256 = math.tanh %255 : vector<16x64xf32>
    %257 = vector.extract_strided_slice %254 {offsets = [0, 0], sizes = [16, 64], strides = [1, 1]} : vector<16x192xf32> to vector<16x64xf32>
    %258 = vector.extract_strided_slice %254 {offsets = [0, 64], sizes = [16, 64], strides = [1, 1]} : vector<16x192xf32> to vector<16x64xf32>
    %259 = vector.extract_strided_slice %254 {offsets = [0, 128], sizes = [16, 64], strides = [1, 1]} : vector<16x192xf32> to vector<16x64xf32>
    %260 = arith.mulf %258, %221 : vector<16x64xf32>
    %261 = arith.mulf %257, %256 : vector<16x64xf32>
    %262 = arith.addf %260, %261 : vector<16x64xf32>
    %263 = math.tanh %262 : vector<16x64xf32>
    %264 = arith.mulf %259, %263 : vector<16x64xf32>
    %265 = vector.extract_strided_slice %248 {offsets = [0, 0], sizes = [16, 192], strides = [1, 1]} : vector<16x256xf32> to vector<16x192xf32>
    %266 = arith.negf %265 : vector<16x192xf32>
    %267 = math.exp %266 : vector<16x192xf32>
    %cst_48 = arith.constant 1.000000e+00 : f32
    %268 = vector.broadcast %cst_48 : f32 to vector<16x192xf32>
    %269 = arith.addf %268, %267 : vector<16x192xf32>
    %270 = arith.divf %268, %269 : vector<16x192xf32>
    %271 = vector.extract_strided_slice %248 {offsets = [0, 192], sizes = [16, 64], strides = [1, 1]} : vector<16x256xf32> to vector<16x64xf32>
    %272 = math.tanh %271 : vector<16x64xf32>
    %273 = vector.extract_strided_slice %270 {offsets = [0, 0], sizes = [16, 64], strides = [1, 1]} : vector<16x192xf32> to vector<16x64xf32>
    %274 = vector.extract_strided_slice %270 {offsets = [0, 64], sizes = [16, 64], strides = [1, 1]} : vector<16x192xf32> to vector<16x64xf32>
    %275 = vector.extract_strided_slice %270 {offsets = [0, 128], sizes = [16, 64], strides = [1, 1]} : vector<16x192xf32> to vector<16x64xf32>
    %276 = arith.mulf %274, %237 : vector<16x64xf32>
    %277 = arith.mulf %273, %272 : vector<16x64xf32>
    %278 = arith.addf %276, %277 : vector<16x64xf32>
    %279 = math.tanh %278 : vector<16x64xf32>
    %280 = arith.mulf %275, %279 : vector<16x64xf32>
    %281 = tpu.concatenate %264, %280 in 1 : vector<16x64xf32>, vector<16x64xf32> -> vector<16x128xf32>
    %282 = arith.truncf %281 : vector<16x128xf32> to vector<16x128xbf16>
    %cst_49 = arith.constant dense<0.000000e+00> : vector<16x512xf32>
    %283 = tpu.matmul %282, %0, %cst_49 {dimension_numbers = #tpu.dot_dimension_numbers<[1], [0], [0], [1], [0, 0, 1, 1], [], []>} : vector<16x128xbf16>, vector<128x512xbf16>, vector<16x512xf32> -> vector<16x512xf32>
    %284 = vector.extract_strided_slice %283 {offsets = [0, 0], sizes = [16, 256], strides = [1, 1]} : vector<16x512xf32> to vector<16x256xf32>
    %c0_50 = arith.constant 0 : index
    %c7 = arith.constant 7 : index
    %c0_51 = arith.constant 0 : index
    %285 = vector.load %arg9[%c0_50, %c7, %c0_51] : memref<16x8x256xf32, #tpu.memory_space<vmem>>, vector<16x1x256xf32>
    %286 = vector.shape_cast %285 : vector<16x1x256xf32> to vector<16x256xf32>
    %287 = arith.addf %284, %286 : vector<16x256xf32>
    %288 = vector.extract_strided_slice %283 {offsets = [0, 256], sizes = [16, 256], strides = [1, 1]} : vector<16x512xf32> to vector<16x256xf32>
    %289 = arith.addf %288, %3 : vector<16x256xf32>
    %290 = vector.extract_strided_slice %287 {offsets = [0, 0], sizes = [16, 192], strides = [1, 1]} : vector<16x256xf32> to vector<16x192xf32>
    %291 = arith.negf %290 : vector<16x192xf32>
    %292 = math.exp %291 : vector<16x192xf32>
    %cst_52 = arith.constant 1.000000e+00 : f32
    %293 = vector.broadcast %cst_52 : f32 to vector<16x192xf32>
    %294 = arith.addf %293, %292 : vector<16x192xf32>
    %295 = arith.divf %293, %294 : vector<16x192xf32>
    %296 = vector.extract_strided_slice %287 {offsets = [0, 192], sizes = [16, 64], strides = [1, 1]} : vector<16x256xf32> to vector<16x64xf32>
    %297 = math.tanh %296 : vector<16x64xf32>
    %298 = vector.extract_strided_slice %295 {offsets = [0, 0], sizes = [16, 64], strides = [1, 1]} : vector<16x192xf32> to vector<16x64xf32>
    %299 = vector.extract_strided_slice %295 {offsets = [0, 64], sizes = [16, 64], strides = [1, 1]} : vector<16x192xf32> to vector<16x64xf32>
    %300 = vector.extract_strided_slice %295 {offsets = [0, 128], sizes = [16, 64], strides = [1, 1]} : vector<16x192xf32> to vector<16x64xf32>
    %301 = arith.mulf %299, %262 : vector<16x64xf32>
    %302 = arith.mulf %298, %297 : vector<16x64xf32>
    %303 = arith.addf %301, %302 : vector<16x64xf32>
    %304 = math.tanh %303 : vector<16x64xf32>
    %305 = arith.mulf %300, %304 : vector<16x64xf32>
    %306 = vector.extract_strided_slice %289 {offsets = [0, 0], sizes = [16, 192], strides = [1, 1]} : vector<16x256xf32> to vector<16x192xf32>
    %307 = arith.negf %306 : vector<16x192xf32>
    %308 = math.exp %307 : vector<16x192xf32>
    %cst_53 = arith.constant 1.000000e+00 : f32
    %309 = vector.broadcast %cst_53 : f32 to vector<16x192xf32>
    %310 = arith.addf %309, %308 : vector<16x192xf32>
    %311 = arith.divf %309, %310 : vector<16x192xf32>
    %312 = vector.extract_strided_slice %289 {offsets = [0, 192], sizes = [16, 64], strides = [1, 1]} : vector<16x256xf32> to vector<16x64xf32>
    %313 = math.tanh %312 : vector<16x64xf32>
    %314 = vector.extract_strided_slice %311 {offsets = [0, 0], sizes = [16, 64], strides = [1, 1]} : vector<16x192xf32> to vector<16x64xf32>
    %315 = vector.extract_strided_slice %311 {offsets = [0, 64], sizes = [16, 64], strides = [1, 1]} : vector<16x192xf32> to vector<16x64xf32>
    %316 = vector.extract_strided_slice %311 {offsets = [0, 128], sizes = [16, 64], strides = [1, 1]} : vector<16x192xf32> to vector<16x64xf32>
    %317 = arith.mulf %315, %278 : vector<16x64xf32>
    %318 = arith.mulf %314, %313 : vector<16x64xf32>
    %319 = arith.addf %317, %318 : vector<16x64xf32>
    %320 = math.tanh %319 : vector<16x64xf32>
    %321 = arith.mulf %316, %320 : vector<16x64xf32>
    %322 = tpu.concatenate %305, %321 in 1 : vector<16x64xf32>, vector<16x64xf32> -> vector<16x128xf32>
    %323 = arith.truncf %322 : vector<16x128xf32> to vector<16x128xbf16>
    %cst_54 = arith.constant dense<0.000000e+00> : vector<16x512xf32>
    %324 = tpu.matmul %323, %0, %cst_54 {dimension_numbers = #tpu.dot_dimension_numbers<[1], [0], [0], [1], [0, 0, 1, 1], [], []>} : vector<16x128xbf16>, vector<128x512xbf16>, vector<16x512xf32> -> vector<16x512xf32>
    %325 = vector.extract_strided_slice %324 {offsets = [0, 256], sizes = [16, 256], strides = [1, 1]} : vector<16x512xf32> to vector<16x256xf32>
    %326 = arith.addf %325, %3 : vector<16x256xf32>
    %327 = vector.extract_strided_slice %326 {offsets = [0, 0], sizes = [16, 192], strides = [1, 1]} : vector<16x256xf32> to vector<16x192xf32>
    %328 = arith.negf %327 : vector<16x192xf32>
    %329 = math.exp %328 : vector<16x192xf32>
    %cst_55 = arith.constant 1.000000e+00 : f32
    %330 = vector.broadcast %cst_55 : f32 to vector<16x192xf32>
    %331 = arith.addf %330, %329 : vector<16x192xf32>
    %332 = arith.divf %330, %331 : vector<16x192xf32>
    %333 = vector.extract_strided_slice %326 {offsets = [0, 192], sizes = [16, 64], strides = [1, 1]} : vector<16x256xf32> to vector<16x64xf32>
    %334 = math.tanh %333 : vector<16x64xf32>
    %335 = vector.extract_strided_slice %332 {offsets = [0, 0], sizes = [16, 64], strides = [1, 1]} : vector<16x192xf32> to vector<16x64xf32>
    %336 = vector.extract_strided_slice %332 {offsets = [0, 64], sizes = [16, 64], strides = [1, 1]} : vector<16x192xf32> to vector<16x64xf32>
    %337 = vector.extract_strided_slice %332 {offsets = [0, 128], sizes = [16, 64], strides = [1, 1]} : vector<16x192xf32> to vector<16x64xf32>
    %338 = arith.mulf %336, %319 : vector<16x64xf32>
    %339 = arith.mulf %335, %334 : vector<16x64xf32>
    %340 = arith.addf %338, %339 : vector<16x64xf32>
    %341 = math.tanh %340 : vector<16x64xf32>
    %342 = arith.mulf %337, %341 : vector<16x64xf32>
    %343 = arith.truncf %342 : vector<16x64xf32> to vector<16x64xbf16>
    %c0_56 = arith.constant 0 : index
    %c0_57 = arith.constant 0 : index
    %344 = vector.load %arg6[%c0_56, %c0_57] : memref<64x4xbf16, #tpu.memory_space<vmem>>, vector<64x4xbf16>
    %cst_58 = arith.constant dense<0.000000e+00> : vector<16x4xf32>
    %345 = tpu.matmul %343, %344, %cst_58 {dimension_numbers = #tpu.dot_dimension_numbers<[1], [0], [0], [1], [0, 0, 1, 1], [], []>} : vector<16x64xbf16>, vector<64x4xbf16>, vector<16x4xf32> -> vector<16x4xf32>
    %346 = arith.addf %345, %6 : vector<16x4xf32>
    %c0_59 = arith.constant 0 : index
    %c0_60 = arith.constant 0 : index
    %347 = vector.load %arg8[%c0_59, %c0_60] : memref<16x4xf32, #tpu.memory_space<vmem>>, vector<16x4xf32>
    tpu.vector_store %arg8[%c0_59, %c0_60], %346 {strides = array<i32>} : memref<16x4xf32, #tpu.memory_space<vmem>>, vector<16x4xf32>,
    return
  }
  func.func @transform_0(%arg0: i32) -> (i32, i32) {
    %c0_i32 = arith.constant 0 : i32
    %c0_i32_0 = arith.constant 0 : i32
    return %arg0, %c0_i32 : i32, i32
  }
  func.func @transform_1(%arg0: i32) -> (i32, i32) {
    %c0_i32 = arith.constant 0 : i32
    %c0_i32_0 = arith.constant 0 : i32
    %c0_i32_1 = arith.constant 0 : i32
    return %c0_i32, %c0_i32_0 : i32, i32
  }
  func.func @transform_2(%arg0: i32) -> (i32, i32) {
    %c0_i32 = arith.constant 0 : i32
    %c0_i32_0 = arith.constant 0 : i32
    %c0_i32_1 = arith.constant 0 : i32
    return %c0_i32, %c0_i32_0 : i32, i32
  }
  func.func @transform_3(%arg0: i32) -> (i32, i32) {
    %c0_i32 = arith.constant 0 : i32
    %c0_i32_0 = arith.constant 0 : i32
    %c0_i32_1 = arith.constant 0 : i32
    return %c0_i32, %c0_i32_0 : i32, i32
  }
  func.func @transform_4(%arg0: i32) -> (i32, i32) {
    %c0_i32 = arith.constant 0 : i32
    %c0_i32_0 = arith.constant 0 : i32
    %c0_i32_1 = arith.constant 0 : i32
    return %c0_i32, %c0_i32_0 : i32, i32
  }
  func.func @transform_5(%arg0: i32) -> (i32, i32) {
    %c0_i32 = arith.constant 0 : i32
    %c0_i32_0 = arith.constant 0 : i32
    %c0_i32_1 = arith.constant 0 : i32
    return %c0_i32, %c0_i32_0 : i32, i32
  }
  func.func @transform_6(%arg0: i32) -> (i32, i32) {
    %c0_i32 = arith.constant 0 : i32
    %c0_i32_0 = arith.constant 0 : i32
    %c0_i32_1 = arith.constant 0 : i32
    return %c0_i32, %c0_i32_0 : i32, i32
  }
  func.func @transform_7(%arg0: i32) -> (i32, i32) {
    %c0_i32 = arith.constant 0 : i32
    %c0_i32_0 = arith.constant 0 : i32
    return %arg0, %c0_i32 : i32, i32
  }
}

</mosaic_0001>

<llo_original>
// kernel: tpu_custom_call.1
$region0: #{tpu_custom_call.1}
  #allocation0 [shape = 'u32[]', space=smem, size = 0x4, offset = 0x4, fixed_abs, tag = 'smem constant byte address 0x4 - core index']
  #allocation1 [shape = 'u32[144,128]{1,0:T(1,128)}', space=vmem, size = 0x12000, scoped, tag = 'internal scratch']
  #allocation2 [shape = 'f32[16,8,256]{2,1,0:T(8,128)}', space=vmem, size = 0x20000, scoped, tag = 'scratch operand']
  %s0 = inlined_call_operand.vmem [shape: f32[128,4], index: 0, kind: input, shape index: {}]
  %s1 = inlined_call_operand.vmem [shape: bf16[4,256], index: 1, kind: input, shape index: {}]
  %s2 = inlined_call_operand.vmem [shape: f32[1,256], index: 2, kind: input, shape index: {}]
  %s3 = inlined_call_operand.hbm [shape: bf16[128,512], index: 3, kind: input, shape index: {}]
  %s4 = inlined_call_operand.vmem [shape: f32[1,256], index: 4, kind: input, shape index: {}]
  %s5 = inlined_call_operand.vmem [shape: bf16[64,4], index: 5, kind: input, shape index: {}]
  %s6 = inlined_call_operand.vmem [shape: f32[1,4], index: 6, kind: input, shape index: {}]
  %s7 = inlined_call_operand.vmem [shape: f32[16,4], index: 7, kind: output, shape index: {}]
  %s8 = sld [smem:[#allocation0]]
  $region42: #{tpu_custom_call.1} parent=0
    _
  %s10 = ssub.s32 1, %s8
  %s11 = scalar_select 0, %s10, %s8
  $region1: #{tpu_custom_call.1} parent=0
    #allocation3 [shape = 'u8[131072]{0}', space=vmem, size = 0x20000, scoped, tag = 'input window, operand 3, single buffered']
    #allocation4 [shape = 's32[1]{0}', space=sflag, size = 0x4, scoped, tag = 'scoped memory for tpu_custom_call.1']
    %12 = vsyncpa [#allocation4], 0
    // Predicated region
    $region2: #{tpu_custom_call.1} parent=1 // pred_check
      _
    $region3: #{tpu_custom_call.1} parent=1 // pred_check_branch
      %14 = sbr.rel (0) target = $region5
    $region4: #{tpu_custom_call.1} parent=1 // pred_region
      _
    $region5: #{tpu_custom_call.1} parent=1 // pred_fallthru
      _
    // Predicated region
    $region6: #{tpu_custom_call.1} parent=1 // pred_check
      _
    $region7: #{tpu_custom_call.1} parent=1 // pred_check_branch
      %16 = sbr.rel (0) target = $region9
    $region8: #{tpu_custom_call.1} parent=1 // pred_region
      _
    $region9: #{tpu_custom_call.1} parent=1 // pred_fallthru
      _
    // Predicated region
    $region10: #{tpu_custom_call.1} parent=1 // pred_check
      _
    $region11: #{tpu_custom_call.1} parent=1 // pred_check_branch
      %18 = sbr.rel (0) target = $region13
    $region12: #{tpu_custom_call.1} parent=1 // pred_region
      _
    $region13: #{tpu_custom_call.1} parent=1 // pred_fallthru
      _
    // Predicated region
    $region14: #{tpu_custom_call.1} parent=1 // pred_check
      _
    $region15: #{tpu_custom_call.1} parent=1 // pred_check_branch
      %20 = sbr.rel (0) target = $region17
    $region16: #{tpu_custom_call.1} parent=1 // pred_region
      %s22 = ssub.s32 4096, 4096
      %23 = vsyncadd [#allocation4], %s22
      %s24 = sshll.u32 [#allocation3], 4
      %s25 = int_to_ptr.vmem [resolvable:$true] %s24
      %30 = dma.hbm_to_vmem [thread:$0]  %s3, 4096, %s25, [#allocation4], 256, 256, 16
    $region17: #{tpu_custom_call.1} parent=1 // pred_fallthru
      _
    // Predicated region
    $region18: #{tpu_custom_call.1} parent=1 // pred_check
      _
    $region19: #{tpu_custom_call.1} parent=1 // pred_check_branch
      %32 = sbr.rel (0) target = $region21
    $region20: #{tpu_custom_call.1} parent=1 // pred_region
      _
    $region21: #{tpu_custom_call.1} parent=1 // pred_fallthru
      _
    // Predicated region
    $region22: #{tpu_custom_call.1} parent=1 // pred_check
      _
    $region23: #{tpu_custom_call.1} parent=1 // pred_check_branch
      %34 = sbr.rel (0) target = $region25
    $region24: #{tpu_custom_call.1} parent=1 // pred_region
      _
    $region25: #{tpu_custom_call.1} parent=1 // pred_fallthru
      _
    // Predicated region
    $region26: #{tpu_custom_call.1} parent=1 // pred_check
      _
    $region27: #{tpu_custom_call.1} parent=1 // pred_check_branch
      %36 = sbr.rel (0) target = $region29
    $region28: #{tpu_custom_call.1} parent=1 // pred_region
      _
    $region29: #{tpu_custom_call.1} parent=1 // pred_fallthru
      _
    // Predicated region
    $region30: #{tpu_custom_call.1} parent=1 // pred_check
      _
    $region31: #{tpu_custom_call.1} parent=1 // pred_check_branch
      %38 = sbr.rel (0) target = $region33
    $region32: #{tpu_custom_call.1} parent=1 // pred_region
      %39 = dma.done [#allocation4], 4096
    $region33: #{tpu_custom_call.1} parent=1 // pred_fallthru
      _
    %v41 = vld [vmem:[#allocation3] sm:$0xff]
    %v42 = vld [vmem:[#allocation3 + $0x8] sm:$0xff]
    %v43 = vld [vmem:[#allocation3 + $0x10] sm:$0xff]
    %v44 = vld [vmem:[#allocation3 + $0x18] sm:$0xff]
    %v45 = vld [vmem:[#allocation3 + $0x20] sm:$0xff]
    %v46 = vld [vmem:[#allocation3 + $0x28] sm:$0xff]
    %v47 = vld [vmem:[#allocation3 + $0x30] sm:$0xff]
    %v48 = vld [vmem:[#allocation3 + $0x38] sm:$0xff]
    %v49 = vld [vmem:[#allocation3 + $0x40] sm:$0xff]
    %v50 = vld [vmem:[#allocation3 + $0x48] sm:$0xff]
    %v51 = vld [vmem:[#allocation3 + $0x50] sm:$0xff]
    %v52 = vld [vmem:[#allocation3 + $0x58] sm:$0xff]
    %v53 = vld [vmem:[#allocation3 + $0x60] sm:$0xff]
    %v54 = vld [vmem:[#allocation3 + $0x68] sm:$0xff]
    %v55 = vld [vmem:[#allocation3 + $0x70] sm:$0xff]
    %v56 = vld [vmem:[#allocation3 + $0x78] sm:$0xff]
    %v57 = vld [vmem:[#allocation3 + $0x80] sm:$0xff]
    %v58 = vld [vmem:[#allocation3 + $0x88] sm:$0xff]
    %v59 = vld [vmem:[#allocation3 + $0x90] sm:$0xff]
    %v60 = vld [vmem:[#allocation3 + $0x98] sm:$0xff]
    %v61 = vld [vmem:[#allocation3 + $0xa0] sm:$0xff]
    %v62 = vld [vmem:[#allocation3 + $0xa8] sm:$0xff]
    %v63 = vld [vmem:[#allocation3 + $0xb0] sm:$0xff]
    %v64 = vld [vmem:[#allocation3 + $0xb8] sm:$0xff]
    %v65 = vld [vmem:[#allocation3 + $0xc0] sm:$0xff]
    %v66 = vld [vmem:[#allocation3 + $0xc8] sm:$0xff]
    %v67 = vld [vmem:[#allocation3 + $0xd0] sm:$0xff]
    %v68 = vld [vmem:[#allocation3 + $0xd8] sm:$0xff]
    %v69 = vld [vmem:[#allocation3 + $0xe0] sm:$0xff]
    %v70 = vld [vmem:[#allocation3 + $0xe8] sm:$0xff]
    %v71 = vld [vmem:[#allocation3 + $0xf0] sm:$0xff]
    %v72 = vld [vmem:[#allocation3 + $0xf8] sm:$0xff]
    %v73 = vld [vmem:[%s4] sm:$0x3]
    %v75 = vlaneseq
    %v76 = vshrl.u32 %v75, 7
    %v77 = vsub.s32 0, %v76
    %v78 = vrot.slane %v73, %v77
    %v79 = vlaneseq
    %v80 = vshrl.u32 %v79, 7
    %v81 = vsub.s32 1, %v80
    %v82 = vrot.slane %v73, %v81
    %v85 = vld [vmem:[%s6] sm:$0x1]
    %v87 = vlaneseq
    %v88 = vshrl.u32 %v87, 7
    %v89 = vsub.s32 0, %v88
    %v90 = vrot.slane %v85, %v89
    %v92 = vld [vmem:[%s0] sm:$0xff]
    %v93 = vld [vmem:[%s0 + $0x8] sm:$0xff]
    %v94 = vld [vmem:[%s0 + $0x10] sm:$0xff]
    %v95 = vld [vmem:[%s0 + $0x18] sm:$0xff]
    %v96 = vld [vmem:[%s0 + $0x20] sm:$0xff]
    %v97 = vld [vmem:[%s0 + $0x28] sm:$0xff]
    %v98 = vld [vmem:[%s0 + $0x30] sm:$0xff]
    %v99 = vld [vmem:[%s0 + $0x38] sm:$0xff]
    %v100 = vld [vmem:[%s0 + $0x40] sm:$0xff]
    %v101 = vld [vmem:[%s0 + $0x48] sm:$0xff]
    %v102 = vld [vmem:[%s0 + $0x50] sm:$0xff]
    %v103 = vld [vmem:[%s0 + $0x58] sm:$0xff]
    %v104 = vld [vmem:[%s0 + $0x60] sm:$0xff]
    %v105 = vld [vmem:[%s0 + $0x68] sm:$0xff]
    %v106 = vld [vmem:[%s0 + $0x70] sm:$0xff]
    %v107 = vld [vmem:[%s0 + $0x78] sm:$0xff]
    %v108 = vpack.c.bf16 %v93, %v92
    %v109 = vpack.c.bf16 %v95, %v94
    %v110 = vpack.c.bf16 %v97, %v96
    %v111 = vpack.c.bf16 %v99, %v98
    %v112 = vpack.c.bf16 %v101, %v100
    %v113 = vpack.c.bf16 %v103, %v102
    %v114 = vpack.c.bf16 %v105, %v104
    %v115 = vpack.c.bf16 %v107, %v106
    %v116 = vld [vmem:[%s1] sm:$0xf]
    %v117 = vld [vmem:[%s2] sm:$0x3]
    %v119 = vlaneseq
    %v120 = vshrl.u32 %v119, 7
    %v121 = vsub.s32 0, %v120
    %v122 = vrot.slane %v117, %v121
    %v123 = vlaneseq
    %v124 = vshrl.u32 %v123, 7
    %v125 = vsub.s32 1, %v124
    %v126 = vrot.slane %v117, %v125
    %v131 = vunpack.c.l.s4 1983009808
    %v132 = vunpack.c.0.s8 %v131
    %v133 = vlaneseq
    %v134 = vshrl.u32 %v133, 7
    %v135 = vsub.s32 %v132, %v134
    %v136 = vrot.slane %v116, %v135
    %v137 = vcombine.high %v136, %v136
    %vm138 = vcmask 31744
    %v140 = vsel %vm138, %v108, 0
    %v143 = vsel %vm138, %v109, 0
    %v146 = vsel %vm138, %v110, 0
    %v149 = vsel %vm138, %v111, 0
    %v152 = vsel %vm138, %v112, 0
    %v155 = vsel %vm138, %v113, 0
    %v158 = vsel %vm138, %v114, 0
    %v161 = vsel %vm138, %v115, 0
    %vm163 = vcmask 1041408
    %v165 = vsel %vm163, %v136, 0
    %v168 = vsel %vm163, %v137, 0
    %170 = vmatprep.subr.bf16.mxu0 %v168
    %171 = vmatpush1.bf16.msra.mxu0 %v165
    %172 = vmatprep.subr.bf16.mxu0 0
    %173 = vmatpush1.bf16.msra.mxu0 0
    %174 = vmatprep.subr.bf16.mxu0 0
    %175 = vmatpush1.bf16.msra.mxu0 0
    %176 = vmatprep.subr.bf16.mxu0 0
    %177 = vmatpush1.bf16.msra.mxu0 0
    %178 = vmatprep.subr.bf16.mxu0 0
    %179 = vmatpush1.bf16.msra.mxu0 0
    %180 = vmatprep.subr.bf16.mxu0 0
    %181 = vmatpush1.bf16.msra.mxu0 0
    %182 = vmatprep.subr.bf16.mxu0 0
    %183 = vmatpush1.bf16.msra.mxu0 0
    %184 = vmatprep.subr.bf16.mxu0 0
    %185 = vmatpush1.bf16.msra.mxu0 0
    %186 = vmatprep.subr.bf16.mxu0 0
    %187 = vmatpush1.bf16.msra.mxu0 0
    %188 = vmatprep.subr.bf16.mxu0 0
    %189 = vmatpush1.bf16.msra.mxu0 0
    %190 = vmatprep.subr.bf16.mxu0 0
    %191 = vmatpush1.bf16.msra.mxu0 0
    %192 = vmatprep.subr.bf16.mxu0 0
    %193 = vmatpush1.bf16.msra.mxu0 0
    %194 = vmatprep.subr.bf16.mxu0 0
    %195 = vmatpush1.bf16.msra.mxu0 0
    %196 = vmatprep.subr.bf16.mxu0 0
    %197 = vmatpush1.bf16.msra.mxu0 0
    %198 = vmatprep.subr.bf16.mxu0 0
    %199 = vmatpush1.bf16.msra.mxu0 0
    %200 = vmatprep.subr.bf16.mxu0 0
    %201 = vmatpush1.bf16.msra.mxu0 0
    %202 = vmatprep.mubr.bf16.mxu0 0
    %203 = vmatmul.mubr.bf16.gmra.mrb[0].mxu0 %v140
    %v204 = vpop.f32.mrb[0].mxu0
    %v205 = vadd.f32 %v122, %v204
    %v206 = vpop.f32.mrb[0].mxu0
    %v207 = vadd.f32 %v126, %v206
    %v208 = vpop.f32.mrb[0].mxu0
    %v209 = vadd.f32 %v122, %v208
    %v210 = vpop.f32.mrb[0].mxu0
    %v211 = vadd.f32 %v126, %v210
    %212 = vmatprep.mubr.bf16.mxu0 0
    %213 = vmatmul.mubr.bf16.gmra.mrb[0].mxu0 %v143
    %v214 = vpop.f32.mrb[0].mxu0
    %v215 = vadd.f32 %v122, %v214
    %v216 = vpop.f32.mrb[0].mxu0
    %v217 = vadd.f32 %v126, %v216
    %v218 = vpop.f32.mrb[0].mxu0
    %v219 = vadd.f32 %v122, %v218
    %v220 = vpop.f32.mrb[0].mxu0
    %v221 = vadd.f32 %v126, %v220
    %222 = vmatprep.mubr.bf16.mxu0 0
    %223 = vmatmul.mubr.bf16.gmra.mrb[0].mxu0 %v146
    %v224 = vpop.f32.mrb[0].mxu0
    %v225 = vadd.f32 %v122, %v224
    %v226 = vpop.f32.mrb[0].mxu0
    %v227 = vadd.f32 %v126, %v226
    %v228 = vpop.f32.mrb[0].mxu0
    %v229 = vadd.f32 %v122, %v228
    %v230 = vpop.f32.mrb[0].mxu0
    %v231 = vadd.f32 %v126, %v230
    %232 = vmatprep.mubr.bf16.mxu0 0
    %233 = vmatmul.mubr.bf16.gmra.mrb[0].mxu0 %v149
    %v234 = vpop.f32.mrb[0].mxu0
    %v235 = vadd.f32 %v122, %v234
    %v236 = vpop.f32.mrb[0].mxu0
    %v237 = vadd.f32 %v126, %v236
    %v238 = vpop.f32.mrb[0].mxu0
    %v239 = vadd.f32 %v122, %v238
    %v240 = vpop.f32.mrb[0].mxu0
    %v241 = vadd.f32 %v126, %v240
    %242 = vmatprep.mubr.bf16.mxu0 0
    %243 = vmatmul.mubr.bf16.gmra.mrb[0].mxu0 %v152
    %v244 = vpop.f32.mrb[0].mxu0
    %v245 = vadd.f32 %v122, %v244
    %v246 = vpop.f32.mrb[0].mxu0
    %v247 = vadd.f32 %v126, %v246
    %v248 = vpop.f32.mrb[0].mxu0
    %v249 = vadd.f32 %v122, %v248
    %v250 = vpop.f32.mrb[0].mxu0
    %v251 = vadd.f32 %v126, %v250
    %252 = vmatprep.mubr.bf16.mxu0 0
    %253 = vmatmul.mubr.bf16.gmra.mrb[0].mxu0 %v155
    %v254 = vpop.f32.mrb[0].mxu0
    %v255 = vadd.f32 %v122, %v254
    %v256 = vpop.f32.mrb[0].mxu0
    %v257 = vadd.f32 %v126, %v256
    %v258 = vpop.f32.mrb[0].mxu0
    %v259 = vadd.f32 %v122, %v258
    %v260 = vpop.f32.mrb[0].mxu0
    %v261 = vadd.f32 %v126, %v260
    %262 = vmatprep.mubr.bf16.mxu0 0
    %263 = vmatmul.mubr.bf16.gmra.mrb[0].mxu0 %v158
    %v264 = vpop.f32.mrb[0].mxu0
    %v265 = vadd.f32 %v122, %v264
    %v266 = vpop.f32.mrb[0].mxu0
    %v267 = vadd.f32 %v126, %v266
    %v268 = vpop.f32.mrb[0].mxu0
    %v269 = vadd.f32 %v122, %v268
    %v270 = vpop.f32.mrb[0].mxu0
    %v271 = vadd.f32 %v126, %v270
    %272 = vmatprep.mubr.bf16.mxu0 0
    %273 = vmatmul.mubr.bf16.gmra.mrb[0].mxu0 %v161
    %v274 = vpop.f32.mrb[0].mxu0
    %v275 = vadd.f32 %v122, %v274
    %v276 = vpop.f32.mrb[0].mxu0
    %v277 = vadd.f32 %v126, %v276
    %v278 = vpop.f32.mrb[0].mxu0
    %v279 = vadd.f32 %v122, %v278
    %v280 = vpop.f32.mrb[0].mxu0
    %v281 = vadd.f32 %v126, %v280
    %282 = vdwg.mxu0
    %283 = vst [vmem:[#allocation2] sm:$0xff] %v205
    %284 = vst [vmem:[#allocation2 + $0x8] sm:$0xff] %v207
    %285 = vst [vmem:[#allocation2 + $0x10] sm:$0xff] %v209
    %286 = vst [vmem:[#allocation2 + $0x18] sm:$0xff] %v211
    %287 = vst [vmem:[#allocation2 + $0x20] sm:$0xff] %v215
    %288 = vst [vmem:[#allocation2 + $0x28] sm:$0xff] %v217
    %289 = vst [vmem:[#allocation2 + $0x30] sm:$0xff] %v219
    %290 = vst [vmem:[#allocation2 + $0x38] sm:$0xff] %v221
    %291 = vst [vmem:[#allocation2 + $0x40] sm:$0xff] %v225
    %292 = vst [vmem:[#allocation2 + $0x48] sm:$0xff] %v227
    %293 = vst [vmem:[#allocation2 + $0x50] sm:$0xff] %v229
    %294 = vst [vmem:[#allocation2 + $0x58] sm:$0xff] %v231
    %295 = vst [vmem:[#allocation2 + $0x60] sm:$0xff] %v235
    %296 = vst [vmem:[#allocation2 + $0x68] sm:$0xff] %v237
    %297 = vst [vmem:[#allocation2 + $0x70] sm:$0xff] %v239
    %298 = vst [vmem:[#allocation2 + $0x78] sm:$0xff] %v241
    %299 = vst [vmem:[#allocation2 + $0x80] sm:$0xff] %v245
    %300 = vst [vmem:[#allocation2 + $0x88] sm:$0xff] %v247
    %301 = vst [vmem:[#allocation2 + $0x90] sm:$0xff] %v249
    %302 = vst [vmem:[#allocation2 + $0x98] sm:$0xff] %v251
    %303 = vst [vmem:[#allocation2 + $0xa0] sm:$0xff] %v255
    %304 = vst [vmem:[#allocation2 + $0xa8] sm:$0xff] %v257
    %305 = vst [vmem:[#allocation2 + $0xb0] sm:$0xff] %v259
    %306 = vst [vmem:[#allocation2 + $0xb8] sm:$0xff] %v261
    %307 = vst [vmem:[#allocation2 + $0xc0] sm:$0xff] %v265
    %308 = vst [vmem:[#allocation2 + $0xc8] sm:$0xff] %v267
    %309 = vst [vmem:[#allocation2 + $0xd0] sm:$0xff] %v269
    %310 = vst [vmem:[#allocation2 + $0xd8] sm:$0xff] %v271
    %311 = vst [vmem:[#allocation2 + $0xe0] sm:$0xff] %v275
    %312 = vst [vmem:[#allocation2 + $0xe8] sm:$0xff] %v277
    %313 = vst [vmem:[#allocation2 + $0xf0] sm:$0xff] %v279
    %314 = vst [vmem:[#allocation2 + $0xf8] sm:$0xff] %v281
    %v315 = vld [vmem:[#allocation2] ss:$8 sm:$0x3]
    %s316 = scalar_lea.vmem [#allocation2], 16
    %v317 = vld [vmem:[%s316] ss:$8 sm:$0x3]
    %s318 = scalar_lea.vmem [#allocation2], 32
    %v319 = vld [vmem:[%s318] ss:$8 sm:$0x3]
    %s320 = scalar_lea.vmem [#allocation2], 48
    %v321 = vld [vmem:[%s320] ss:$8 sm:$0x3]
    %s322 = scalar_lea.vmem [#allocation2], 64
    %v323 = vld [vmem:[%s322] ss:$8 sm:$0x3]
    %s324 = scalar_lea.vmem [#allocation2], 80
    %v325 = vld [vmem:[%s324] ss:$8 sm:$0x3]
    %s326 = scalar_lea.vmem [#allocation2], 96
    %v327 = vld [vmem:[%s326] ss:$8 sm:$0x3]
    %s328 = scalar_lea.vmem [#allocation2], 112
    %v329 = vld [vmem:[%s328] ss:$8 sm:$0x3]
    %s330 = scalar_lea.vmem [#allocation2], 128
    %v331 = vld [vmem:[%s330] ss:$8 sm:$0x3]
    %s332 = scalar_lea.vmem [#allocation2], 144
    %v333 = vld [vmem:[%s332] ss:$8 sm:$0x3]
    %s334 = scalar_lea.vmem [#allocation2], 160
    %v335 = vld [vmem:[%s334] ss:$8 sm:$0x3]
    %s336 = scalar_lea.vmem [#allocation2], 176
    %v337 = vld [vmem:[%s336] ss:$8 sm:$0x3]
    %s338 = scalar_lea.vmem [#allocation2], 192
    %v339 = vld [vmem:[%s338] ss:$8 sm:$0x3]
    %s340 = scalar_lea.vmem [#allocation2], 208
    %v341 = vld [vmem:[%s340] ss:$8 sm:$0x3]
    %s342 = scalar_lea.vmem [#allocation2], 224
    %v343 = vld [vmem:[%s342] ss:$8 sm:$0x3]
    %s344 = scalar_lea.vmem [#allocation2], 240
    %v345 = vld [vmem:[%s344] ss:$8 sm:$0x3]
    %v346 = vxor.u32 %v315, 2147483648
    %v347 = vxor.u32 %v317, 2147483648
    %v348 = vxor.u32 %v319, 2147483648
    %v349 = vxor.u32 %v321, 2147483648
    %v350 = vxor.u32 %v323, 2147483648
    %v351 = vxor.u32 %v325, 2147483648
    %v352 = vxor.u32 %v327, 2147483648
    %v353 = vxor.u32 %v329, 2147483648
    %v354 = vxor.u32 %v331, 2147483648
    %v355 = vxor.u32 %v333, 2147483648
    %v356 = vxor.u32 %v335, 2147483648
    %v357 = vxor.u32 %v337, 2147483648
    %v358 = vxor.u32 %v339, 2147483648
    %v359 = vxor.u32 %v341, 2147483648
    %v360 = vxor.u32 %v343, 2147483648
    %v361 = vxor.u32 %v345, 2147483648
    %v362 = vmul.f32 %v346, 1.442695
    %v363 = vpow.pop %v362
    %v364 = vmul.f32 %v347, 1.442695
    %v365 = vpow.pop %v364
    %v366 = vmul.f32 %v348, 1.442695
    %v367 = vpow.pop %v366
    %v368 = vmul.f32 %v349, 1.442695
    %v369 = vpow.pop %v368
    %v370 = vmul.f32 %v350, 1.442695
    %v371 = vpow.pop %v370
    %v372 = vmul.f32 %v351, 1.442695
    %v373 = vpow.pop %v372
    %v374 = vmul.f32 %v352, 1.442695
    %v375 = vpow.pop %v374
    %v376 = vmul.f32 %v353, 1.442695
    %v377 = vpow.pop %v376
    %v378 = vmul.f32 %v354, 1.442695
    %v379 = vpow.pop %v378
    %v380 = vmul.f32 %v355, 1.442695
    %v381 = vpow.pop %v380
    %v382 = vmul.f32 %v356, 1.442695
    %v383 = vpow.pop %v382
    %v384 = vmul.f32 %v357, 1.442695
    %v385 = vpow.pop %v384
    %v386 = vmul.f32 %v358, 1.442695
    %v387 = vpow.pop %v386
    %v388 = vmul.f32 %v359, 1.442695
    %v389 = vpow.pop %v388
    %v390 = vmul.f32 %v360, 1.442695
    %v391 = vpow.pop %v390
    %v392 = vmul.f32 %v361, 1.442695
    %v393 = vpow.pop %v392
    %v394 = vadd.f32 %v363, 1.0
    %v395 = vadd.f32 %v365, 1.0
    %v396 = vadd.f32 %v367, 1.0
    %v397 = vadd.f32 %v369, 1.0
    %v398 = vadd.f32 %v371, 1.0
    %v399 = vadd.f32 %v373, 1.0
    %v400 = vadd.f32 %v375, 1.0
    %v401 = vadd.f32 %v377, 1.0
    %v402 = vadd.f32 %v379, 1.0
    %v403 = vadd.f32 %v381, 1.0
    %v404 = vadd.f32 %v383, 1.0
    %v405 = vadd.f32 %v385, 1.0
    %v406 = vadd.f32 %v387, 1.0
    %v407 = vadd.f32 %v389, 1.0
    %v408 = vadd.f32 %v391, 1.0
    %v409 = vadd.f32 %v393, 1.0
    %v410 = vrcp.pop %v394
    %v411 = vmul.f32 1.0, %v410
    %v412 = vrcp.pop %v395
    %v413 = vmul.f32 1.0, %v412
    %v414 = vrcp.pop %v396
    %v415 = vmul.f32 1.0, %v414
    %v416 = vrcp.pop %v397
    %v417 = vmul.f32 1.0, %v416
    %v418 = vrcp.pop %v398
    %v419 = vmul.f32 1.0, %v418
    %v420 = vrcp.pop %v399
    %v421 = vmul.f32 1.0, %v420
    %v422 = vrcp.pop %v400
    %v423 = vmul.f32 1.0, %v422
    %v424 = vrcp.pop %v401
    %v425 = vmul.f32 1.0, %v424
    %v426 = vrcp.pop %v402
    %v427 = vmul.f32 1.0, %v426
    %v428 = vrcp.pop %v403
    %v429 = vmul.f32 1.0, %v428
    %v430 = vrcp.pop %v404
    %v431 = vmul.f32 1.0, %v430
    %v432 = vrcp.pop %v405
    %v433 = vmul.f32 1.0, %v432
    %v434 = vrcp.pop %v406
    %v435 = vmul.f32 1.0, %v434
    %v436 = vrcp.pop %v407
    %v437 = vmul.f32 1.0, %v436
    %v438 = vrcp.pop %v408
    %v439 = vmul.f32 1.0, %v438
    %v440 = vrcp.pop %v409
    %v441 = vmul.f32 1.0, %v440
    %458 = vrot.lane.b32.xlu0 %v315, 64
    %v459 = vpop.permute.xlu0 %458
    %460 = vrot.lane.b32.xlu0 %v317, 64
    %v461 = vpop.permute.xlu0 %460
    %462 = vrot.lane.b32.xlu0 %v319, 64
    %v463 = vpop.permute.xlu0 %462
    %464 = vrot.lane.b32.xlu0 %v321, 64
    %v465 = vpop.permute.xlu0 %464
    %466 = vrot.lane.b32.xlu0 %v323, 64
    %v467 = vpop.permute.xlu0 %466
    %468 = vrot.lane.b32.xlu0 %v325, 64
    %v469 = vpop.permute.xlu0 %468
    %470 = vrot.lane.b32.xlu0 %v327, 64
    %v471 = vpop.permute.xlu0 %470
    %472 = vrot.lane.b32.xlu0 %v329, 64
    %v473 = vpop.permute.xlu0 %472
    %474 = vrot.lane.b32.xlu0 %v331, 64
    %v475 = vpop.permute.xlu0 %474
    %476 = vrot.lane.b32.xlu0 %v333, 64
    %v477 = vpop.permute.xlu0 %476
    %478 = vrot.lane.b32.xlu0 %v335, 64
    %v479 = vpop.permute.xlu0 %478
    %480 = vrot.lane.b32.xlu0 %v337, 64
    %v481 = vpop.permute.xlu0 %480
    %482 = vrot.lane.b32.xlu0 %v339, 64
    %v483 = vpop.permute.xlu0 %482
    %484 = vrot.lane.b32.xlu0 %v341, 64
    %v485 = vpop.permute.xlu0 %484
    %486 = vrot.lane.b32.xlu0 %v343, 64
    %v487 = vpop.permute.xlu0 %486
    %488 = vrot.lane.b32.xlu0 %v345, 64
    %v489 = vpop.permute.xlu0 %488
    %v490 = vrot.slane %v459, 1
    %v491 = vrot.slane %v461, 1
    %v492 = vrot.slane %v463, 1
    %v493 = vrot.slane %v465, 1
    %v494 = vrot.slane %v467, 1
    %v495 = vrot.slane %v469, 1
    %v496 = vrot.slane %v471, 1
    %v497 = vrot.slane %v473, 1
    %v498 = vrot.slane %v475, 1
    %v499 = vrot.slane %v477, 1
    %v500 = vrot.slane %v479, 1
    %v501 = vrot.slane %v481, 1
    %v502 = vrot.slane %v483, 1
    %v503 = vrot.slane %v485, 1
    %v504 = vrot.slane %v487, 1
    %v505 = vrot.slane %v489, 1
    %v522 = vtanh.pop %v490
    %v523 = vtanh.pop %v491
    %v524 = vtanh.pop %v492
    %v525 = vtanh.pop %v493
    %v526 = vtanh.pop %v494
    %v527 = vtanh.pop %v495
    %v528 = vtanh.pop %v496
    %v529 = vtanh.pop %v497
    %v530 = vtanh.pop %v498
    %v531 = vtanh.pop %v499
    %v532 = vtanh.pop %v500
    %v533 = vtanh.pop %v501
    %v534 = vtanh.pop %v502
    %v535 = vtanh.pop %v503
    %v536 = vtanh.pop %v504
    %v537 = vtanh.pop %v505
    %v538 = vmul.f32 %v411, 0.0
    %v539 = vmul.f32 %v413, 0.0
    %v540 = vmul.f32 %v415, 0.0
    %v541 = vmul.f32 %v417, 0.0
    %v542 = vmul.f32 %v419, 0.0
    %v543 = vmul.f32 %v421, 0.0
    %v544 = vmul.f32 %v423, 0.0
    %v545 = vmul.f32 %v425, 0.0
    %v546 = vmul.f32 %v427, 0.0
    %v547 = vmul.f32 %v429, 0.0
    %v548 = vmul.f32 %v431, 0.0
    %v549 = vmul.f32 %v433, 0.0
    %v550 = vmul.f32 %v435, 0.0
    %v551 = vmul.f32 %v437, 0.0
    %v552 = vmul.f32 %v439, 0.0
    %v553 = vmul.f32 %v441, 0.0
    %v554 = vmul.f32 %v411, %v522
    %v555 = vmul.f32 %v413, %v523
    %v556 = vmul.f32 %v415, %v524
    %v557 = vmul.f32 %v417, %v525
    %v558 = vmul.f32 %v419, %v526
    %v559 = vmul.f32 %v421, %v527
    %v560 = vmul.f32 %v423, %v528
    %v561 = vmul.f32 %v425, %v529
    %v562 = vmul.f32 %v427, %v530
    %v563 = vmul.f32 %v429, %v531
    %v564 = vmul.f32 %v431, %v532
    %v565 = vmul.f32 %v433, %v533
    %v566 = vmul.f32 %v435, %v534
    %v567 = vmul.f32 %v437, %v535
    %v568 = vmul.f32 %v439, %v536
    %v569 = vmul.f32 %v441, %v537
    %586 = vrot.lane.b32.xlu0 %v554, 64
    %v587 = vpop.permute.xlu0 %586
    %588 = vrot.lane.b32.xlu0 %v555, 64
    %v589 = vpop.permute.xlu0 %588
    %590 = vrot.lane.b32.xlu0 %v556, 64
    %v591 = vpop.permute.xlu0 %590
    %592 = vrot.lane.b32.xlu0 %v557, 64
    %v593 = vpop.permute.xlu0 %592
    %594 = vrot.lane.b32.xlu0 %v558, 64
    %v595 = vpop.permute.xlu0 %594
    %596 = vrot.lane.b32.xlu0 %v559, 64
    %v597 = vpop.permute.xlu0 %596
    %598 = vrot.lane.b32.xlu0 %v560, 64
    %v599 = vpop.permute.xlu0 %598
    %600 = vrot.lane.b32.xlu0 %v561, 64
    %v601 = vpop.permute.xlu0 %600
    %602 = vrot.lane.b32.xlu0 %v562, 64
    %v603 = vpop.permute.xlu0 %602
    %604 = vrot.lane.b32.xlu0 %v563, 64
    %v605 = vpop.permute.xlu0 %604
    %606 = vrot.lane.b32.xlu0 %v564, 64
    %v607 = vpop.permute.xlu0 %606
    %608 = vrot.lane.b32.xlu0 %v565, 64
    %v609 = vpop.permute.xlu0 %608
    %610 = vrot.lane.b32.xlu0 %v566, 64
    %v611 = vpop.permute.xlu0 %610
    %612 = vrot.lane.b32.xlu0 %v567, 64
    %v613 = vpop.permute.xlu0 %612
    %614 = vrot.lane.b32.xlu0 %v568, 64
    %v615 = vpop.permute.xlu0 %614
    %616 = vrot.lane.b32.xlu0 %v569, 64
    %v617 = vpop.permute.xlu0 %616
    %v634 = vadd.f32 %v538, %v587
    %v635 = vadd.f32 %v539, %v589
    %v636 = vadd.f32 %v540, %v591
    %v637 = vadd.f32 %v541, %v593
    %v638 = vadd.f32 %v542, %v595
    %v639 = vadd.f32 %v543, %v597
    %v640 = vadd.f32 %v544, %v599
    %v641 = vadd.f32 %v545, %v601
    %v642 = vadd.f32 %v546, %v603
    %v643 = vadd.f32 %v547, %v605
    %v644 = vadd.f32 %v548, %v607
    %v645 = vadd.f32 %v549, %v609
    %v646 = vadd.f32 %v550, %v611
    %v647 = vadd.f32 %v551, %v613
    %v648 = vadd.f32 %v552, %v615
    %v649 = vadd.f32 %v553, %v617
    %v650 = vtanh.pop %v634
    %v651 = vtanh.pop %v635
    %v652 = vtanh.pop %v636
    %v653 = vtanh.pop %v637
    %v654 = vtanh.pop %v638
    %v655 = vtanh.pop %v639
    %v656 = vtanh.pop %v640
    %v657 = vtanh.pop %v641
    %v658 = vtanh.pop %v642
    %v659 = vtanh.pop %v643
    %v660 = vtanh.pop %v644
    %v661 = vtanh.pop %v645
    %v662 = vtanh.pop %v646
    %v663 = vtanh.pop %v647
    %v664 = vtanh.pop %v648
    %v665 = vtanh.pop %v649
    %v682 = vrot.slane %v411, 1
    %v683 = vrot.slane %v413, 1
    %v684 = vrot.slane %v415, 1
    %v685 = vrot.slane %v417, 1
    %v686 = vrot.slane %v419, 1
    %v687 = vrot.slane %v421, 1
    %v688 = vrot.slane %v423, 1
    %v689 = vrot.slane %v425, 1
    %v690 = vrot.slane %v427, 1
    %v691 = vrot.slane %v429, 1
    %v692 = vrot.slane %v431, 1
    %v693 = vrot.slane %v433, 1
    %v694 = vrot.slane %v435, 1
    %v695 = vrot.slane %v437, 1
    %v696 = vrot.slane %v439, 1
    %v697 = vrot.slane %v441, 1
    %730 = vrot.lane.b32.xlu0 %v650, 64
    %v731 = vpop.permute.xlu0 %730
    %732 = vrot.lane.b32.xlu0 %v651, 64
    %v733 = vpop.permute.xlu0 %732
    %734 = vrot.lane.b32.xlu0 %v652, 64
    %v735 = vpop.permute.xlu0 %734
    %736 = vrot.lane.b32.xlu0 %v653, 64
    %v737 = vpop.permute.xlu0 %736
    %738 = vrot.lane.b32.xlu0 %v654, 64
    %v739 = vpop.permute.xlu0 %738
    %740 = vrot.lane.b32.xlu0 %v655, 64
    %v741 = vpop.permute.xlu0 %740
    %742 = vrot.lane.b32.xlu0 %v656, 64
    %v743 = vpop.permute.xlu0 %742
    %744 = vrot.lane.b32.xlu0 %v657, 64
    %v745 = vpop.permute.xlu0 %744
    %746 = vrot.lane.b32.xlu0 %v658, 64
    %v747 = vpop.permute.xlu0 %746
    %748 = vrot.lane.b32.xlu0 %v659, 64
    %v749 = vpop.permute.xlu0 %748
    %750 = vrot.lane.b32.xlu0 %v660, 64
    %v751 = vpop.permute.xlu0 %750
    %752 = vrot.lane.b32.xlu0 %v661, 64
    %v753 = vpop.permute.xlu0 %752
    %754 = vrot.lane.b32.xlu0 %v662, 64
    %v755 = vpop.permute.xlu0 %754
    %756 = vrot.lane.b32.xlu0 %v663, 64
    %v757 = vpop.permute.xlu0 %756
    %758 = vrot.lane.b32.xlu0 %v664, 64
    %v759 = vpop.permute.xlu0 %758
    %760 = vrot.lane.b32.xlu0 %v665, 64
    %v761 = vpop.permute.xlu0 %760
    %v778 = vmul.f32 %v682, %v731
    %v779 = vmul.f32 %v683, %v733
    %v780 = vmul.f32 %v684, %v735
    %v781 = vmul.f32 %v685, %v737
    %v782 = vmul.f32 %v686, %v739
    %v783 = vmul.f32 %v687, %v741
    %v784 = vmul.f32 %v688, %v743
    %v785 = vmul.f32 %v689, %v745
    %v786 = vmul.f32 %v690, %v747
    %v787 = vmul.f32 %v691, %v749
    %v788 = vmul.f32 %v692, %v751
    %v789 = vmul.f32 %v693, %v753
    %v790 = vmul.f32 %v694, %v755
    %v791 = vmul.f32 %v695, %v757
    %v792 = vmul.f32 %v696, %v759
    %v793 = vmul.f32 %v697, %v761
    %v810 = vcombine.low %v778, %v779
    %v811 = vcombine.low %v780, %v781
    %v812 = vcombine.low %v782, %v783
    %v813 = vcombine.low %v784, %v785
    %v815 = vunpack.c.l.s4 1966171168
    %v816 = vunpack.c.0.s8 %v815
    %v817 = vlaneseq
    %v818 = vshrl.u32 %v817, 7
    %v819 = vsub.s32 %v816, %v818
    %v820 = vrot.slane %v810, %v819
    %v822 = vunpack.c.l.s4 1966171168
    %v823 = vunpack.c.0.s8 %v822
    %v824 = vlaneseq
    %v825 = vshrl.u32 %v824, 7
    %v826 = vsub.s32 %v823, %v825
    %v827 = vrot.slane %v811, %v826
    %v829 = vunpack.c.l.s4 1966171168
    %v830 = vunpack.c.0.s8 %v829
    %v831 = vlaneseq
    %v832 = vshrl.u32 %v831, 7
    %v833 = vsub.s32 %v830, %v832
    %v834 = vrot.slane %v812, %v833
    %v836 = vunpack.c.l.s4 1966171168
    %v837 = vunpack.c.0.s8 %v836
    %v838 = vlaneseq
    %v839 = vshrl.u32 %v838, 7
    %v840 = vsub.s32 %v837, %v839
    %v841 = vrot.slane %v813, %v840
    %v842 = vcombine.low %v820, %v827
    %v843 = vcombine.low %v834, %v841
    %v845 = vunpack.c.l.s4 1966171168
    %v846 = vunpack.c.0.s8 %v845
    %v847 = vlaneseq
    %v848 = vshrl.u32 %v847, 7
    %v849 = vsub.s32 %v846, %v848
    %v850 = vrot.slane %v842, %v849
    %v852 = vunpack.c.l.s4 1966171168
    %v853 = vunpack.c.0.s8 %v852
    %v854 = vlaneseq
    %v855 = vshrl.u32 %v854, 7
    %v856 = vsub.s32 %v853, %v855
    %v857 = vrot.slane %v843, %v856
    %v858 = vcombine.low %v850, %v857
    %v859 = vcombine.low %v786, %v787
    %v860 = vcombine.low %v788, %v789
    %v861 = vcombine.low %v790, %v791
    %v862 = vcombine.low %v792, %v793
    %v864 = vunpack.c.l.s4 1966171168
    %v865 = vunpack.c.0.s8 %v864
    %v866 = vlaneseq
    %v867 = vshrl.u32 %v866, 7
    %v868 = vsub.s32 %v865, %v867
    %v869 = vrot.slane %v859, %v868
    %v871 = vunpack.c.l.s4 1966171168
    %v872 = vunpack.c.0.s8 %v871
    %v873 = vlaneseq
    %v874 = vshrl.u32 %v873, 7
    %v875 = vsub.s32 %v872, %v874
    %v876 = vrot.slane %v860, %v875
    %v878 = vunpack.c.l.s4 1966171168
    %v879 = vunpack.c.0.s8 %v878
    %v880 = vlaneseq
    %v881 = vshrl.u32 %v880, 7
    %v882 = vsub.s32 %v879, %v881
    %v883 = vrot.slane %v861, %v882
    %v885 = vunpack.c.l.s4 1966171168
    %v886 = vunpack.c.0.s8 %v885
    %v887 = vlaneseq
    %v888 = vshrl.u32 %v887, 7
    %v889 = vsub.s32 %v886, %v888
    %v890 = vrot.slane %v862, %v889
    %v891 = vcombine.low %v869, %v876
    %v892 = vcombine.low %v883, %v890
    %v894 = vunpack.c.l.s4 1966171168
    %v895 = vunpack.c.0.s8 %v894
    %v896 = vlaneseq
    %v897 = vshrl.u32 %v896, 7
    %v898 = vsub.s32 %v895, %v897
    %v899 = vrot.slane %v891, %v898
    %v901 = vunpack.c.l.s4 1966171168
    %v902 = vunpack.c.0.s8 %v901
    %v903 = vlaneseq
    %v904 = vshrl.u32 %v903, 7
    %v905 = vsub.s32 %v902, %v904
    %v906 = vrot.slane %v892, %v905
    %v907 = vcombine.low %v899, %v906
    %vm910 = vcmask 523264
    %v911 = vsel %vm910, %v858, 0.0
    %v912 = vsel %vm910, %v907, 0.0
    %v913 = vpack.c.bf16 %v912, %v911
    %v946 = vunpack.c.l.b16 %v41
    %v947 = vunpack.c.h.b16 %v41
    %v948 = vunpack.c.l.b16 %v42
    %v949 = vunpack.c.h.b16 %v42
    %v950 = vunpack.c.l.b16 %v43
    %v951 = vunpack.c.h.b16 %v43
    %v952 = vunpack.c.l.b16 %v44
    %v953 = vunpack.c.h.b16 %v44
    %v954 = vunpack.c.l.b16 %v45
    %v955 = vunpack.c.h.b16 %v45
    %v956 = vunpack.c.l.b16 %v46
    %v957 = vunpack.c.h.b16 %v46
    %v958 = vunpack.c.l.b16 %v47
    %v959 = vunpack.c.h.b16 %v47
    %v960 = vunpack.c.l.b16 %v48
    %v961 = vunpack.c.h.b16 %v48
    %v962 = vunpack.c.l.b16 %v49
    %v963 = vunpack.c.h.b16 %v49
    %v964 = vunpack.c.l.b16 %v50
    %v965 = vunpack.c.h.b16 %v50
    %v966 = vunpack.c.l.b16 %v51
    %v967 = vunpack.c.h.b16 %v51
    %v968 = vunpack.c.l.b16 %v52
    %v969 = vunpack.c.h.b16 %v52
    %v970 = vunpack.c.l.b16 %v53
    %v971 = vunpack.c.h.b16 %v53
    %v972 = vunpack.c.l.b16 %v54
    %v973 = vunpack.c.h.b16 %v54
    %v974 = vunpack.c.l.b16 %v55
    %v975 = vunpack.c.h.b16 %v55
    %v976 = vunpack.c.l.b16 %v56
    %v977 = vunpack.c.h.b16 %v56
    %v978 = vunpack.c.l.b16 %v57
    %v979 = vunpack.c.h.b16 %v57
    %v980 = vunpack.c.l.b16 %v58
    %v981 = vunpack.c.h.b16 %v58
    %v982 = vunpack.c.l.b16 %v59
    %v983 = vunpack.c.h.b16 %v59
    %v984 = vunpack.c.l.b16 %v60
    %v985 = vunpack.c.h.b16 %v60
    %v986 = vunpack.c.l.b16 %v61
    %v987 = vunpack.c.h.b16 %v61
    %v988 = vunpack.c.l.b16 %v62
    %v989 = vunpack.c.h.b16 %v62
    %v990 = vunpack.c.l.b16 %v63
    %v991 = vunpack.c.h.b16 %v63
    %v992 = vunpack.c.l.b16 %v64
    %v993 = vunpack.c.h.b16 %v64
    %v994 = vunpack.c.l.b16 %v65
    %v995 = vunpack.c.h.b16 %v65
    %v996 = vunpack.c.l.b16 %v66
    %v997 = vunpack.c.h.b16 %v66
    %v998 = vunpack.c.l.b16 %v67
    %v999 = vunpack.c.h.b16 %v67
    %v1000 = vunpack.c.l.b16 %v68
    %v1001 = vunpack.c.h.b16 %v68
    %v1002 = vunpack.c.l.b16 %v69
    %v1003 = vunpack.c.h.b16 %v69
    %v1004 = vunpack.c.l.b16 %v70
    %v1005 = vunpack.c.h.b16 %v70
    %v1006 = vunpack.c.l.b16 %v71
    %v1007 = vunpack.c.h.b16 %v71
    %v1008 = vunpack.c.l.b16 %v72
    %v1009 = vunpack.c.h.b16 %v72
    %v1010 = vpack.c.b16 %v950, %v946
    %v1011 = vpack.c.b16 %v951, %v947
    %v1012 = vpack.c.b16 %v952, %v948
    %v1013 = vpack.c.b16 %v953, %v949
    %v1014 = vpack.c.b16 %v958, %v954
    %v1015 = vpack.c.b16 %v959, %v955
    %v1016 = vpack.c.b16 %v960, %v956
    %v1017 = vpack.c.b16 %v961, %v957
    %v1018 = vpack.c.b16 %v966, %v962
    %v1019 = vpack.c.b16 %v967, %v963
    %v1020 = vpack.c.b16 %v968, %v964
    %v1021 = vpack.c.b16 %v969, %v965
    %v1022 = vpack.c.b16 %v974, %v970
    %v1023 = vpack.c.b16 %v975, %v971
    %v1024 = vpack.c.b16 %v976, %v972
    %v1025 = vpack.c.b16 %v977, %v973
    %v1026 = vpack.c.b16 %v982, %v978
    %v1027 = vpack.c.b16 %v983, %v979
    %v1028 = vpack.c.b16 %v984, %v980
    %v1029 = vpack.c.b16 %v985, %v981
    %v1030 = vpack.c.b16 %v990, %v986
    %v1031 = vpack.c.b16 %v991, %v987
    %v1032 = vpack.c.b16 %v992, %v988
    %v1033 = vpack.c.b16 %v993, %v989
    %v1034 = vpack.c.b16 %v998, %v994
    %v1035 = vpack.c.b16 %v999, %v995
    %v1036 = vpack.c.b16 %v1000, %v996
    %v1037 = vpack.c.b16 %v1001, %v997
    %v1038 = vpack.c.b16 %v1006, %v1002
    %v1039 = vpack.c.b16 %v1007, %v1003
    %v1040 = vpack.c.b16 %v1008, %v1004
    %v1041 = vpack.c.b16 %v1009, %v1005
    %1074 = vmatprep.subr.bf16.mxu0 %v1011
    %1075 = vmatpush1.bf16.msra.mxu0 %v1010
    %1076 = vmatprep.subr.bf16.mxu0 %v1015
    %1077 = vmatpush1.bf16.msra.mxu0 %v1014
    %1078 = vmatprep.subr.bf16.mxu0 %v1019
    %1079 = vmatpush1.bf16.msra.mxu0 %v1018
    %1080 = vmatprep.subr.bf16.mxu0 %v1023
    %1081 = vmatpush1.bf16.msra.mxu0 %v1022
    %1082 = vmatprep.subr.bf16.mxu0 %v1027
    %1083 = vmatpush1.bf16.msra.mxu0 %v1026
    %1084 = vmatprep.subr.bf16.mxu0 %v1031
    %1085 = vmatpush1.bf16.msra.mxu0 %v1030
    %1086 = vmatprep.subr.bf16.mxu0 %v1035
    %1087 = vmatpush1.bf16.msra.mxu0 %v1034
    %1088 = vmatprep.subr.bf16.mxu0 %v1039
    %1089 = vmatpush1.bf16.msra.mxu0 %v1038
    %1090 = vmatprep.subr.bf16.mxu0 0
    %1091 = vmatpush1.bf16.msra.mxu0 0
    %1092 = vmatprep.subr.bf16.mxu0 0
    %1093 = vmatpush1.bf16.msra.mxu0 0
    %1094 = vmatprep.subr.bf16.mxu0 0
    %1095 = vmatpush1.bf16.msra.mxu0 0
    %1096 = vmatprep.subr.bf16.mxu0 0
    %1097 = vmatpush1.bf16.msra.mxu0 0
    %1098 = vmatprep.subr.bf16.mxu0 0
    %1099 = vmatpush1.bf16.msra.mxu0 0
    %1100 = vmatprep.subr.bf16.mxu0 0
    %1101 = vmatpush1.bf16.msra.mxu0 0
    %1102 = vmatprep.subr.bf16.mxu0 0
    %1103 = vmatpush1.bf16.msra.mxu0 0
    %1104 = vmatprep.subr.bf16.mxu0 0
    %1105 = vmatpush1.bf16.msra.mxu0 0
    %1106 = vmatprep.mubr.bf16.mxu0 0
    %1107 = vmatmul.mubr.bf16.gmra.mrb[0].mxu0 %v913
    %v1108 = vpop.f32.mrb[0].mxu0
    %v1109 = vadd.f32 0.0, %v1108
    %v1110 = vpop.f32.mrb[0].mxu0
    %v1111 = vadd.f32 0.0, %v1110
    %v1112 = vpop.f32.mrb[0].mxu0
    %v1113 = vadd.f32 0.0, %v1112
    %v1114 = vpop.f32.mrb[0].mxu0
    %v1115 = vadd.f32 0.0, %v1114
    %1116 = vdwg.mxu0
    %1117 = vmatprep.subr.bf16.mxu0 %v1013
    %1118 = vmatpush1.bf16.msra.mxu0 %v1012
    %1119 = vmatprep.subr.bf16.mxu0 %v1017
    %1120 = vmatpush1.bf16.msra.mxu0 %v1016
    %1121 = vmatprep.subr.bf16.mxu0 %v1021
    %1122 = vmatpush1.bf16.msra.mxu0 %v1020
    %1123 = vmatprep.subr.bf16.mxu0 %v1025
    %1124 = vmatpush1.bf16.msra.mxu0 %v1024
    %1125 = vmatprep.subr.bf16.mxu0 %v1029
    %1126 = vmatpush1.bf16.msra.mxu0 %v1028
    %1127 = vmatprep.subr.bf16.mxu0 %v1033
    %1128 = vmatpush1.bf16.msra.mxu0 %v1032
    %1129 = vmatprep.subr.bf16.mxu0 %v1037
    %1130 = vmatpush1.bf16.msra.mxu0 %v1036
    %1131 = vmatprep.subr.bf16.mxu0 %v1041
    %1132 = vmatpush1.bf16.msra.mxu0 %v1040
    %1133 = vmatprep.subr.bf16.mxu0 0
    %1134 = vmatpush1.bf16.msra.mxu0 0
    %1135 = vmatprep.subr.bf16.mxu0 0
    %1136 = vmatpush1.bf16.msra.mxu0 0
    %1137 = vmatprep.subr.bf16.mxu0 0
    %1138 = vmatpush1.bf16.msra.mxu0 0
    %1139 = vmatprep.subr.bf16.mxu0 0
    %1140 = vmatpush1.bf16.msra.mxu0 0
    %1141 = vmatprep.subr.bf16.mxu0 0
    %1142 = vmatpush1.bf16.msra.mxu0 0
    %1143 = vmatprep.subr.bf16.mxu0 0
    %1144 = vmatpush1.bf16.msra.mxu0 0
    %1145 = vmatprep.subr.bf16.mxu0 0
    %1146 = vmatpush1.bf16.msra.mxu0 0
    %1147 = vmatprep.subr.bf16.mxu0 0
    %1148 = vmatpush1.bf16.msra.mxu0 0
    %1149 = vmatprep.mubr.bf16.mxu0 0
    %1150 = vmatmul.mubr.bf16.gmra.mrb[0].mxu0 %v913
    %v1151 = vpop.f32.mrb[0].mxu0
    %v1152 = vadd.f32 0.0, %v1151
    %v1153 = vpop.f32.mrb[0].mxu0
    %v1154 = vadd.f32 0.0, %v1153
    %v1155 = vpop.f32.mrb[0].mxu0
    %v1156 = vadd.f32 0.0, %v1155
    %v1157 = vpop.f32.mrb[0].mxu0
    %v1158 = vadd.f32 0.0, %v1157
    %1159 = vdwg.mxu0
    %s1160 = scalar_lea.vmem [#allocation2], 1
    %v1161 = vld [vmem:[%s1160] ss:$8 sm:$0x3]
    %s1162 = scalar_lea.vmem [#allocation2], 17
    %v1163 = vld [vmem:[%s1162] ss:$8 sm:$0x3]
    %s1164 = scalar_lea.vmem [#allocation2], 33
    %v1165 = vld [vmem:[%s1164] ss:$8 sm:$0x3]
    %s1166 = scalar_lea.vmem [#allocation2], 49
    %v1167 = vld [vmem:[%s1166] ss:$8 sm:$0x3]
    %s1168 = scalar_lea.vmem [#allocation2], 65
    %v1169 = vld [vmem:[%s1168] ss:$8 sm:$0x3]
    %s1170 = scalar_lea.vmem [#allocation2], 81
    %v1171 = vld [vmem:[%s1170] ss:$8 sm:$0x3]
    %s1172 = scalar_lea.vmem [#allocation2], 97
    %v1173 = vld [vmem:[%s1172] ss:$8 sm:$0x3]
    %s1174 = scalar_lea.vmem [#allocation2], 113
    %v1175 = vld [vmem:[%s1174] ss:$8 sm:$0x3]
    %s1176 = scalar_lea.vmem [#allocation2], 129
    %v1177 = vld [vmem:[%s1176] ss:$8 sm:$0x3]
    %s1178 = scalar_lea.vmem [#allocation2], 145
    %v1179 = vld [vmem:[%s1178] ss:$8 sm:$0x3]
    %s1180 = scalar_lea.vmem [#allocation2], 161
    %v1181 = vld [vmem:[%s1180] ss:$8 sm:$0x3]
    %s1182 = scalar_lea.vmem [#allocation2], 177
    %v1183 = vld [vmem:[%s1182] ss:$8 sm:$0x3]
    %s1184 = scalar_lea.vmem [#allocation2], 193
    %v1185 = vld [vmem:[%s1184] ss:$8 sm:$0x3]
    %s1186 = scalar_lea.vmem [#allocation2], 209
    %v1187 = vld [vmem:[%s1186] ss:$8 sm:$0x3]
    %s1188 = scalar_lea.vmem [#allocation2], 225
    %v1189 = vld [vmem:[%s1188] ss:$8 sm:$0x3]
    %s1190 = scalar_lea.vmem [#allocation2], 241
    %v1191 = vld [vmem:[%s1190] ss:$8 sm:$0x3]
    %v1208 = vcombine.low %v1161, %v1163
    %v1209 = vcombine.low %v1165, %v1167
    %v1210 = vcombine.low %v1169, %v1171
    %v1211 = vcombine.low %v1173, %v1175
    %v1213 = vunpack.c.l.s4 1966171168
    %v1214 = vunpack.c.0.s8 %v1213
    %v1215 = vlaneseq
    %v1216 = vshrl.u32 %v1215, 7
    %v1217 = vsub.s32 %v1214, %v1216
    %v1218 = vrot.slane %v1208, %v1217
    %v1220 = vunpack.c.l.s4 1966171168
    %v1221 = vunpack.c.0.s8 %v1220
    %v1222 = vlaneseq
    %v1223 = vshrl.u32 %v1222, 7
    %v1224 = vsub.s32 %v1221, %v1223
    %v1225 = vrot.slane %v1209, %v1224
    %v1227 = vunpack.c.l.s4 1966171168
    %v1228 = vunpack.c.0.s8 %v1227
    %v1229 = vlaneseq
    %v1230 = vshrl.u32 %v1229, 7
    %v1231 = vsub.s32 %v1228, %v1230
    %v1232 = vrot.slane %v1210, %v1231
    %v1234 = vunpack.c.l.s4 1966171168
    %v1235 = vunpack.c.0.s8 %v1234
    %v1236 = vlaneseq
    %v1237 = vshrl.u32 %v1236, 7
    %v1238 = vsub.s32 %v1235, %v1237
    %v1239 = vrot.slane %v1211, %v1238
    %v1240 = vcombine.low %v1218, %v1225
    %v1241 = vcombine.high %v1218, %v1225
    %v1242 = vcombine.low %v1232, %v1239
    %v1243 = vcombine.high %v1232, %v1239
    %v1245 = vunpack.c.l.s4 1966171168
    %v1246 = vunpack.c.0.s8 %v1245
    %v1247 = vlaneseq
    %v1248 = vshrl.u32 %v1247, 7
    %v1249 = vsub.s32 %v1246, %v1248
    %v1250 = vrot.slane %v1240, %v1249
    %v1252 = vunpack.c.l.s4 1966171168
    %v1253 = vunpack.c.0.s8 %v1252
    %v1254 = vlaneseq
    %v1255 = vshrl.u32 %v1254, 7
    %v1256 = vsub.s32 %v1253, %v1255
    %v1257 = vrot.slane %v1241, %v1256
    %v1259 = vunpack.c.l.s4 1966171168
    %v1260 = vunpack.c.0.s8 %v1259
    %v1261 = vlaneseq
    %v1262 = vshrl.u32 %v1261, 7
    %v1263 = vsub.s32 %v1260, %v1262
    %v1264 = vrot.slane %v1242, %v1263
    %v1266 = vunpack.c.l.s4 1966171168
    %v1267 = vunpack.c.0.s8 %v1266
    %v1268 = vlaneseq
    %v1269 = vshrl.u32 %v1268, 7
    %v1270 = vsub.s32 %v1267, %v1269
    %v1271 = vrot.slane %v1243, %v1270
    %v1272 = vcombine.low %v1250, %v1264
    %v1273 = vcombine.low %v1257, %v1271
    %v1274 = vcombine.low %v1177, %v1179
    %v1275 = vcombine.low %v1181, %v1183
    %v1276 = vcombine.low %v1185, %v1187
    %v1277 = vcombine.low %v1189, %v1191
    %v1279 = vunpack.c.l.s4 1966171168
    %v1280 = vunpack.c.0.s8 %v1279
    %v1281 = vlaneseq
    %v1282 = vshrl.u32 %v1281, 7
    %v1283 = vsub.s32 %v1280, %v1282
    %v1284 = vrot.slane %v1274, %v1283
    %v1286 = vunpack.c.l.s4 1966171168
    %v1287 = vunpack.c.0.s8 %v1286
    %v1288 = vlaneseq
    %v1289 = vshrl.u32 %v1288, 7
    %v1290 = vsub.s32 %v1287, %v1289
    %v1291 = vrot.slane %v1275, %v1290
    %v1293 = vunpack.c.l.s4 1966171168
    %v1294 = vunpack.c.0.s8 %v1293
    %v1295 = vlaneseq
    %v1296 = vshrl.u32 %v1295, 7
    %v1297 = vsub.s32 %v1294, %v1296
    %v1298 = vrot.slane %v1276, %v1297
    %v1300 = vunpack.c.l.s4 1966171168
    %v1301 = vunpack.c.0.s8 %v1300
    %v1302 = vlaneseq
    %v1303 = vshrl.u32 %v1302, 7
    %v1304 = vsub.s32 %v1301, %v1303
    %v1305 = vrot.slane %v1277, %v1304
    %v1306 = vcombine.low %v1284, %v1291
    %v1307 = vcombine.high %v1284, %v1291
    %v1308 = vcombine.low %v1298, %v1305
    %v1309 = vcombine.high %v1298, %v1305
    %v1311 = vunpack.c.l.s4 1966171168
    %v1312 = vunpack.c.0.s8 %v1311
    %v1313 = vlaneseq
    %v1314 = vshrl.u32 %v1313, 7
    %v1315 = vsub.s32 %v1312, %v1314
    %v1316 = vrot.slane %v1306, %v1315
    %v1318 = vunpack.c.l.s4 1966171168
    %v1319 = vunpack.c.0.s8 %v1318
    %v1320 = vlaneseq
    %v1321 = vshrl.u32 %v1320, 7
    %v1322 = vsub.s32 %v1319, %v1321
    %v1323 = vrot.slane %v1307, %v1322
    %v1325 = vunpack.c.l.s4 1966171168
    %v1326 = vunpack.c.0.s8 %v1325
    %v1327 = vlaneseq
    %v1328 = vshrl.u32 %v1327, 7
    %v1329 = vsub.s32 %v1326, %v1328
    %v1330 = vrot.slane %v1308, %v1329
    %v1332 = vunpack.c.l.s4 1966171168
    %v1333 = vunpack.c.0.s8 %v1332
    %v1334 = vlaneseq
    %v1335 = vshrl.u32 %v1334, 7
    %v1336 = vsub.s32 %v1333, %v1335
    %v1337 = vrot.slane %v1309, %v1336
    %v1338 = vcombine.low %v1316, %v1330
    %v1339 = vcombine.low %v1323, %v1337
    %v1344 = vadd.f32 %v1109, %v1272
    %v1345 = vadd.f32 %v1111, %v1273
    %v1346 = vadd.f32 %v1113, %v1338
    %v1347 = vadd.f32 %v1115, %v1339
    %v1348 = vadd.f32 %v1152, %v78
    %v1349 = vadd.f32 %v1154, %v82
    %v1350 = vadd.f32 %v1156, %v78
    %v1351 = vadd.f32 %v1158, %v82
    %v1352 = vxor.u32 %v1344, 2147483648
    %v1353 = vxor.u32 %v1345, 2147483648
    %v1354 = vxor.u32 %v1346, 2147483648
    %v1355 = vxor.u32 %v1347, 2147483648
    %v1356 = vmul.f32 %v1352, 1.442695
    %v1357 = vpow.pop %v1356
    %v1358 = vmul.f32 %v1353, 1.442695
    %v1359 = vpow.pop %v1358
    %v1360 = vmul.f32 %v1354, 1.442695
    %v1361 = vpow.pop %v1360
    %v1362 = vmul.f32 %v1355, 1.442695
    %v1363 = vpow.pop %v1362
    %v1364 = vadd.f32 %v1357, 1.0
    %v1365 = vadd.f32 %v1359, 1.0
    %v1366 = vadd.f32 %v1361, 1.0
    %v1367 = vadd.f32 %v1363, 1.0
    %v1368 = vrcp.pop %v1364
    %v1369 = vmul.f32 1.0, %v1368
    %v1370 = vrcp.pop %v1365
    %v1371 = vmul.f32 1.0, %v1370
    %v1372 = vrcp.pop %v1366
    %v1373 = vmul.f32 1.0, %v1372
    %v1374 = vrcp.pop %v1367
    %v1375 = vmul.f32 1.0, %v1374
    %v1376 = vtanh.pop %v1345
    %v1377 = vtanh.pop %v1347
    %v1394 = vcombine.low %v634, %v635
    %v1395 = vcombine.low %v636, %v637
    %v1396 = vcombine.low %v638, %v639
    %v1397 = vcombine.low %v640, %v641
    %v1399 = vunpack.c.l.s4 1966171168
    %v1400 = vunpack.c.0.s8 %v1399
    %v1401 = vlaneseq
    %v1402 = vshrl.u32 %v1401, 7
    %v1403 = vsub.s32 %v1400, %v1402
    %v1404 = vrot.slane %v1394, %v1403
    %v1406 = vunpack.c.l.s4 1966171168
    %v1407 = vunpack.c.0.s8 %v1406
    %v1408 = vlaneseq
    %v1409 = vshrl.u32 %v1408, 7
    %v1410 = vsub.s32 %v1407, %v1409
    %v1411 = vrot.slane %v1395, %v1410
    %v1413 = vunpack.c.l.s4 1966171168
    %v1414 = vunpack.c.0.s8 %v1413
    %v1415 = vlaneseq
    %v1416 = vshrl.u32 %v1415, 7
    %v1417 = vsub.s32 %v1414, %v1416
    %v1418 = vrot.slane %v1396, %v1417
    %v1420 = vunpack.c.l.s4 1966171168
    %v1421 = vunpack.c.0.s8 %v1420
    %v1422 = vlaneseq
    %v1423 = vshrl.u32 %v1422, 7
    %v1424 = vsub.s32 %v1421, %v1423
    %v1425 = vrot.slane %v1397, %v1424
    %v1426 = vcombine.low %v1404, %v1411
    %v1427 = vcombine.low %v1418, %v1425
    %v1429 = vunpack.c.l.s4 1966171168
    %v1430 = vunpack.c.0.s8 %v1429
    %v1431 = vlaneseq
    %v1432 = vshrl.u32 %v1431, 7
    %v1433 = vsub.s32 %v1430, %v1432
    %v1434 = vrot.slane %v1426, %v1433
    %v1436 = vunpack.c.l.s4 1966171168
    %v1437 = vunpack.c.0.s8 %v1436
    %v1438 = vlaneseq
    %v1439 = vshrl.u32 %v1438, 7
    %v1440 = vsub.s32 %v1437, %v1439
    %v1441 = vrot.slane %v1427, %v1440
    %v1442 = vcombine.low %v1434, %v1441
    %v1443 = vcombine.low %v642, %v643
    %v1444 = vcombine.low %v644, %v645
    %v1445 = vcombine.low %v646, %v647
    %v1446 = vcombine.low %v648, %v649
    %v1448 = vunpack.c.l.s4 1966171168
    %v1449 = vunpack.c.0.s8 %v1448
    %v1450 = vlaneseq
    %v1451 = vshrl.u32 %v1450, 7
    %v1452 = vsub.s32 %v1449, %v1451
    %v1453 = vrot.slane %v1443, %v1452
    %v1455 = vunpack.c.l.s4 1966171168
    %v1456 = vunpack.c.0.s8 %v1455
    %v1457 = vlaneseq
    %v1458 = vshrl.u32 %v1457, 7
    %v1459 = vsub.s32 %v1456, %v1458
    %v1460 = vrot.slane %v1444, %v1459
    %v1462 = vunpack.c.l.s4 1966171168
    %v1463 = vunpack.c.0.s8 %v1462
    %v1464 = vlaneseq
    %v1465 = vshrl.u32 %v1464, 7
    %v1466 = vsub.s32 %v1463, %v1465
    %v1467 = vrot.slane %v1445, %v1466
    %v1469 = vunpack.c.l.s4 1966171168
    %v1470 = vunpack.c.0.s8 %v1469
    %v1471 = vlaneseq
    %v1472 = vshrl.u32 %v1471, 7
    %v1473 = vsub.s32 %v1470, %v1472
    %v1474 = vrot.slane %v1446, %v1473
    %v1475 = vcombine.low %v1453, %v1460
    %v1476 = vcombine.low %v1467, %v1474
    %v1478 = vunpack.c.l.s4 1966171168
    %v1479 = vunpack.c.0.s8 %v1478
    %v1480 = vlaneseq
    %v1481 = vshrl.u32 %v1480, 7
    %v1482 = vsub.s32 %v1479, %v1481
    %v1483 = vrot.slane %v1475, %v1482
    %v1485 = vunpack.c.l.s4 1966171168
    %v1486 = vunpack.c.0.s8 %v1485
    %v1487 = vlaneseq
    %v1488 = vshrl.u32 %v1487, 7
    %v1489 = vsub.s32 %v1486, %v1488
    %v1490 = vrot.slane %v1476, %v1489
    %v1491 = vcombine.low %v1483, %v1490
    %v1494 = vmul.f32 %v1369, %v1442
    %v1495 = vmul.f32 %v1373, %v1491
    %1498 = vrot.lane.b32.xlu0 %v1376, 64
    %v1499 = vpop.permute.xlu0 %1498
    %1500 = vrot.lane.b32.xlu0 %v1377, 64
    %v1501 = vpop.permute.xlu0 %1500
    %v1504 = vmul.f32 %v1369, %v1499
    %v1505 = vmul.f32 %v1373, %v1501
    %1508 = vrot.lane.b32.xlu0 %v1504, 64
    %v1509 = vpop.permute.xlu0 %1508
    %1510 = vrot.lane.b32.xlu0 %v1505, 64
    %v1511 = vpop.permute.xlu0 %1510
    %v1514 = vadd.f32 %v1494, %v1509
    %v1515 = vadd.f32 %v1495, %v1511
    %v1516 = vtanh.pop %v1514
    %v1517 = vtanh.pop %v1515
    %1520 = vrot.lane.b32.xlu0 %v1516, 64
    %v1521 = vpop.permute.xlu0 %1520
    %1522 = vrot.lane.b32.xlu0 %v1517, 64
    %v1523 = vpop.permute.xlu0 %1522
    %v1526 = vmul.f32 %v1371, %v1521
    %v1527 = vmul.f32 %v1375, %v1523
    %v1528 = vxor.u32 %v1348, 2147483648
    %v1529 = vxor.u32 %v1349, 2147483648
    %v1530 = vxor.u32 %v1350, 2147483648
    %v1531 = vxor.u32 %v1351, 2147483648
    %v1532 = vmul.f32 %v1528, 1.442695
    %v1533 = vpow.pop %v1532
    %v1534 = vmul.f32 %v1529, 1.442695
    %v1535 = vpow.pop %v1534
    %v1536 = vmul.f32 %v1530, 1.442695
    %v1537 = vpow.pop %v1536
    %v1538 = vmul.f32 %v1531, 1.442695
    %v1539 = vpow.pop %v1538
    %v1540 = vadd.f32 %v1533, 1.0
    %v1541 = vadd.f32 %v1535, 1.0
    %v1542 = vadd.f32 %v1537, 1.0
    %v1543 = vadd.f32 %v1539, 1.0
    %v1544 = vrcp.pop %v1540
    %v1545 = vmul.f32 1.0, %v1544
    %v1546 = vrcp.pop %v1541
    %v1547 = vmul.f32 1.0, %v1546
    %v1548 = vrcp.pop %v1542
    %v1549 = vmul.f32 1.0, %v1548
    %v1550 = vrcp.pop %v1543
    %v1551 = vmul.f32 1.0, %v1550
    %v1552 = vtanh.pop %v1349
    %v1553 = vtanh.pop %v1351
    %v1554 = vmul.f32 %v1545, 0.0
    %v1555 = vmul.f32 %v1549, 0.0
    %1558 = vrot.lane.b32.xlu0 %v1552, 64
    %v1559 = vpop.permute.xlu0 %1558
    %1560 = vrot.lane.b32.xlu0 %v1553, 64
    %v1561 = vpop.permute.xlu0 %1560
    %v1564 = vmul.f32 %v1545, %v1559
    %v1565 = vmul.f32 %v1549, %v1561
    %1568 = vrot.lane.b32.xlu0 %v1564, 64
    %v1569 = vpop.permute.xlu0 %1568
    %1570 = vrot.lane.b32.xlu0 %v1565, 64
    %v1571 = vpop.permute.xlu0 %1570
    %v1574 = vadd.f32 %v1554, %v1569
    %v1575 = vadd.f32 %v1555, %v1571
    %v1576 = vtanh.pop %v1574
    %v1577 = vtanh.pop %v1575
    %1580 = vrot.lane.b32.xlu0 %v1576, 64
    %v1581 = vpop.permute.xlu0 %1580
    %1582 = vrot.lane.b32.xlu0 %v1577, 64
    %v1583 = vpop.permute.xlu0 %1582
    %v1586 = vmul.f32 %v1547, %v1581
    %v1587 = vmul.f32 %v1551, %v1583
    %1590 = vrot.lane.b32.xlu0 %v1586, 64
    %v1591 = vpop.permute.xlu0 %1590
    %1592 = vrot.lane.b32.xlu0 %v1587, 64
    %v1593 = vpop.permute.xlu0 %1592
    %v1596 = vsel %vm910, %v1526, %v1591
    %v1597 = vsel %vm910, %v1527, %v1593
    %v1598 = vpack.c.bf16 %v1597, %v1596
    %1599 = vmatprep.subr.bf16.mxu0 %v1011
    %1600 = vmatpush1.bf16.msra.mxu0 %v1010
    %1601 = vmatprep.subr.bf16.mxu0 %v1015
    %1602 = vmatpush1.bf16.msra.mxu0 %v1014
    %1603 = vmatprep.subr.bf16.mxu0 %v1019
    %1604 = vmatpush1.bf16.msra.mxu0 %v1018
    %1605 = vmatprep.subr.bf16.mxu0 %v1023
    %1606 = vmatpush1.bf16.msra.mxu0 %v1022
    %1607 = vmatprep.subr.bf16.mxu0 %v1027
    %1608 = vmatpush1.bf16.msra.mxu0 %v1026
    %1609 = vmatprep.subr.bf16.mxu0 %v1031
    %1610 = vmatpush1.bf16.msra.mxu0 %v1030
    %1611 = vmatprep.subr.bf16.mxu0 %v1035
    %1612 = vmatpush1.bf16.msra.mxu0 %v1034
    %1613 = vmatprep.subr.bf16.mxu0 %v1039
    %1614 = vmatpush1.bf16.msra.mxu0 %v1038
    %1615 = vmatprep.subr.bf16.mxu0 0
    %1616 = vmatpush1.bf16.msra.mxu0 0
    %1617 = vmatprep.subr.bf16.mxu0 0
    %1618 = vmatpush1.bf16.msra.mxu0 0
    %1619 = vmatprep.subr.bf16.mxu0 0
    %1620 = vmatpush1.bf16.msra.mxu0 0
    %1621 = vmatprep.subr.bf16.mxu0 0
    %1622 = vmatpush1.bf16.msra.mxu0 0
    %1623 = vmatprep.subr.bf16.mxu0 0
    %1624 = vmatpush1.bf16.msra.mxu0 0
    %1625 = vmatprep.subr.bf16.mxu0 0
    %1626 = vmatpush1.bf16.msra.mxu0 0
    %1627 = vmatprep.subr.bf16.mxu0 0
    %1628 = vmatpush1.bf16.msra.mxu0 0
    %1629 = vmatprep.subr.bf16.mxu0 0
    %1630 = vmatpush1.bf16.msra.mxu0 0
    %1631 = vmatprep.mubr.bf16.mxu0 0
    %1632 = vmatmul.mubr.bf16.gmra.mrb[0].mxu0 %v1598
    %v1633 = vpop.f32.mrb[0].mxu0
    %v1634 = vadd.f32 0.0, %v1633
    %v1635 = vpop.f32.mrb[0].mxu0
    %v1636 = vadd.f32 0.0, %v1635
    %v1637 = vpop.f32.mrb[0].mxu0
    %v1638 = vadd.f32 0.0, %v1637
    %v1639 = vpop.f32.mrb[0].mxu0
    %v1640 = vadd.f32 0.0, %v1639
    %1641 = vdwg.mxu0
    %1642 = vmatprep.subr.bf16.mxu0 %v1013
    %1643 = vmatpush1.bf16.msra.mxu0 %v1012
    %1644 = vmatprep.subr.bf16.mxu0 %v1017
    %1645 = vmatpush1.bf16.msra.mxu0 %v1016
    %1646 = vmatprep.subr.bf16.mxu0 %v1021
    %1647 = vmatpush1.bf16.msra.mxu0 %v1020
    %1648 = vmatprep.subr.bf16.mxu0 %v1025
    %1649 = vmatpush1.bf16.msra.mxu0 %v1024
    %1650 = vmatprep.subr.bf16.mxu0 %v1029
    %1651 = vmatpush1.bf16.msra.mxu0 %v1028
    %1652 = vmatprep.subr.bf16.mxu0 %v1033
    %1653 = vmatpush1.bf16.msra.mxu0 %v1032
    %1654 = vmatprep.subr.bf16.mxu0 %v1037
    %1655 = vmatpush1.bf16.msra.mxu0 %v1036
    %1656 = vmatprep.subr.bf16.mxu0 %v1041
    %1657 = vmatpush1.bf16.msra.mxu0 %v1040
    %1658 = vmatprep.subr.bf16.mxu0 0
    %1659 = vmatpush1.bf16.msra.mxu0 0
    %1660 = vmatprep.subr.bf16.mxu0 0
    %1661 = vmatpush1.bf16.msra.mxu0 0
    %1662 = vmatprep.subr.bf16.mxu0 0
    %1663 = vmatpush1.bf16.msra.mxu0 0
    %1664 = vmatprep.subr.bf16.mxu0 0
    %1665 = vmatpush1.bf16.msra.mxu0 0
    %1666 = vmatprep.subr.bf16.mxu0 0
    %1667 = vmatpush1.bf16.msra.mxu0 0
    %1668 = vmatprep.subr.bf16.mxu0 0
    %1669 = vmatpush1.bf16.msra.mxu0 0
    %1670 = vmatprep.subr.bf16.mxu0 0
    %1671 = vmatpush1.bf16.msra.mxu0 0
    %1672 = vmatprep.subr.bf16.mxu0 0
    %1673 = vmatpush1.bf16.msra.mxu0 0
    %1674 = vmatprep.mubr.bf16.mxu0 0
    %1675 = vmatmul.mubr.bf16.gmra.mrb[0].mxu0 %v1598
    %v1676 = vpop.f32.mrb[0].mxu0
    %v1677 = vadd.f32 0.0, %v1676
    %v1678 = vpop.f32.mrb[0].mxu0
    %v1679 = vadd.f32 0.0, %v1678
    %v1680 = vpop.f32.mrb[0].mxu0
    %v1681 = vadd.f32 0.0, %v1680
    %v1682 = vpop.f32.mrb[0].mxu0
    %v1683 = vadd.f32 0.0, %v1682
    %1684 = vdwg.mxu0
    %s1685 = scalar_lea.vmem [#allocation2], 2
    %v1686 = vld [vmem:[%s1685] ss:$8 sm:$0x3]
    %s1687 = scalar_lea.vmem [#allocation2], 18
    %v1688 = vld [vmem:[%s1687] ss:$8 sm:$0x3]
    %s1689 = scalar_lea.vmem [#allocation2], 34
    %v1690 = vld [vmem:[%s1689] ss:$8 sm:$0x3]
    %s1691 = scalar_lea.vmem [#allocation2], 50
    %v1692 = vld [vmem:[%s1691] ss:$8 sm:$0x3]
    %s1693 = scalar_lea.vmem [#allocation2], 66
    %v1694 = vld [vmem:[%s1693] ss:$8 sm:$0x3]
    %s1695 = scalar_lea.vmem [#allocation2], 82
    %v1696 = vld [vmem:[%s1695] ss:$8 sm:$0x3]
    %s1697 = scalar_lea.vmem [#allocation2], 98
    %v1698 = vld [vmem:[%s1697] ss:$8 sm:$0x3]
    %s1699 = scalar_lea.vmem [#allocation2], 114
    %v1700 = vld [vmem:[%s1699] ss:$8 sm:$0x3]
    %s1701 = scalar_lea.vmem [#allocation2], 130
    %v1702 = vld [vmem:[%s1701] ss:$8 sm:$0x3]
    %s1703 = scalar_lea.vmem [#allocation2], 146
    %v1704 = vld [vmem:[%s1703] ss:$8 sm:$0x3]
    %s1705 = scalar_lea.vmem [#allocation2], 162
    %v1706 = vld [vmem:[%s1705] ss:$8 sm:$0x3]
    %s1707 = scalar_lea.vmem [#allocation2], 178
    %v1708 = vld [vmem:[%s1707] ss:$8 sm:$0x3]
    %s1709 = scalar_lea.vmem [#allocation2], 194
    %v1710 = vld [vmem:[%s1709] ss:$8 sm:$0x3]
    %s1711 = scalar_lea.vmem [#allocation2], 210
    %v1712 = vld [vmem:[%s1711] ss:$8 sm:$0x3]
    %s1713 = scalar_lea.vmem [#allocation2], 226
    %v1714 = vld [vmem:[%s1713] ss:$8 sm:$0x3]
    %s1715 = scalar_lea.vmem [#allocation2], 242
    %v1716 = vld [vmem:[%s1715] ss:$8 sm:$0x3]
    %v1733 = vcombine.low %v1686, %v1688
    %v1734 = vcombine.low %v1690, %v1692
    %v1735 = vcombine.low %v1694, %v1696
    %v1736 = vcombine.low %v1698, %v1700
    %v1738 = vunpack.c.l.s4 1966171168
    %v1739 = vunpack.c.0.s8 %v1738
    %v1740 = vlaneseq
    %v1741 = vshrl.u32 %v1740, 7
    %v1742 = vsub.s32 %v1739, %v1741
    %v1743 = vrot.slane %v1733, %v1742
    %v1745 = vunpack.c.l.s4 1966171168
    %v1746 = vunpack.c.0.s8 %v1745
    %v1747 = vlaneseq
    %v1748 = vshrl.u32 %v1747, 7
    %v1749 = vsub.s32 %v1746, %v1748
    %v1750 = vrot.slane %v1734, %v1749
    %v1752 = vunpack.c.l.s4 1966171168
    %v1753 = vunpack.c.0.s8 %v1752
    %v1754 = vlaneseq
    %v1755 = vshrl.u32 %v1754, 7
    %v1756 = vsub.s32 %v1753, %v1755
    %v1757 = vrot.slane %v1735, %v1756
    %v1759 = vunpack.c.l.s4 1966171168
    %v1760 = vunpack.c.0.s8 %v1759
    %v1761 = vlaneseq
    %v1762 = vshrl.u32 %v1761, 7
    %v1763 = vsub.s32 %v1760, %v1762
    %v1764 = vrot.slane %v1736, %v1763
    %v1765 = vcombine.low %v1743, %v1750
    %v1766 = vcombine.high %v1743, %v1750
    %v1767 = vcombine.low %v1757, %v1764
    %v1768 = vcombine.high %v1757, %v1764
    %v1770 = vunpack.c.l.s4 1966171168
    %v1771 = vunpack.c.0.s8 %v1770
    %v1772 = vlaneseq
    %v1773 = vshrl.u32 %v1772, 7
    %v1774 = vsub.s32 %v1771, %v1773
    %v1775 = vrot.slane %v1765, %v1774
    %v1777 = vunpack.c.l.s4 1966171168
    %v1778 = vunpack.c.0.s8 %v1777
    %v1779 = vlaneseq
    %v1780 = vshrl.u32 %v1779, 7
    %v1781 = vsub.s32 %v1778, %v1780
    %v1782 = vrot.slane %v1766, %v1781
    %v1784 = vunpack.c.l.s4 1966171168
    %v1785 = vunpack.c.0.s8 %v1784
    %v1786 = vlaneseq
    %v1787 = vshrl.u32 %v1786, 7
    %v1788 = vsub.s32 %v1785, %v1787
    %v1789 = vrot.slane %v1767, %v1788
    %v1791 = vunpack.c.l.s4 1966171168
    %v1792 = vunpack.c.0.s8 %v1791
    %v1793 = vlaneseq
    %v1794 = vshrl.u32 %v1793, 7
    %v1795 = vsub.s32 %v1792, %v1794
    %v1796 = vrot.slane %v1768, %v1795
    %v1797 = vcombine.low %v1775, %v1789
    %v1798 = vcombine.low %v1782, %v1796
    %v1799 = vcombine.low %v1702, %v1704
    %v1800 = vcombine.low %v1706, %v1708
    %v1801 = vcombine.low %v1710, %v1712
    %v1802 = vcombine.low %v1714, %v1716
    %v1804 = vunpack.c.l.s4 1966171168
    %v1805 = vunpack.c.0.s8 %v1804
    %v1806 = vlaneseq
    %v1807 = vshrl.u32 %v1806, 7
    %v1808 = vsub.s32 %v1805, %v1807
    %v1809 = vrot.slane %v1799, %v1808
    %v1811 = vunpack.c.l.s4 1966171168
    %v1812 = vunpack.c.0.s8 %v1811
    %v1813 = vlaneseq
    %v1814 = vshrl.u32 %v1813, 7
    %v1815 = vsub.s32 %v1812, %v1814
    %v1816 = vrot.slane %v1800, %v1815
    %v1818 = vunpack.c.l.s4 1966171168
    %v1819 = vunpack.c.0.s8 %v1818
    %v1820 = vlaneseq
    %v1821 = vshrl.u32 %v1820, 7
    %v1822 = vsub.s32 %v1819, %v1821
    %v1823 = vrot.slane %v1801, %v1822
    %v1825 = vunpack.c.l.s4 1966171168
    %v1826 = vunpack.c.0.s8 %v1825
    %v1827 = vlaneseq
    %v1828 = vshrl.u32 %v1827, 7
    %v1829 = vsub.s32 %v1826, %v1828
    %v1830 = vrot.slane %v1802, %v1829
    %v1831 = vcombine.low %v1809, %v1816
    %v1832 = vcombine.high %v1809, %v1816
    %v1833 = vcombine.low %v1823, %v1830
    %v1834 = vcombine.high %v1823, %v1830
    %v1836 = vunpack.c.l.s4 1966171168
    %v1837 = vunpack.c.0.s8 %v1836
    %v1838 = vlaneseq
    %v1839 = vshrl.u32 %v1838, 7
    %v1840 = vsub.s32 %v1837, %v1839
    %v1841 = vrot.slane %v1831, %v1840
    %v1843 = vunpack.c.l.s4 1966171168
    %v1844 = vunpack.c.0.s8 %v1843
    %v1845 = vlaneseq
    %v1846 = vshrl.u32 %v1845, 7
    %v1847 = vsub.s32 %v1844, %v1846
    %v1848 = vrot.slane %v1832, %v1847
    %v1850 = vunpack.c.l.s4 1966171168
    %v1851 = vunpack.c.0.s8 %v1850
    %v1852 = vlaneseq
    %v1853 = vshrl.u32 %v1852, 7
    %v1854 = vsub.s32 %v1851, %v1853
    %v1855 = vrot.slane %v1833, %v1854
    %v1857 = vunpack.c.l.s4 1966171168
    %v1858 = vunpack.c.0.s8 %v1857
    %v1859 = vlaneseq
    %v1860 = vshrl.u32 %v1859, 7
    %v1861 = vsub.s32 %v1858, %v1860
    %v1862 = vrot.slane %v1834, %v1861
    %v1863 = vcombine.low %v1841, %v1855
    %v1864 = vcombine.low %v1848, %v1862
    %v1869 = vadd.f32 %v1634, %v1797
    %v1870 = vadd.f32 %v1636, %v1798
    %v1871 = vadd.f32 %v1638, %v1863
    %v1872 = vadd.f32 %v1640, %v1864
    %v1873 = vadd.f32 %v1677, %v78
    %v1874 = vadd.f32 %v1679, %v82
    %v1875 = vadd.f32 %v1681, %v78
    %v1876 = vadd.f32 %v1683, %v82
    %v1877 = vxor.u32 %v1869, 2147483648
    %v1878 = vxor.u32 %v1870, 2147483648
    %v1879 = vxor.u32 %v1871, 2147483648
    %v1880 = vxor.u32 %v1872, 2147483648
    %v1881 = vmul.f32 %v1877, 1.442695
    %v1882 = vpow.pop %v1881
    %v1883 = vmul.f32 %v1878, 1.442695
    %v1884 = vpow.pop %v1883
    %v1885 = vmul.f32 %v1879, 1.442695
    %v1886 = vpow.pop %v1885
    %v1887 = vmul.f32 %v1880, 1.442695
    %v1888 = vpow.pop %v1887
    %v1889 = vadd.f32 %v1882, 1.0
    %v1890 = vadd.f32 %v1884, 1.0
    %v1891 = vadd.f32 %v1886, 1.0
    %v1892 = vadd.f32 %v1888, 1.0
    %v1893 = vrcp.pop %v1889
    %v1894 = vmul.f32 1.0, %v1893
    %v1895 = vrcp.pop %v1890
    %v1896 = vmul.f32 1.0, %v1895
    %v1897 = vrcp.pop %v1891
    %v1898 = vmul.f32 1.0, %v1897
    %v1899 = vrcp.pop %v1892
    %v1900 = vmul.f32 1.0, %v1899
    %v1901 = vtanh.pop %v1870
    %v1902 = vtanh.pop %v1872
    %v1903 = vmul.f32 %v1894, %v1514
    %v1904 = vmul.f32 %v1898, %v1515
    %1907 = vrot.lane.b32.xlu0 %v1901, 64
    %v1908 = vpop.permute.xlu0 %1907
    %1909 = vrot.lane.b32.xlu0 %v1902, 64
    %v1910 = vpop.permute.xlu0 %1909
    %v1913 = vmul.f32 %v1894, %v1908
    %v1914 = vmul.f32 %v1898, %v1910
    %1917 = vrot.lane.b32.xlu0 %v1913, 64
    %v1918 = vpop.permute.xlu0 %1917
    %1919 = vrot.lane.b32.xlu0 %v1914, 64
    %v1920 = vpop.permute.xlu0 %1919
    %v1923 = vadd.f32 %v1903, %v1918
    %v1924 = vadd.f32 %v1904, %v1920
    %v1925 = vtanh.pop %v1923
    %v1926 = vtanh.pop %v1924
    %1929 = vrot.lane.b32.xlu0 %v1925, 64
    %v1930 = vpop.permute.xlu0 %1929
    %1931 = vrot.lane.b32.xlu0 %v1926, 64
    %v1932 = vpop.permute.xlu0 %1931
    %v1935 = vmul.f32 %v1896, %v1930
    %v1936 = vmul.f32 %v1900, %v1932
    %v1937 = vxor.u32 %v1873, 2147483648
    %v1938 = vxor.u32 %v1874, 2147483648
    %v1939 = vxor.u32 %v1875, 2147483648
    %v1940 = vxor.u32 %v1876, 2147483648
    %v1941 = vmul.f32 %v1937, 1.442695
    %v1942 = vpow.pop %v1941
    %v1943 = vmul.f32 %v1938, 1.442695
    %v1944 = vpow.pop %v1943
    %v1945 = vmul.f32 %v1939, 1.442695
    %v1946 = vpow.pop %v1945
    %v1947 = vmul.f32 %v1940, 1.442695
    %v1948 = vpow.pop %v1947
    %v1949 = vadd.f32 %v1942, 1.0
    %v1950 = vadd.f32 %v1944, 1.0
    %v1951 = vadd.f32 %v1946, 1.0
    %v1952 = vadd.f32 %v1948, 1.0
    %v1953 = vrcp.pop %v1949
    %v1954 = vmul.f32 1.0, %v1953
    %v1955 = vrcp.pop %v1950
    %v1956 = vmul.f32 1.0, %v1955
    %v1957 = vrcp.pop %v1951
    %v1958 = vmul.f32 1.0, %v1957
    %v1959 = vrcp.pop %v1952
    %v1960 = vmul.f32 1.0, %v1959
    %v1961 = vtanh.pop %v1874
    %v1962 = vtanh.pop %v1876
    %v1963 = vmul.f32 %v1954, %v1574
    %v1964 = vmul.f32 %v1958, %v1575
    %1967 = vrot.lane.b32.xlu0 %v1961, 64
    %v1968 = vpop.permute.xlu0 %1967
    %1969 = vrot.lane.b32.xlu0 %v1962, 64
    %v1970 = vpop.permute.xlu0 %1969
    %v1973 = vmul.f32 %v1954, %v1968
    %v1974 = vmul.f32 %v1958, %v1970
    %1977 = vrot.lane.b32.xlu0 %v1973, 64
    %v1978 = vpop.permute.xlu0 %1977
    %1979 = vrot.lane.b32.xlu0 %v1974, 64
    %v1980 = vpop.permute.xlu0 %1979
    %v1983 = vadd.f32 %v1963, %v1978
    %v1984 = vadd.f32 %v1964, %v1980
    %v1985 = vtanh.pop %v1983
    %v1986 = vtanh.pop %v1984
    %1989 = vrot.lane.b32.xlu0 %v1985, 64
    %v1990 = vpop.permute.xlu0 %1989
    %1991 = vrot.lane.b32.xlu0 %v1986, 64
    %v1992 = vpop.permute.xlu0 %1991
    %v1995 = vmul.f32 %v1956, %v1990
    %v1996 = vmul.f32 %v1960, %v1992
    %1999 = vrot.lane.b32.xlu0 %v1995, 64
    %v2000 = vpop.permute.xlu0 %1999
    %2001 = vrot.lane.b32.xlu0 %v1996, 64
    %v2002 = vpop.permute.xlu0 %2001
    %v2005 = vsel %vm910, %v1935, %v2000
    %v2006 = vsel %vm910, %v1936, %v2002
    %v2007 = vpack.c.bf16 %v2006, %v2005
    %2008 = vmatprep.subr.bf16.mxu0 %v1011
    %2009 = vmatpush1.bf16.msra.mxu0 %v1010
    %2010 = vmatprep.subr.bf16.mxu0 %v1015
    %2011 = vmatpush1.bf16.msra.mxu0 %v1014
    %2012 = vmatprep.subr.bf16.mxu0 %v1019
    %2013 = vmatpush1.bf16.msra.mxu0 %v1018
    %2014 = vmatprep.subr.bf16.mxu0 %v1023
    %2015 = vmatpush1.bf16.msra.mxu0 %v1022
    %2016 = vmatprep.subr.bf16.mxu0 %v1027
    %2017 = vmatpush1.bf16.msra.mxu0 %v1026
    %2018 = vmatprep.subr.bf16.mxu0 %v1031
    %2019 = vmatpush1.bf16.msra.mxu0 %v1030
    %2020 = vmatprep.subr.bf16.mxu0 %v1035
    %2021 = vmatpush1.bf16.msra.mxu0 %v1034
    %2022 = vmatprep.subr.bf16.mxu0 %v1039
    %2023 = vmatpush1.bf16.msra.mxu0 %v1038
    %2024 = vmatprep.subr.bf16.mxu0 0
    %2025 = vmatpush1.bf16.msra.mxu0 0
    %2026 = vmatprep.subr.bf16.mxu0 0
    %2027 = vmatpush1.bf16.msra.mxu0 0
    %2028 = vmatprep.subr.bf16.mxu0 0
    %2029 = vmatpush1.bf16.msra.mxu0 0
    %2030 = vmatprep.subr.bf16.mxu0 0
    %2031 = vmatpush1.bf16.msra.mxu0 0
    %2032 = vmatprep.subr.bf16.mxu0 0
    %2033 = vmatpush1.bf16.msra.mxu0 0
    %2034 = vmatprep.subr.bf16.mxu0 0
    %2035 = vmatpush1.bf16.msra.mxu0 0
    %2036 = vmatprep.subr.bf16.mxu0 0
    %2037 = vmatpush1.bf16.msra.mxu0 0
    %2038 = vmatprep.subr.bf16.mxu0 0
    %2039 = vmatpush1.bf16.msra.mxu0 0
    %2040 = vmatprep.mubr.bf16.mxu0 0
    %2041 = vmatmul.mubr.bf16.gmra.mrb[0].mxu0 %v2007
    %v2042 = vpop.f32.mrb[0].mxu0
    %v2043 = vadd.f32 0.0, %v2042
    %v2044 = vpop.f32.mrb[0].mxu0
    %v2045 = vadd.f32 0.0, %v2044
    %v2046 = vpop.f32.mrb[0].mxu0
    %v2047 = vadd.f32 0.0, %v2046
    %v2048 = vpop.f32.mrb[0].mxu0
    %v2049 = vadd.f32 0.0, %v2048
    %2050 = vdwg.mxu0
    %2051 = vmatprep.subr.bf16.mxu0 %v1013
    %2052 = vmatpush1.bf16.msra.mxu0 %v1012
    %2053 = vmatprep.subr.bf16.mxu0 %v1017
    %2054 = vmatpush1.bf16.msra.mxu0 %v1016
    %2055 = vmatprep.subr.bf16.mxu0 %v1021
    %2056 = vmatpush1.bf16.msra.mxu0 %v1020
    %2057 = vmatprep.subr.bf16.mxu0 %v1025
    %2058 = vmatpush1.bf16.msra.mxu0 %v1024
    %2059 = vmatprep.subr.bf16.mxu0 %v1029
    %2060 = vmatpush1.bf16.msra.mxu0 %v1028
    %2061 = vmatprep.subr.bf16.mxu0 %v1033
    %2062 = vmatpush1.bf16.msra.mxu0 %v1032
    %2063 = vmatprep.subr.bf16.mxu0 %v1037
    %2064 = vmatpush1.bf16.msra.mxu0 %v1036
    %2065 = vmatprep.subr.bf16.mxu0 %v1041
    %2066 = vmatpush1.bf16.msra.mxu0 %v1040
    %2067 = vmatprep.subr.bf16.mxu0 0
    %2068 = vmatpush1.bf16.msra.mxu0 0
    %2069 = vmatprep.subr.bf16.mxu0 0
    %2070 = vmatpush1.bf16.msra.mxu0 0
    %2071 = vmatprep.subr.bf16.mxu0 0
    %2072 = vmatpush1.bf16.msra.mxu0 0
    %2073 = vmatprep.subr.bf16.mxu0 0
    %2074 = vmatpush1.bf16.msra.mxu0 0
    %2075 = vmatprep.subr.bf16.mxu0 0
    %2076 = vmatpush1.bf16.msra.mxu0 0
    %2077 = vmatprep.subr.bf16.mxu0 0
    %2078 = vmatpush1.bf16.msra.mxu0 0
    %2079 = vmatprep.subr.bf16.mxu0 0
    %2080 = vmatpush1.bf16.msra.mxu0 0
    %2081 = vmatprep.subr.bf16.mxu0 0
    %2082 = vmatpush1.bf16.msra.mxu0 0
    %2083 = vmatprep.mubr.bf16.mxu0 0
    %2084 = vmatmul.mubr.bf16.gmra.mrb[0].mxu0 %v2007
    %v2085 = vpop.f32.mrb[0].mxu0
    %v2086 = vadd.f32 0.0, %v2085
    %v2087 = vpop.f32.mrb[0].mxu0
    %v2088 = vadd.f32 0.0, %v2087
    %v2089 = vpop.f32.mrb[0].mxu0
    %v2090 = vadd.f32 0.0, %v2089
    %v2091 = vpop.f32.mrb[0].mxu0
    %v2092 = vadd.f32 0.0, %v2091
    %2093 = vdwg.mxu0
    %s2094 = scalar_lea.vmem [#allocation2], 3
    %v2095 = vld [vmem:[%s2094] ss:$8 sm:$0x3]
    %s2096 = scalar_lea.vmem [#allocation2], 19
    %v2097 = vld [vmem:[%s2096] ss:$8 sm:$0x3]
    %s2098 = scalar_lea.vmem [#allocation2], 35
    %v2099 = vld [vmem:[%s2098] ss:$8 sm:$0x3]
    %s2100 = scalar_lea.vmem [#allocation2], 51
    %v2101 = vld [vmem:[%s2100] ss:$8 sm:$0x3]
    %s2102 = scalar_lea.vmem [#allocation2], 67
    %v2103 = vld [vmem:[%s2102] ss:$8 sm:$0x3]
    %s2104 = scalar_lea.vmem [#allocation2], 83
    %v2105 = vld [vmem:[%s2104] ss:$8 sm:$0x3]
    %s2106 = scalar_lea.vmem [#allocation2], 99
    %v2107 = vld [vmem:[%s2106] ss:$8 sm:$0x3]
    %s2108 = scalar_lea.vmem [#allocation2], 115
    %v2109 = vld [vmem:[%s2108] ss:$8 sm:$0x3]
    %s2110 = scalar_lea.vmem [#allocation2], 131
    %v2111 = vld [vmem:[%s2110] ss:$8 sm:$0x3]
    %s2112 = scalar_lea.vmem [#allocation2], 147
    %v2113 = vld [vmem:[%s2112] ss:$8 sm:$0x3]
    %s2114 = scalar_lea.vmem [#allocation2], 163
    %v2115 = vld [vmem:[%s2114] ss:$8 sm:$0x3]
    %s2116 = scalar_lea.vmem [#allocation2], 179
    %v2117 = vld [vmem:[%s2116] ss:$8 sm:$0x3]
    %s2118 = scalar_lea.vmem [#allocation2], 195
    %v2119 = vld [vmem:[%s2118] ss:$8 sm:$0x3]
    %s2120 = scalar_lea.vmem [#allocation2], 211
    %v2121 = vld [vmem:[%s2120] ss:$8 sm:$0x3]
    %s2122 = scalar_lea.vmem [#allocation2], 227
    %v2123 = vld [vmem:[%s2122] ss:$8 sm:$0x3]
    %s2124 = scalar_lea.vmem [#allocation2], 243
    %v2125 = vld [vmem:[%s2124] ss:$8 sm:$0x3]
    %v2142 = vcombine.low %v2095, %v2097
    %v2143 = vcombine.low %v2099, %v2101
    %v2144 = vcombine.low %v2103, %v2105
    %v2145 = vcombine.low %v2107, %v2109
    %v2147 = vunpack.c.l.s4 1966171168
    %v2148 = vunpack.c.0.s8 %v2147
    %v2149 = vlaneseq
    %v2150 = vshrl.u32 %v2149, 7
    %v2151 = vsub.s32 %v2148, %v2150
    %v2152 = vrot.slane %v2142, %v2151
    %v2154 = vunpack.c.l.s4 1966171168
    %v2155 = vunpack.c.0.s8 %v2154
    %v2156 = vlaneseq
    %v2157 = vshrl.u32 %v2156, 7
    %v2158 = vsub.s32 %v2155, %v2157
    %v2159 = vrot.slane %v2143, %v2158
    %v2161 = vunpack.c.l.s4 1966171168
    %v2162 = vunpack.c.0.s8 %v2161
    %v2163 = vlaneseq
    %v2164 = vshrl.u32 %v2163, 7
    %v2165 = vsub.s32 %v2162, %v2164
    %v2166 = vrot.slane %v2144, %v2165
    %v2168 = vunpack.c.l.s4 1966171168
    %v2169 = vunpack.c.0.s8 %v2168
    %v2170 = vlaneseq
    %v2171 = vshrl.u32 %v2170, 7
    %v2172 = vsub.s32 %v2169, %v2171
    %v2173 = vrot.slane %v2145, %v2172
    %v2174 = vcombine.low %v2152, %v2159
    %v2175 = vcombine.high %v2152, %v2159
    %v2176 = vcombine.low %v2166, %v2173
    %v2177 = vcombine.high %v2166, %v2173
    %v2179 = vunpack.c.l.s4 1966171168
    %v2180 = vunpack.c.0.s8 %v2179
    %v2181 = vlaneseq
    %v2182 = vshrl.u32 %v2181, 7
    %v2183 = vsub.s32 %v2180, %v2182
    %v2184 = vrot.slane %v2174, %v2183
    %v2186 = vunpack.c.l.s4 1966171168
    %v2187 = vunpack.c.0.s8 %v2186
    %v2188 = vlaneseq
    %v2189 = vshrl.u32 %v2188, 7
    %v2190 = vsub.s32 %v2187, %v2189
    %v2191 = vrot.slane %v2175, %v2190
    %v2193 = vunpack.c.l.s4 1966171168
    %v2194 = vunpack.c.0.s8 %v2193
    %v2195 = vlaneseq
    %v2196 = vshrl.u32 %v2195, 7
    %v2197 = vsub.s32 %v2194, %v2196
    %v2198 = vrot.slane %v2176, %v2197
    %v2200 = vunpack.c.l.s4 1966171168
    %v2201 = vunpack.c.0.s8 %v2200
    %v2202 = vlaneseq
    %v2203 = vshrl.u32 %v2202, 7
    %v2204 = vsub.s32 %v2201, %v2203
    %v2205 = vrot.slane %v2177, %v2204
    %v2206 = vcombine.low %v2184, %v2198
    %v2207 = vcombine.low %v2191, %v2205
    %v2208 = vcombine.low %v2111, %v2113
    %v2209 = vcombine.low %v2115, %v2117
    %v2210 = vcombine.low %v2119, %v2121
    %v2211 = vcombine.low %v2123, %v2125
    %v2213 = vunpack.c.l.s4 1966171168
    %v2214 = vunpack.c.0.s8 %v2213
    %v2215 = vlaneseq
    %v2216 = vshrl.u32 %v2215, 7
    %v2217 = vsub.s32 %v2214, %v2216
    %v2218 = vrot.slane %v2208, %v2217
    %v2220 = vunpack.c.l.s4 1966171168
    %v2221 = vunpack.c.0.s8 %v2220
    %v2222 = vlaneseq
    %v2223 = vshrl.u32 %v2222, 7
    %v2224 = vsub.s32 %v2221, %v2223
    %v2225 = vrot.slane %v2209, %v2224
    %v2227 = vunpack.c.l.s4 1966171168
    %v2228 = vunpack.c.0.s8 %v2227
    %v2229 = vlaneseq
    %v2230 = vshrl.u32 %v2229, 7
    %v2231 = vsub.s32 %v2228, %v2230
    %v2232 = vrot.slane %v2210, %v2231
    %v2234 = vunpack.c.l.s4 1966171168
    %v2235 = vunpack.c.0.s8 %v2234
    %v2236 = vlaneseq
    %v2237 = vshrl.u32 %v2236, 7
    %v2238 = vsub.s32 %v2235, %v2237
    %v2239 = vrot.slane %v2211, %v2238
    %v2240 = vcombine.low %v2218, %v2225
    %v2241 = vcombine.high %v2218, %v2225
    %v2242 = vcombine.low %v2232, %v2239
    %v2243 = vcombine.high %v2232, %v2239
    %v2245 = vunpack.c.l.s4 1966171168
    %v2246 = vunpack.c.0.s8 %v2245
    %v2247 = vlaneseq
    %v2248 = vshrl.u32 %v2247, 7
    %v2249 = vsub.s32 %v2246, %v2248
    %v2250 = vrot.slane %v2240, %v2249
    %v2252 = vunpack.c.l.s4 1966171168
    %v2253 = vunpack.c.0.s8 %v2252
    %v2254 = vlaneseq
    %v2255 = vshrl.u32 %v2254, 7
    %v2256 = vsub.s32 %v2253, %v2255
    %v2257 = vrot.slane %v2241, %v2256
    %v2259 = vunpack.c.l.s4 1966171168
    %v2260 = vunpack.c.0.s8 %v2259
    %v2261 = vlaneseq
    %v2262 = vshrl.u32 %v2261, 7
    %v2263 = vsub.s32 %v2260, %v2262
    %v2264 = vrot.slane %v2242, %v2263
    %v2266 = vunpack.c.l.s4 1966171168
    %v2267 = vunpack.c.0.s8 %v2266
    %v2268 = vlaneseq
    %v2269 = vshrl.u32 %v2268, 7
    %v2270 = vsub.s32 %v2267, %v2269
    %v2271 = vrot.slane %v2243, %v2270
    %v2272 = vcombine.low %v2250, %v2264
    %v2273 = vcombine.low %v2257, %v2271
    %v2278 = vadd.f32 %v2043, %v2206
    %v2279 = vadd.f32 %v2045, %v2207
    %v2280 = vadd.f32 %v2047, %v2272
    %v2281 = vadd.f32 %v2049, %v2273
    %v2282 = vadd.f32 %v2086, %v78
    %v2283 = vadd.f32 %v2088, %v82
    %v2284 = vadd.f32 %v2090, %v78
    %v2285 = vadd.f32 %v2092, %v82
    %v2286 = vxor.u32 %v2278, 2147483648
    %v2287 = vxor.u32 %v2279, 2147483648
    %v2288 = vxor.u32 %v2280, 2147483648
    %v2289 = vxor.u32 %v2281, 2147483648
    %v2290 = vmul.f32 %v2286, 1.442695
    %v2291 = vpow.pop %v2290
    %v2292 = vmul.f32 %v2287, 1.442695
    %v2293 = vpow.pop %v2292
    %v2294 = vmul.f32 %v2288, 1.442695
    %v2295 = vpow.pop %v2294
    %v2296 = vmul.f32 %v2289, 1.442695
    %v2297 = vpow.pop %v2296
    %v2298 = vadd.f32 %v2291, 1.0
    %v2299 = vadd.f32 %v2293, 1.0
    %v2300 = vadd.f32 %v2295, 1.0
    %v2301 = vadd.f32 %v2297, 1.0
    %v2302 = vrcp.pop %v2298
    %v2303 = vmul.f32 1.0, %v2302
    %v2304 = vrcp.pop %v2299
    %v2305 = vmul.f32 1.0, %v2304
    %v2306 = vrcp.pop %v2300
    %v2307 = vmul.f32 1.0, %v2306
    %v2308 = vrcp.pop %v2301
    %v2309 = vmul.f32 1.0, %v2308
    %v2310 = vtanh.pop %v2279
    %v2311 = vtanh.pop %v2281
    %v2312 = vmul.f32 %v2303, %v1923
    %v2313 = vmul.f32 %v2307, %v1924
    %2316 = vrot.lane.b32.xlu0 %v2310, 64
    %v2317 = vpop.permute.xlu0 %2316
    %2318 = vrot.lane.b32.xlu0 %v2311, 64
    %v2319 = vpop.permute.xlu0 %2318
    %v2322 = vmul.f32 %v2303, %v2317
    %v2323 = vmul.f32 %v2307, %v2319
    %2326 = vrot.lane.b32.xlu0 %v2322, 64
    %v2327 = vpop.permute.xlu0 %2326
    %2328 = vrot.lane.b32.xlu0 %v2323, 64
    %v2329 = vpop.permute.xlu0 %2328
    %v2332 = vadd.f32 %v2312, %v2327
    %v2333 = vadd.f32 %v2313, %v2329
    %v2334 = vtanh.pop %v2332
    %v2335 = vtanh.pop %v2333
    %2338 = vrot.lane.b32.xlu0 %v2334, 64
    %v2339 = vpop.permute.xlu0 %2338
    %2340 = vrot.lane.b32.xlu0 %v2335, 64
    %v2341 = vpop.permute.xlu0 %2340
    %v2344 = vmul.f32 %v2305, %v2339
    %v2345 = vmul.f32 %v2309, %v2341
    %v2346 = vxor.u32 %v2282, 2147483648
    %v2347 = vxor.u32 %v2283, 2147483648
    %v2348 = vxor.u32 %v2284, 2147483648
    %v2349 = vxor.u32 %v2285, 2147483648
    %v2350 = vmul.f32 %v2346, 1.442695
    %v2351 = vpow.pop %v2350
    %v2352 = vmul.f32 %v2347, 1.442695
    %v2353 = vpow.pop %v2352
    %v2354 = vmul.f32 %v2348, 1.442695
    %v2355 = vpow.pop %v2354
    %v2356 = vmul.f32 %v2349, 1.442695
    %v2357 = vpow.pop %v2356
    %v2358 = vadd.f32 %v2351, 1.0
    %v2359 = vadd.f32 %v2353, 1.0
    %v2360 = vadd.f32 %v2355, 1.0
    %v2361 = vadd.f32 %v2357, 1.0
    %v2362 = vrcp.pop %v2358
    %v2363 = vmul.f32 1.0, %v2362
    %v2364 = vrcp.pop %v2359
    %v2365 = vmul.f32 1.0, %v2364
    %v2366 = vrcp.pop %v2360
    %v2367 = vmul.f32 1.0, %v2366
    %v2368 = vrcp.pop %v2361
    %v2369 = vmul.f32 1.0, %v2368
    %v2370 = vtanh.pop %v2283
    %v2371 = vtanh.pop %v2285
    %v2372 = vmul.f32 %v2363, %v1983
    %v2373 = vmul.f32 %v2367, %v1984
    %2376 = vrot.lane.b32.xlu0 %v2370, 64
    %v2377 = vpop.permute.xlu0 %2376
    %2378 = vrot.lane.b32.xlu0 %v2371, 64
    %v2379 = vpop.permute.xlu0 %2378
    %v2382 = vmul.f32 %v2363, %v2377
    %v2383 = vmul.f32 %v2367, %v2379
    %2386 = vrot.lane.b32.xlu0 %v2382, 64
    %v2387 = vpop.permute.xlu0 %2386
    %2388 = vrot.lane.b32.xlu0 %v2383, 64
    %v2389 = vpop.permute.xlu0 %2388
    %v2392 = vadd.f32 %v2372, %v2387
    %v2393 = vadd.f32 %v2373, %v2389
    %v2394 = vtanh.pop %v2392
    %v2395 = vtanh.pop %v2393
    %2398 = vrot.lane.b32.xlu0 %v2394, 64
    %v2399 = vpop.permute.xlu0 %2398
    %2400 = vrot.lane.b32.xlu0 %v2395, 64
    %v2401 = vpop.permute.xlu0 %2400
    %v2404 = vmul.f32 %v2365, %v2399
    %v2405 = vmul.f32 %v2369, %v2401
    %2408 = vrot.lane.b32.xlu0 %v2404, 64
    %v2409 = vpop.permute.xlu0 %2408
    %2410 = vrot.lane.b32.xlu0 %v2405, 64
    %v2411 = vpop.permute.xlu0 %2410
    %v2414 = vsel %vm910, %v2344, %v2409
    %v2415 = vsel %vm910, %v2345, %v2411
    %v2416 = vpack.c.bf16 %v2415, %v2414
    %2417 = vmatprep.subr.bf16.mxu0 %v1011
    %2418 = vmatpush1.bf16.msra.mxu0 %v1010
    %2419 = vmatprep.subr.bf16.mxu0 %v1015
    %2420 = vmatpush1.bf16.msra.mxu0 %v1014
    %2421 = vmatprep.subr.bf16.mxu0 %v1019
    %2422 = vmatpush1.bf16.msra.mxu0 %v1018
    %2423 = vmatprep.subr.bf16.mxu0 %v1023
    %2424 = vmatpush1.bf16.msra.mxu0 %v1022
    %2425 = vmatprep.subr.bf16.mxu0 %v1027
    %2426 = vmatpush1.bf16.msra.mxu0 %v1026
    %2427 = vmatprep.subr.bf16.mxu0 %v1031
    %2428 = vmatpush1.bf16.msra.mxu0 %v1030
    %2429 = vmatprep.subr.bf16.mxu0 %v1035
    %2430 = vmatpush1.bf16.msra.mxu0 %v1034
    %2431 = vmatprep.subr.bf16.mxu0 %v1039
    %2432 = vmatpush1.bf16.msra.mxu0 %v1038
    %2433 = vmatprep.subr.bf16.mxu0 0
    %2434 = vmatpush1.bf16.msra.mxu0 0
    %2435 = vmatprep.subr.bf16.mxu0 0
    %2436 = vmatpush1.bf16.msra.mxu0 0
    %2437 = vmatprep.subr.bf16.mxu0 0
    %2438 = vmatpush1.bf16.msra.mxu0 0
    %2439 = vmatprep.subr.bf16.mxu0 0
    %2440 = vmatpush1.bf16.msra.mxu0 0
    %2441 = vmatprep.subr.bf16.mxu0 0
    %2442 = vmatpush1.bf16.msra.mxu0 0
    %2443 = vmatprep.subr.bf16.mxu0 0
    %2444 = vmatpush1.bf16.msra.mxu0 0
    %2445 = vmatprep.subr.bf16.mxu0 0
    %2446 = vmatpush1.bf16.msra.mxu0 0
    %2447 = vmatprep.subr.bf16.mxu0 0
    %2448 = vmatpush1.bf16.msra.mxu0 0
    %2449 = vmatprep.mubr.bf16.mxu0 0
    %2450 = vmatmul.mubr.bf16.gmra.mrb[0].mxu0 %v2416
    %v2451 = vpop.f32.mrb[0].mxu0
    %v2452 = vadd.f32 0.0, %v2451
    %v2453 = vpop.f32.mrb[0].mxu0
    %v2454 = vadd.f32 0.0, %v2453
    %v2455 = vpop.f32.mrb[0].mxu0
    %v2456 = vadd.f32 0.0, %v2455
    %v2457 = vpop.f32.mrb[0].mxu0
    %v2458 = vadd.f32 0.0, %v2457
    %2459 = vdwg.mxu0
    %2460 = vmatprep.subr.bf16.mxu0 %v1013
    %2461 = vmatpush1.bf16.msra.mxu0 %v1012
    %2462 = vmatprep.subr.bf16.mxu0 %v1017
    %2463 = vmatpush1.bf16.msra.mxu0 %v1016
    %2464 = vmatprep.subr.bf16.mxu0 %v1021
    %2465 = vmatpush1.bf16.msra.mxu0 %v1020
    %2466 = vmatprep.subr.bf16.mxu0 %v1025
    %2467 = vmatpush1.bf16.msra.mxu0 %v1024
    %2468 = vmatprep.subr.bf16.mxu0 %v1029
    %2469 = vmatpush1.bf16.msra.mxu0 %v1028
    %2470 = vmatprep.subr.bf16.mxu0 %v1033
    %2471 = vmatpush1.bf16.msra.mxu0 %v1032
    %2472 = vmatprep.subr.bf16.mxu0 %v1037
    %2473 = vmatpush1.bf16.msra.mxu0 %v1036
    %2474 = vmatprep.subr.bf16.mxu0 %v1041
    %2475 = vmatpush1.bf16.msra.mxu0 %v1040
    %2476 = vmatprep.subr.bf16.mxu0 0
    %2477 = vmatpush1.bf16.msra.mxu0 0
    %2478 = vmatprep.subr.bf16.mxu0 0
    %2479 = vmatpush1.bf16.msra.mxu0 0
    %2480 = vmatprep.subr.bf16.mxu0 0
    %2481 = vmatpush1.bf16.msra.mxu0 0
    %2482 = vmatprep.subr.bf16.mxu0 0
    %2483 = vmatpush1.bf16.msra.mxu0 0
    %2484 = vmatprep.subr.bf16.mxu0 0
    %2485 = vmatpush1.bf16.msra.mxu0 0
    %2486 = vmatprep.subr.bf16.mxu0 0
    %2487 = vmatpush1.bf16.msra.mxu0 0
    %2488 = vmatprep.subr.bf16.mxu0 0
    %2489 = vmatpush1.bf16.msra.mxu0 0
    %2490 = vmatprep.subr.bf16.mxu0 0
    %2491 = vmatpush1.bf16.msra.mxu0 0
    %2492 = vmatprep.mubr.bf16.mxu0 0
    %2493 = vmatmul.mubr.bf16.gmra.mrb[0].mxu0 %v2416
    %v2494 = vpop.f32.mrb[0].mxu0
    %v2495 = vadd.f32 0.0, %v2494
    %v2496 = vpop.f32.mrb[0].mxu0
    %v2497 = vadd.f32 0.0, %v2496
    %v2498 = vpop.f32.mrb[0].mxu0
    %v2499 = vadd.f32 0.0, %v2498
    %v2500 = vpop.f32.mrb[0].mxu0
    %v2501 = vadd.f32 0.0, %v2500
    %2502 = vdwg.mxu0
    %s2503 = scalar_lea.vmem [#allocation2], 4
    %v2504 = vld [vmem:[%s2503] ss:$8 sm:$0x3]
    %s2505 = scalar_lea.vmem [#allocation2], 20
    %v2506 = vld [vmem:[%s2505] ss:$8 sm:$0x3]
    %s2507 = scalar_lea.vmem [#allocation2], 36
    %v2508 = vld [vmem:[%s2507] ss:$8 sm:$0x3]
    %s2509 = scalar_lea.vmem [#allocation2], 52
    %v2510 = vld [vmem:[%s2509] ss:$8 sm:$0x3]
    %s2511 = scalar_lea.vmem [#allocation2], 68
    %v2512 = vld [vmem:[%s2511] ss:$8 sm:$0x3]
    %s2513 = scalar_lea.vmem [#allocation2], 84
    %v2514 = vld [vmem:[%s2513] ss:$8 sm:$0x3]
    %s2515 = scalar_lea.vmem [#allocation2], 100
    %v2516 = vld [vmem:[%s2515] ss:$8 sm:$0x3]
    %s2517 = scalar_lea.vmem [#allocation2], 116
    %v2518 = vld [vmem:[%s2517] ss:$8 sm:$0x3]
    %s2519 = scalar_lea.vmem [#allocation2], 132
    %v2520 = vld [vmem:[%s2519] ss:$8 sm:$0x3]
    %s2521 = scalar_lea.vmem [#allocation2], 148
    %v2522 = vld [vmem:[%s2521] ss:$8 sm:$0x3]
    %s2523 = scalar_lea.vmem [#allocation2], 164
    %v2524 = vld [vmem:[%s2523] ss:$8 sm:$0x3]
    %s2525 = scalar_lea.vmem [#allocation2], 180
    %v2526 = vld [vmem:[%s2525] ss:$8 sm:$0x3]
    %s2527 = scalar_lea.vmem [#allocation2], 196
    %v2528 = vld [vmem:[%s2527] ss:$8 sm:$0x3]
    %s2529 = scalar_lea.vmem [#allocation2], 212
    %v2530 = vld [vmem:[%s2529] ss:$8 sm:$0x3]
    %s2531 = scalar_lea.vmem [#allocation2], 228
    %v2532 = vld [vmem:[%s2531] ss:$8 sm:$0x3]
    %s2533 = scalar_lea.vmem [#allocation2], 244
    %v2534 = vld [vmem:[%s2533] ss:$8 sm:$0x3]
    %v2551 = vcombine.low %v2504, %v2506
    %v2552 = vcombine.low %v2508, %v2510
    %v2553 = vcombine.low %v2512, %v2514
    %v2554 = vcombine.low %v2516, %v2518
    %v2556 = vunpack.c.l.s4 1966171168
    %v2557 = vunpack.c.0.s8 %v2556
    %v2558 = vlaneseq
    %v2559 = vshrl.u32 %v2558, 7
    %v2560 = vsub.s32 %v2557, %v2559
    %v2561 = vrot.slane %v2551, %v2560
    %v2563 = vunpack.c.l.s4 1966171168
    %v2564 = vunpack.c.0.s8 %v2563
    %v2565 = vlaneseq
    %v2566 = vshrl.u32 %v2565, 7
    %v2567 = vsub.s32 %v2564, %v2566
    %v2568 = vrot.slane %v2552, %v2567
    %v2570 = vunpack.c.l.s4 1966171168
    %v2571 = vunpack.c.0.s8 %v2570
    %v2572 = vlaneseq
    %v2573 = vshrl.u32 %v2572, 7
    %v2574 = vsub.s32 %v2571, %v2573
    %v2575 = vrot.slane %v2553, %v2574
    %v2577 = vunpack.c.l.s4 1966171168
    %v2578 = vunpack.c.0.s8 %v2577
    %v2579 = vlaneseq
    %v2580 = vshrl.u32 %v2579, 7
    %v2581 = vsub.s32 %v2578, %v2580
    %v2582 = vrot.slane %v2554, %v2581
    %v2583 = vcombine.low %v2561, %v2568
    %v2584 = vcombine.high %v2561, %v2568
    %v2585 = vcombine.low %v2575, %v2582
    %v2586 = vcombine.high %v2575, %v2582
    %v2588 = vunpack.c.l.s4 1966171168
    %v2589 = vunpack.c.0.s8 %v2588
    %v2590 = vlaneseq
    %v2591 = vshrl.u32 %v2590, 7
    %v2592 = vsub.s32 %v2589, %v2591
    %v2593 = vrot.slane %v2583, %v2592
    %v2595 = vunpack.c.l.s4 1966171168
    %v2596 = vunpack.c.0.s8 %v2595
    %v2597 = vlaneseq
    %v2598 = vshrl.u32 %v2597, 7
    %v2599 = vsub.s32 %v2596, %v2598
    %v2600 = vrot.slane %v2584, %v2599
    %v2602 = vunpack.c.l.s4 1966171168
    %v2603 = vunpack.c.0.s8 %v2602
    %v2604 = vlaneseq
    %v2605 = vshrl.u32 %v2604, 7
    %v2606 = vsub.s32 %v2603, %v2605
    %v2607 = vrot.slane %v2585, %v2606
    %v2609 = vunpack.c.l.s4 1966171168
    %v2610 = vunpack.c.0.s8 %v2609
    %v2611 = vlaneseq
    %v2612 = vshrl.u32 %v2611, 7
    %v2613 = vsub.s32 %v2610, %v2612
    %v2614 = vrot.slane %v2586, %v2613
    %v2615 = vcombine.low %v2593, %v2607
    %v2616 = vcombine.low %v2600, %v2614
    %v2617 = vcombine.low %v2520, %v2522
    %v2618 = vcombine.low %v2524, %v2526
    %v2619 = vcombine.low %v2528, %v2530
    %v2620 = vcombine.low %v2532, %v2534
    %v2622 = vunpack.c.l.s4 1966171168
    %v2623 = vunpack.c.0.s8 %v2622
    %v2624 = vlaneseq
    %v2625 = vshrl.u32 %v2624, 7
    %v2626 = vsub.s32 %v2623, %v2625
    %v2627 = vrot.slane %v2617, %v2626
    %v2629 = vunpack.c.l.s4 1966171168
    %v2630 = vunpack.c.0.s8 %v2629
    %v2631 = vlaneseq
    %v2632 = vshrl.u32 %v2631, 7
    %v2633 = vsub.s32 %v2630, %v2632
    %v2634 = vrot.slane %v2618, %v2633
    %v2636 = vunpack.c.l.s4 1966171168
    %v2637 = vunpack.c.0.s8 %v2636
    %v2638 = vlaneseq
    %v2639 = vshrl.u32 %v2638, 7
    %v2640 = vsub.s32 %v2637, %v2639
    %v2641 = vrot.slane %v2619, %v2640
    %v2643 = vunpack.c.l.s4 1966171168
    %v2644 = vunpack.c.0.s8 %v2643
    %v2645 = vlaneseq
    %v2646 = vshrl.u32 %v2645, 7
    %v2647 = vsub.s32 %v2644, %v2646
    %v2648 = vrot.slane %v2620, %v2647
    %v2649 = vcombine.low %v2627, %v2634
    %v2650 = vcombine.high %v2627, %v2634
    %v2651 = vcombine.low %v2641, %v2648
    %v2652 = vcombine.high %v2641, %v2648
    %v2654 = vunpack.c.l.s4 1966171168
    %v2655 = vunpack.c.0.s8 %v2654
    %v2656 = vlaneseq
    %v2657 = vshrl.u32 %v2656, 7
    %v2658 = vsub.s32 %v2655, %v2657
    %v2659 = vrot.slane %v2649, %v2658
    %v2661 = vunpack.c.l.s4 1966171168
    %v2662 = vunpack.c.0.s8 %v2661
    %v2663 = vlaneseq
    %v2664 = vshrl.u32 %v2663, 7
    %v2665 = vsub.s32 %v2662, %v2664
    %v2666 = vrot.slane %v2650, %v2665
    %v2668 = vunpack.c.l.s4 1966171168
    %v2669 = vunpack.c.0.s8 %v2668
    %v2670 = vlaneseq
    %v2671 = vshrl.u32 %v2670, 7
    %v2672 = vsub.s32 %v2669, %v2671
    %v2673 = vrot.slane %v2651, %v2672
    %v2675 = vunpack.c.l.s4 1966171168
    %v2676 = vunpack.c.0.s8 %v2675
    %v2677 = vlaneseq
    %v2678 = vshrl.u32 %v2677, 7
    %v2679 = vsub.s32 %v2676, %v2678
    %v2680 = vrot.slane %v2652, %v2679
    %v2681 = vcombine.low %v2659, %v2673
    %v2682 = vcombine.low %v2666, %v2680
    %v2687 = vadd.f32 %v2452, %v2615
    %v2688 = vadd.f32 %v2454, %v2616
    %v2689 = vadd.f32 %v2456, %v2681
    %v2690 = vadd.f32 %v2458, %v2682
    %v2691 = vadd.f32 %v2495, %v78
    %v2692 = vadd.f32 %v2497, %v82
    %v2693 = vadd.f32 %v2499, %v78
    %v2694 = vadd.f32 %v2501, %v82
    %v2695 = vxor.u32 %v2687, 2147483648
    %v2696 = vxor.u32 %v2688, 2147483648
    %v2697 = vxor.u32 %v2689, 2147483648
    %v2698 = vxor.u32 %v2690, 2147483648
    %v2699 = vmul.f32 %v2695, 1.442695
    %v2700 = vpow.pop %v2699
    %v2701 = vmul.f32 %v2696, 1.442695
    %v2702 = vpow.pop %v2701
    %v2703 = vmul.f32 %v2697, 1.442695
    %v2704 = vpow.pop %v2703
    %v2705 = vmul.f32 %v2698, 1.442695
    %v2706 = vpow.pop %v2705
    %v2707 = vadd.f32 %v2700, 1.0
    %v2708 = vadd.f32 %v2702, 1.0
    %v2709 = vadd.f32 %v2704, 1.0
    %v2710 = vadd.f32 %v2706, 1.0
    %v2711 = vrcp.pop %v2707
    %v2712 = vmul.f32 1.0, %v2711
    %v2713 = vrcp.pop %v2708
    %v2714 = vmul.f32 1.0, %v2713
    %v2715 = vrcp.pop %v2709
    %v2716 = vmul.f32 1.0, %v2715
    %v2717 = vrcp.pop %v2710
    %v2718 = vmul.f32 1.0, %v2717
    %v2719 = vtanh.pop %v2688
    %v2720 = vtanh.pop %v2690
    %v2721 = vmul.f32 %v2712, %v2332
    %v2722 = vmul.f32 %v2716, %v2333
    %2725 = vrot.lane.b32.xlu0 %v2719, 64
    %v2726 = vpop.permute.xlu0 %2725
    %2727 = vrot.lane.b32.xlu0 %v2720, 64
    %v2728 = vpop.permute.xlu0 %2727
    %v2731 = vmul.f32 %v2712, %v2726
    %v2732 = vmul.f32 %v2716, %v2728
    %2735 = vrot.lane.b32.xlu0 %v2731, 64
    %v2736 = vpop.permute.xlu0 %2735
    %2737 = vrot.lane.b32.xlu0 %v2732, 64
    %v2738 = vpop.permute.xlu0 %2737
    %v2741 = vadd.f32 %v2721, %v2736
    %v2742 = vadd.f32 %v2722, %v2738
    %v2743 = vtanh.pop %v2741
    %v2744 = vtanh.pop %v2742
    %2747 = vrot.lane.b32.xlu0 %v2743, 64
    %v2748 = vpop.permute.xlu0 %2747
    %2749 = vrot.lane.b32.xlu0 %v2744, 64
    %v2750 = vpop.permute.xlu0 %2749
    %v2753 = vmul.f32 %v2714, %v2748
    %v2754 = vmul.f32 %v2718, %v2750
    %v2755 = vxor.u32 %v2691, 2147483648
    %v2756 = vxor.u32 %v2692, 2147483648
    %v2757 = vxor.u32 %v2693, 2147483648
    %v2758 = vxor.u32 %v2694, 2147483648
    %v2759 = vmul.f32 %v2755, 1.442695
    %v2760 = vpow.pop %v2759
    %v2761 = vmul.f32 %v2756, 1.442695
    %v2762 = vpow.pop %v2761
    %v2763 = vmul.f32 %v2757, 1.442695
    %v2764 = vpow.pop %v2763
    %v2765 = vmul.f32 %v2758, 1.442695
    %v2766 = vpow.pop %v2765
    %v2767 = vadd.f32 %v2760, 1.0
    %v2768 = vadd.f32 %v2762, 1.0
    %v2769 = vadd.f32 %v2764, 1.0
    %v2770 = vadd.f32 %v2766, 1.0
    %v2771 = vrcp.pop %v2767
    %v2772 = vmul.f32 1.0, %v2771
    %v2773 = vrcp.pop %v2768
    %v2774 = vmul.f32 1.0, %v2773
    %v2775 = vrcp.pop %v2769
    %v2776 = vmul.f32 1.0, %v2775
    %v2777 = vrcp.pop %v2770
    %v2778 = vmul.f32 1.0, %v2777
    %v2779 = vtanh.pop %v2692
    %v2780 = vtanh.pop %v2694
    %v2781 = vmul.f32 %v2772, %v2392
    %v2782 = vmul.f32 %v2776, %v2393
    %2785 = vrot.lane.b32.xlu0 %v2779, 64
    %v2786 = vpop.permute.xlu0 %2785
    %2787 = vrot.lane.b32.xlu0 %v2780, 64
    %v2788 = vpop.permute.xlu0 %2787
    %v2791 = vmul.f32 %v2772, %v2786
    %v2792 = vmul.f32 %v2776, %v2788
    %2795 = vrot.lane.b32.xlu0 %v2791, 64
    %v2796 = vpop.permute.xlu0 %2795
    %2797 = vrot.lane.b32.xlu0 %v2792, 64
    %v2798 = vpop.permute.xlu0 %2797
    %v2801 = vadd.f32 %v2781, %v2796
    %v2802 = vadd.f32 %v2782, %v2798
    %v2803 = vtanh.pop %v2801
    %v2804 = vtanh.pop %v2802
    %2807 = vrot.lane.b32.xlu0 %v2803, 64
    %v2808 = vpop.permute.xlu0 %2807
    %2809 = vrot.lane.b32.xlu0 %v2804, 64
    %v2810 = vpop.permute.xlu0 %2809
    %v2813 = vmul.f32 %v2774, %v2808
    %v2814 = vmul.f32 %v2778, %v2810
    %2817 = vrot.lane.b32.xlu0 %v2813, 64
    %v2818 = vpop.permute.xlu0 %2817
    %2819 = vrot.lane.b32.xlu0 %v2814, 64
    %v2820 = vpop.permute.xlu0 %2819
    %v2823 = vsel %vm910, %v2753, %v2818
    %v2824 = vsel %vm910, %v2754, %v2820
    %v2825 = vpack.c.bf16 %v2824, %v2823
    %2826 = vmatprep.subr.bf16.mxu0 %v1011
    %2827 = vmatpush1.bf16.msra.mxu0 %v1010
    %2828 = vmatprep.subr.bf16.mxu0 %v1015
    %2829 = vmatpush1.bf16.msra.mxu0 %v1014
    %2830 = vmatprep.subr.bf16.mxu0 %v1019
    %2831 = vmatpush1.bf16.msra.mxu0 %v1018
    %2832 = vmatprep.subr.bf16.mxu0 %v1023
    %2833 = vmatpush1.bf16.msra.mxu0 %v1022
    %2834 = vmatprep.subr.bf16.mxu0 %v1027
    %2835 = vmatpush1.bf16.msra.mxu0 %v1026
    %2836 = vmatprep.subr.bf16.mxu0 %v1031
    %2837 = vmatpush1.bf16.msra.mxu0 %v1030
    %2838 = vmatprep.subr.bf16.mxu0 %v1035
    %2839 = vmatpush1.bf16.msra.mxu0 %v1034
    %2840 = vmatprep.subr.bf16.mxu0 %v1039
    %2841 = vmatpush1.bf16.msra.mxu0 %v1038
    %2842 = vmatprep.subr.bf16.mxu0 0
    %2843 = vmatpush1.bf16.msra.mxu0 0
    %2844 = vmatprep.subr.bf16.mxu0 0
    %2845 = vmatpush1.bf16.msra.mxu0 0
    %2846 = vmatprep.subr.bf16.mxu0 0
    %2847 = vmatpush1.bf16.msra.mxu0 0
    %2848 = vmatprep.subr.bf16.mxu0 0
    %2849 = vmatpush1.bf16.msra.mxu0 0
    %2850 = vmatprep.subr.bf16.mxu0 0
    %2851 = vmatpush1.bf16.msra.mxu0 0
    %2852 = vmatprep.subr.bf16.mxu0 0
    %2853 = vmatpush1.bf16.msra.mxu0 0
    %2854 = vmatprep.subr.bf16.mxu0 0
    %2855 = vmatpush1.bf16.msra.mxu0 0
    %2856 = vmatprep.subr.bf16.mxu0 0
    %2857 = vmatpush1.bf16.msra.mxu0 0
    %2858 = vmatprep.mubr.bf16.mxu0 0
    %2859 = vmatmul.mubr.bf16.gmra.mrb[0].mxu0 %v2825
    %v2860 = vpop.f32.mrb[0].mxu0
    %v2861 = vadd.f32 0.0, %v2860
    %v2862 = vpop.f32.mrb[0].mxu0
    %v2863 = vadd.f32 0.0, %v2862
    %v2864 = vpop.f32.mrb[0].mxu0
    %v2865 = vadd.f32 0.0, %v2864
    %v2866 = vpop.f32.mrb[0].mxu0
    %v2867 = vadd.f32 0.0, %v2866
    %2868 = vdwg.mxu0
    %2869 = vmatprep.subr.bf16.mxu0 %v1013
    %2870 = vmatpush1.bf16.msra.mxu0 %v1012
    %2871 = vmatprep.subr.bf16.mxu0 %v1017
    %2872 = vmatpush1.bf16.msra.mxu0 %v1016
    %2873 = vmatprep.subr.bf16.mxu0 %v1021
    %2874 = vmatpush1.bf16.msra.mxu0 %v1020
    %2875 = vmatprep.subr.bf16.mxu0 %v1025
    %2876 = vmatpush1.bf16.msra.mxu0 %v1024
    %2877 = vmatprep.subr.bf16.mxu0 %v1029
    %2878 = vmatpush1.bf16.msra.mxu0 %v1028
    %2879 = vmatprep.subr.bf16.mxu0 %v1033
    %2880 = vmatpush1.bf16.msra.mxu0 %v1032
    %2881 = vmatprep.subr.bf16.mxu0 %v1037
    %2882 = vmatpush1.bf16.msra.mxu0 %v1036
    %2883 = vmatprep.subr.bf16.mxu0 %v1041
    %2884 = vmatpush1.bf16.msra.mxu0 %v1040
    %2885 = vmatprep.subr.bf16.mxu0 0
    %2886 = vmatpush1.bf16.msra.mxu0 0
    %2887 = vmatprep.subr.bf16.mxu0 0
    %2888 = vmatpush1.bf16.msra.mxu0 0
    %2889 = vmatprep.subr.bf16.mxu0 0
    %2890 = vmatpush1.bf16.msra.mxu0 0
    %2891 = vmatprep.subr.bf16.mxu0 0
    %2892 = vmatpush1.bf16.msra.mxu0 0
    %2893 = vmatprep.subr.bf16.mxu0 0
    %2894 = vmatpush1.bf16.msra.mxu0 0
    %2895 = vmatprep.subr.bf16.mxu0 0
    %2896 = vmatpush1.bf16.msra.mxu0 0
    %2897 = vmatprep.subr.bf16.mxu0 0
    %2898 = vmatpush1.bf16.msra.mxu0 0
    %2899 = vmatprep.subr.bf16.mxu0 0
    %2900 = vmatpush1.bf16.msra.mxu0 0
    %2901 = vmatprep.mubr.bf16.mxu0 0
    %2902 = vmatmul.mubr.bf16.gmra.mrb[0].mxu0 %v2825
    %v2903 = vpop.f32.mrb[0].mxu0
    %v2904 = vadd.f32 0.0, %v2903
    %v2905 = vpop.f32.mrb[0].mxu0
    %v2906 = vadd.f32 0.0, %v2905
    %v2907 = vpop.f32.mrb[0].mxu0
    %v2908 = vadd.f32 0.0, %v2907
    %v2909 = vpop.f32.mrb[0].mxu0
    %v2910 = vadd.f32 0.0, %v2909
    %2911 = vdwg.mxu0
    %s2912 = scalar_lea.vmem [#allocation2], 5
    %v2913 = vld [vmem:[%s2912] ss:$8 sm:$0x3]
    %s2914 = scalar_lea.vmem [#allocation2], 21
    %v2915 = vld [vmem:[%s2914] ss:$8 sm:$0x3]
    %s2916 = scalar_lea.vmem [#allocation2], 37
    %v2917 = vld [vmem:[%s2916] ss:$8 sm:$0x3]
    %s2918 = scalar_lea.vmem [#allocation2], 53
    %v2919 = vld [vmem:[%s2918] ss:$8 sm:$0x3]
    %s2920 = scalar_lea.vmem [#allocation2], 69
    %v2921 = vld [vmem:[%s2920] ss:$8 sm:$0x3]
    %s2922 = scalar_lea.vmem [#allocation2], 85
    %v2923 = vld [vmem:[%s2922] ss:$8 sm:$0x3]
    %s2924 = scalar_lea.vmem [#allocation2], 101
    %v2925 = vld [vmem:[%s2924] ss:$8 sm:$0x3]
    %s2926 = scalar_lea.vmem [#allocation2], 117
    %v2927 = vld [vmem:[%s2926] ss:$8 sm:$0x3]
    %s2928 = scalar_lea.vmem [#allocation2], 133
    %v2929 = vld [vmem:[%s2928] ss:$8 sm:$0x3]
    %s2930 = scalar_lea.vmem [#allocation2], 149
    %v2931 = vld [vmem:[%s2930] ss:$8 sm:$0x3]
    %s2932 = scalar_lea.vmem [#allocation2], 165
    %v2933 = vld [vmem:[%s2932] ss:$8 sm:$0x3]
    %s2934 = scalar_lea.vmem [#allocation2], 181
    %v2935 = vld [vmem:[%s2934] ss:$8 sm:$0x3]
    %s2936 = scalar_lea.vmem [#allocation2], 197
    %v2937 = vld [vmem:[%s2936] ss:$8 sm:$0x3]
    %s2938 = scalar_lea.vmem [#allocation2], 213
    %v2939 = vld [vmem:[%s2938] ss:$8 sm:$0x3]
    %s2940 = scalar_lea.vmem [#allocation2], 229
    %v2941 = vld [vmem:[%s2940] ss:$8 sm:$0x3]
    %s2942 = scalar_lea.vmem [#allocation2], 245
    %v2943 = vld [vmem:[%s2942] ss:$8 sm:$0x3]
    %v2960 = vcombine.low %v2913, %v2915
    %v2961 = vcombine.low %v2917, %v2919
    %v2962 = vcombine.low %v2921, %v2923
    %v2963 = vcombine.low %v2925, %v2927
    %v2965 = vunpack.c.l.s4 1966171168
    %v2966 = vunpack.c.0.s8 %v2965
    %v2967 = vlaneseq
    %v2968 = vshrl.u32 %v2967, 7
    %v2969 = vsub.s32 %v2966, %v2968
    %v2970 = vrot.slane %v2960, %v2969
    %v2972 = vunpack.c.l.s4 1966171168
    %v2973 = vunpack.c.0.s8 %v2972
    %v2974 = vlaneseq
    %v2975 = vshrl.u32 %v2974, 7
    %v2976 = vsub.s32 %v2973, %v2975
    %v2977 = vrot.slane %v2961, %v2976
    %v2979 = vunpack.c.l.s4 1966171168
    %v2980 = vunpack.c.0.s8 %v2979
    %v2981 = vlaneseq
    %v2982 = vshrl.u32 %v2981, 7
    %v2983 = vsub.s32 %v2980, %v2982
    %v2984 = vrot.slane %v2962, %v2983
    %v2986 = vunpack.c.l.s4 1966171168
    %v2987 = vunpack.c.0.s8 %v2986
    %v2988 = vlaneseq
    %v2989 = vshrl.u32 %v2988, 7
    %v2990 = vsub.s32 %v2987, %v2989
    %v2991 = vrot.slane %v2963, %v2990
    %v2992 = vcombine.low %v2970, %v2977
    %v2993 = vcombine.high %v2970, %v2977
    %v2994 = vcombine.low %v2984, %v2991
    %v2995 = vcombine.high %v2984, %v2991
    %v2997 = vunpack.c.l.s4 1966171168
    %v2998 = vunpack.c.0.s8 %v2997
    %v2999 = vlaneseq
    %v3000 = vshrl.u32 %v2999, 7
    %v3001 = vsub.s32 %v2998, %v3000
    %v3002 = vrot.slane %v2992, %v3001
    %v3004 = vunpack.c.l.s4 1966171168
    %v3005 = vunpack.c.0.s8 %v3004
    %v3006 = vlaneseq
    %v3007 = vshrl.u32 %v3006, 7
    %v3008 = vsub.s32 %v3005, %v3007
    %v3009 = vrot.slane %v2993, %v3008
    %v3011 = vunpack.c.l.s4 1966171168
    %v3012 = vunpack.c.0.s8 %v3011
    %v3013 = vlaneseq
    %v3014 = vshrl.u32 %v3013, 7
    %v3015 = vsub.s32 %v3012, %v3014
    %v3016 = vrot.slane %v2994, %v3015
    %v3018 = vunpack.c.l.s4 1966171168
    %v3019 = vunpack.c.0.s8 %v3018
    %v3020 = vlaneseq
    %v3021 = vshrl.u32 %v3020, 7
    %v3022 = vsub.s32 %v3019, %v3021
    %v3023 = vrot.slane %v2995, %v3022
    %v3024 = vcombine.low %v3002, %v3016
    %v3025 = vcombine.low %v3009, %v3023
    %v3026 = vcombine.low %v2929, %v2931
    %v3027 = vcombine.low %v2933, %v2935
    %v3028 = vcombine.low %v2937, %v2939
    %v3029 = vcombine.low %v2941, %v2943
    %v3031 = vunpack.c.l.s4 1966171168
    %v3032 = vunpack.c.0.s8 %v3031
    %v3033 = vlaneseq
    %v3034 = vshrl.u32 %v3033, 7
    %v3035 = vsub.s32 %v3032, %v3034
    %v3036 = vrot.slane %v3026, %v3035
    %v3038 = vunpack.c.l.s4 1966171168
    %v3039 = vunpack.c.0.s8 %v3038
    %v3040 = vlaneseq
    %v3041 = vshrl.u32 %v3040, 7
    %v3042 = vsub.s32 %v3039, %v3041
    %v3043 = vrot.slane %v3027, %v3042
    %v3045 = vunpack.c.l.s4 1966171168
    %v3046 = vunpack.c.0.s8 %v3045
    %v3047 = vlaneseq
    %v3048 = vshrl.u32 %v3047, 7
    %v3049 = vsub.s32 %v3046, %v3048
    %v3050 = vrot.slane %v3028, %v3049
    %v3052 = vunpack.c.l.s4 1966171168
    %v3053 = vunpack.c.0.s8 %v3052
    %v3054 = vlaneseq
    %v3055 = vshrl.u32 %v3054, 7
    %v3056 = vsub.s32 %v3053, %v3055
    %v3057 = vrot.slane %v3029, %v3056
    %v3058 = vcombine.low %v3036, %v3043
    %v3059 = vcombine.high %v3036, %v3043
    %v3060 = vcombine.low %v3050, %v3057
    %v3061 = vcombine.high %v3050, %v3057
    %v3063 = vunpack.c.l.s4 1966171168
    %v3064 = vunpack.c.0.s8 %v3063
    %v3065 = vlaneseq
    %v3066 = vshrl.u32 %v3065, 7
    %v3067 = vsub.s32 %v3064, %v3066
    %v3068 = vrot.slane %v3058, %v3067
    %v3070 = vunpack.c.l.s4 1966171168
    %v3071 = vunpack.c.0.s8 %v3070
    %v3072 = vlaneseq
    %v3073 = vshrl.u32 %v3072, 7
    %v3074 = vsub.s32 %v3071, %v3073
    %v3075 = vrot.slane %v3059, %v3074
    %v3077 = vunpack.c.l.s4 1966171168
    %v3078 = vunpack.c.0.s8 %v3077
    %v3079 = vlaneseq
    %v3080 = vshrl.u32 %v3079, 7
    %v3081 = vsub.s32 %v3078, %v3080
    %v3082 = vrot.slane %v3060, %v3081
    %v3084 = vunpack.c.l.s4 1966171168
    %v3085 = vunpack.c.0.s8 %v3084
    %v3086 = vlaneseq
    %v3087 = vshrl.u32 %v3086, 7
    %v3088 = vsub.s32 %v3085, %v3087
    %v3089 = vrot.slane %v3061, %v3088
    %v3090 = vcombine.low %v3068, %v3082
    %v3091 = vcombine.low %v3075, %v3089
    %v3096 = vadd.f32 %v2861, %v3024
    %v3097 = vadd.f32 %v2863, %v3025
    %v3098 = vadd.f32 %v2865, %v3090
    %v3099 = vadd.f32 %v2867, %v3091
    %v3100 = vadd.f32 %v2904, %v78
    %v3101 = vadd.f32 %v2906, %v82
    %v3102 = vadd.f32 %v2908, %v78
    %v3103 = vadd.f32 %v2910, %v82
    %v3104 = vxor.u32 %v3096, 2147483648
    %v3105 = vxor.u32 %v3097, 2147483648
    %v3106 = vxor.u32 %v3098, 2147483648
    %v3107 = vxor.u32 %v3099, 2147483648
    %v3108 = vmul.f32 %v3104, 1.442695
    %v3109 = vpow.pop %v3108
    %v3110 = vmul.f32 %v3105, 1.442695
    %v3111 = vpow.pop %v3110
    %v3112 = vmul.f32 %v3106, 1.442695
    %v3113 = vpow.pop %v3112
    %v3114 = vmul.f32 %v3107, 1.442695
    %v3115 = vpow.pop %v3114
    %v3116 = vadd.f32 %v3109, 1.0
    %v3117 = vadd.f32 %v3111, 1.0
    %v3118 = vadd.f32 %v3113, 1.0
    %v3119 = vadd.f32 %v3115, 1.0
    %v3120 = vrcp.pop %v3116
    %v3121 = vmul.f32 1.0, %v3120
    %v3122 = vrcp.pop %v3117
    %v3123 = vmul.f32 1.0, %v3122
    %v3124 = vrcp.pop %v3118
    %v3125 = vmul.f32 1.0, %v3124
    %v3126 = vrcp.pop %v3119
    %v3127 = vmul.f32 1.0, %v3126
    %v3128 = vtanh.pop %v3097
    %v3129 = vtanh.pop %v3099
    %v3130 = vmul.f32 %v3121, %v2741
    %v3131 = vmul.f32 %v3125, %v2742
    %3134 = vrot.lane.b32.xlu0 %v3128, 64
    %v3135 = vpop.permute.xlu0 %3134
    %3136 = vrot.lane.b32.xlu0 %v3129, 64
    %v3137 = vpop.permute.xlu0 %3136
    %v3140 = vmul.f32 %v3121, %v3135
    %v3141 = vmul.f32 %v3125, %v3137
    %3144 = vrot.lane.b32.xlu0 %v3140, 64
    %v3145 = vpop.permute.xlu0 %3144
    %3146 = vrot.lane.b32.xlu0 %v3141, 64
    %v3147 = vpop.permute.xlu0 %3146
    %v3150 = vadd.f32 %v3130, %v3145
    %v3151 = vadd.f32 %v3131, %v3147
    %v3152 = vtanh.pop %v3150
    %v3153 = vtanh.pop %v3151
    %3156 = vrot.lane.b32.xlu0 %v3152, 64
    %v3157 = vpop.permute.xlu0 %3156
    %3158 = vrot.lane.b32.xlu0 %v3153, 64
    %v3159 = vpop.permute.xlu0 %3158
    %v3162 = vmul.f32 %v3123, %v3157
    %v3163 = vmul.f32 %v3127, %v3159
    %v3164 = vxor.u32 %v3100, 2147483648
    %v3165 = vxor.u32 %v3101, 2147483648
    %v3166 = vxor.u32 %v3102, 2147483648
    %v3167 = vxor.u32 %v3103, 2147483648
    %v3168 = vmul.f32 %v3164, 1.442695
    %v3169 = vpow.pop %v3168
    %v3170 = vmul.f32 %v3165, 1.442695
    %v3171 = vpow.pop %v3170
    %v3172 = vmul.f32 %v3166, 1.442695
    %v3173 = vpow.pop %v3172
    %v3174 = vmul.f32 %v3167, 1.442695
    %v3175 = vpow.pop %v3174
    %v3176 = vadd.f32 %v3169, 1.0
    %v3177 = vadd.f32 %v3171, 1.0
    %v3178 = vadd.f32 %v3173, 1.0
    %v3179 = vadd.f32 %v3175, 1.0
    %v3180 = vrcp.pop %v3176
    %v3181 = vmul.f32 1.0, %v3180
    %v3182 = vrcp.pop %v3177
    %v3183 = vmul.f32 1.0, %v3182
    %v3184 = vrcp.pop %v3178
    %v3185 = vmul.f32 1.0, %v3184
    %v3186 = vrcp.pop %v3179
    %v3187 = vmul.f32 1.0, %v3186
    %v3188 = vtanh.pop %v3101
    %v3189 = vtanh.pop %v3103
    %v3190 = vmul.f32 %v3181, %v2801
    %v3191 = vmul.f32 %v3185, %v2802
    %3194 = vrot.lane.b32.xlu0 %v3188, 64
    %v3195 = vpop.permute.xlu0 %3194
    %3196 = vrot.lane.b32.xlu0 %v3189, 64
    %v3197 = vpop.permute.xlu0 %3196
    %v3200 = vmul.f32 %v3181, %v3195
    %v3201 = vmul.f32 %v3185, %v3197
    %3204 = vrot.lane.b32.xlu0 %v3200, 64
    %v3205 = vpop.permute.xlu0 %3204
    %3206 = vrot.lane.b32.xlu0 %v3201, 64
    %v3207 = vpop.permute.xlu0 %3206
    %v3210 = vadd.f32 %v3190, %v3205
    %v3211 = vadd.f32 %v3191, %v3207
    %v3212 = vtanh.pop %v3210
    %v3213 = vtanh.pop %v3211
    %3216 = vrot.lane.b32.xlu0 %v3212, 64
    %v3217 = vpop.permute.xlu0 %3216
    %3218 = vrot.lane.b32.xlu0 %v3213, 64
    %v3219 = vpop.permute.xlu0 %3218
    %v3222 = vmul.f32 %v3183, %v3217
    %v3223 = vmul.f32 %v3187, %v3219
    %3226 = vrot.lane.b32.xlu0 %v3222, 64
    %v3227 = vpop.permute.xlu0 %3226
    %3228 = vrot.lane.b32.xlu0 %v3223, 64
    %v3229 = vpop.permute.xlu0 %3228
    %v3232 = vsel %vm910, %v3162, %v3227
    %v3233 = vsel %vm910, %v3163, %v3229
    %v3234 = vpack.c.bf16 %v3233, %v3232
    %3235 = vmatprep.subr.bf16.mxu0 %v1011
    %3236 = vmatpush1.bf16.msra.mxu0 %v1010
    %3237 = vmatprep.subr.bf16.mxu0 %v1015
    %3238 = vmatpush1.bf16.msra.mxu0 %v1014
    %3239 = vmatprep.subr.bf16.mxu0 %v1019
    %3240 = vmatpush1.bf16.msra.mxu0 %v1018
    %3241 = vmatprep.subr.bf16.mxu0 %v1023
    %3242 = vmatpush1.bf16.msra.mxu0 %v1022
    %3243 = vmatprep.subr.bf16.mxu0 %v1027
    %3244 = vmatpush1.bf16.msra.mxu0 %v1026
    %3245 = vmatprep.subr.bf16.mxu0 %v1031
    %3246 = vmatpush1.bf16.msra.mxu0 %v1030
    %3247 = vmatprep.subr.bf16.mxu0 %v1035
    %3248 = vmatpush1.bf16.msra.mxu0 %v1034
    %3249 = vmatprep.subr.bf16.mxu0 %v1039
    %3250 = vmatpush1.bf16.msra.mxu0 %v1038
    %3251 = vmatprep.subr.bf16.mxu0 0
    %3252 = vmatpush1.bf16.msra.mxu0 0
    %3253 = vmatprep.subr.bf16.mxu0 0
    %3254 = vmatpush1.bf16.msra.mxu0 0
    %3255 = vmatprep.subr.bf16.mxu0 0
    %3256 = vmatpush1.bf16.msra.mxu0 0
    %3257 = vmatprep.subr.bf16.mxu0 0
    %3258 = vmatpush1.bf16.msra.mxu0 0
    %3259 = vmatprep.subr.bf16.mxu0 0
    %3260 = vmatpush1.bf16.msra.mxu0 0
    %3261 = vmatprep.subr.bf16.mxu0 0
    %3262 = vmatpush1.bf16.msra.mxu0 0
    %3263 = vmatprep.subr.bf16.mxu0 0
    %3264 = vmatpush1.bf16.msra.mxu0 0
    %3265 = vmatprep.subr.bf16.mxu0 0
    %3266 = vmatpush1.bf16.msra.mxu0 0
    %3267 = vmatprep.mubr.bf16.mxu0 0
    %3268 = vmatmul.mubr.bf16.gmra.mrb[0].mxu0 %v3234
    %v3269 = vpop.f32.mrb[0].mxu0
    %v3270 = vadd.f32 0.0, %v3269
    %v3271 = vpop.f32.mrb[0].mxu0
    %v3272 = vadd.f32 0.0, %v3271
    %v3273 = vpop.f32.mrb[0].mxu0
    %v3274 = vadd.f32 0.0, %v3273
    %v3275 = vpop.f32.mrb[0].mxu0
    %v3276 = vadd.f32 0.0, %v3275
    %3277 = vdwg.mxu0
    %3278 = vmatprep.subr.bf16.mxu0 %v1013
    %3279 = vmatpush1.bf16.msra.mxu0 %v1012
    %3280 = vmatprep.subr.bf16.mxu0 %v1017
    %3281 = vmatpush1.bf16.msra.mxu0 %v1016
    %3282 = vmatprep.subr.bf16.mxu0 %v1021
    %3283 = vmatpush1.bf16.msra.mxu0 %v1020
    %3284 = vmatprep.subr.bf16.mxu0 %v1025
    %3285 = vmatpush1.bf16.msra.mxu0 %v1024
    %3286 = vmatprep.subr.bf16.mxu0 %v1029
    %3287 = vmatpush1.bf16.msra.mxu0 %v1028
    %3288 = vmatprep.subr.bf16.mxu0 %v1033
    %3289 = vmatpush1.bf16.msra.mxu0 %v1032
    %3290 = vmatprep.subr.bf16.mxu0 %v1037
    %3291 = vmatpush1.bf16.msra.mxu0 %v1036
    %3292 = vmatprep.subr.bf16.mxu0 %v1041
    %3293 = vmatpush1.bf16.msra.mxu0 %v1040
    %3294 = vmatprep.subr.bf16.mxu0 0
    %3295 = vmatpush1.bf16.msra.mxu0 0
    %3296 = vmatprep.subr.bf16.mxu0 0
    %3297 = vmatpush1.bf16.msra.mxu0 0
    %3298 = vmatprep.subr.bf16.mxu0 0
    %3299 = vmatpush1.bf16.msra.mxu0 0
    %3300 = vmatprep.subr.bf16.mxu0 0
    %3301 = vmatpush1.bf16.msra.mxu0 0
    %3302 = vmatprep.subr.bf16.mxu0 0
    %3303 = vmatpush1.bf16.msra.mxu0 0
    %3304 = vmatprep.subr.bf16.mxu0 0
    %3305 = vmatpush1.bf16.msra.mxu0 0
    %3306 = vmatprep.subr.bf16.mxu0 0
    %3307 = vmatpush1.bf16.msra.mxu0 0
    %3308 = vmatprep.subr.bf16.mxu0 0
    %3309 = vmatpush1.bf16.msra.mxu0 0
    %3310 = vmatprep.mubr.bf16.mxu0 0
    %3311 = vmatmul.mubr.bf16.gmra.mrb[0].mxu0 %v3234
    %v3312 = vpop.f32.mrb[0].mxu0
    %v3313 = vadd.f32 0.0, %v3312
    %v3314 = vpop.f32.mrb[0].mxu0
    %v3315 = vadd.f32 0.0, %v3314
    %v3316 = vpop.f32.mrb[0].mxu0
    %v3317 = vadd.f32 0.0, %v3316
    %v3318 = vpop.f32.mrb[0].mxu0
    %v3319 = vadd.f32 0.0, %v3318
    %3320 = vdwg.mxu0
    %s3321 = scalar_lea.vmem [#allocation2], 6
    %v3322 = vld [vmem:[%s3321] ss:$8 sm:$0x3]
    %s3323 = scalar_lea.vmem [#allocation2], 22
    %v3324 = vld [vmem:[%s3323] ss:$8 sm:$0x3]
    %s3325 = scalar_lea.vmem [#allocation2], 38
    %v3326 = vld [vmem:[%s3325] ss:$8 sm:$0x3]
    %s3327 = scalar_lea.vmem [#allocation2], 54
    %v3328 = vld [vmem:[%s3327] ss:$8 sm:$0x3]
    %s3329 = scalar_lea.vmem [#allocation2], 70
    %v3330 = vld [vmem:[%s3329] ss:$8 sm:$0x3]
    %s3331 = scalar_lea.vmem [#allocation2], 86
    %v3332 = vld [vmem:[%s3331] ss:$8 sm:$0x3]
    %s3333 = scalar_lea.vmem [#allocation2], 102
    %v3334 = vld [vmem:[%s3333] ss:$8 sm:$0x3]
    %s3335 = scalar_lea.vmem [#allocation2], 118
    %v3336 = vld [vmem:[%s3335] ss:$8 sm:$0x3]
    %s3337 = scalar_lea.vmem [#allocation2], 134
    %v3338 = vld [vmem:[%s3337] ss:$8 sm:$0x3]
    %s3339 = scalar_lea.vmem [#allocation2], 150
    %v3340 = vld [vmem:[%s3339] ss:$8 sm:$0x3]
    %s3341 = scalar_lea.vmem [#allocation2], 166
    %v3342 = vld [vmem:[%s3341] ss:$8 sm:$0x3]
    %s3343 = scalar_lea.vmem [#allocation2], 182
    %v3344 = vld [vmem:[%s3343] ss:$8 sm:$0x3]
    %s3345 = scalar_lea.vmem [#allocation2], 198
    %v3346 = vld [vmem:[%s3345] ss:$8 sm:$0x3]
    %s3347 = scalar_lea.vmem [#allocation2], 214
    %v3348 = vld [vmem:[%s3347] ss:$8 sm:$0x3]
    %s3349 = scalar_lea.vmem [#allocation2], 230
    %v3350 = vld [vmem:[%s3349] ss:$8 sm:$0x3]
    %s3351 = scalar_lea.vmem [#allocation2], 246
    %v3352 = vld [vmem:[%s3351] ss:$8 sm:$0x3]
    %v3369 = vcombine.low %v3322, %v3324
    %v3370 = vcombine.low %v3326, %v3328
    %v3371 = vcombine.low %v3330, %v3332
    %v3372 = vcombine.low %v3334, %v3336
    %v3374 = vunpack.c.l.s4 1966171168
    %v3375 = vunpack.c.0.s8 %v3374
    %v3376 = vlaneseq
    %v3377 = vshrl.u32 %v3376, 7
    %v3378 = vsub.s32 %v3375, %v3377
    %v3379 = vrot.slane %v3369, %v3378
    %v3381 = vunpack.c.l.s4 1966171168
    %v3382 = vunpack.c.0.s8 %v3381
    %v3383 = vlaneseq
    %v3384 = vshrl.u32 %v3383, 7
    %v3385 = vsub.s32 %v3382, %v3384
    %v3386 = vrot.slane %v3370, %v3385
    %v3388 = vunpack.c.l.s4 1966171168
    %v3389 = vunpack.c.0.s8 %v3388
    %v3390 = vlaneseq
    %v3391 = vshrl.u32 %v3390, 7
    %v3392 = vsub.s32 %v3389, %v3391
    %v3393 = vrot.slane %v3371, %v3392
    %v3395 = vunpack.c.l.s4 1966171168
    %v3396 = vunpack.c.0.s8 %v3395
    %v3397 = vlaneseq
    %v3398 = vshrl.u32 %v3397, 7
    %v3399 = vsub.s32 %v3396, %v3398
    %v3400 = vrot.slane %v3372, %v3399
    %v3401 = vcombine.low %v3379, %v3386
    %v3402 = vcombine.high %v3379, %v3386
    %v3403 = vcombine.low %v3393, %v3400
    %v3404 = vcombine.high %v3393, %v3400
    %v3406 = vunpack.c.l.s4 1966171168
    %v3407 = vunpack.c.0.s8 %v3406
    %v3408 = vlaneseq
    %v3409 = vshrl.u32 %v3408, 7
    %v3410 = vsub.s32 %v3407, %v3409
    %v3411 = vrot.slane %v3401, %v3410
    %v3413 = vunpack.c.l.s4 1966171168
    %v3414 = vunpack.c.0.s8 %v3413
    %v3415 = vlaneseq
    %v3416 = vshrl.u32 %v3415, 7
    %v3417 = vsub.s32 %v3414, %v3416
    %v3418 = vrot.slane %v3402, %v3417
    %v3420 = vunpack.c.l.s4 1966171168
    %v3421 = vunpack.c.0.s8 %v3420
    %v3422 = vlaneseq
    %v3423 = vshrl.u32 %v3422, 7
    %v3424 = vsub.s32 %v3421, %v3423
    %v3425 = vrot.slane %v3403, %v3424
    %v3427 = vunpack.c.l.s4 1966171168
    %v3428 = vunpack.c.0.s8 %v3427
    %v3429 = vlaneseq
    %v3430 = vshrl.u32 %v3429, 7
    %v3431 = vsub.s32 %v3428, %v3430
    %v3432 = vrot.slane %v3404, %v3431
    %v3433 = vcombine.low %v3411, %v3425
    %v3434 = vcombine.low %v3418, %v3432
    %v3435 = vcombine.low %v3338, %v3340
    %v3436 = vcombine.low %v3342, %v3344
    %v3437 = vcombine.low %v3346, %v3348
    %v3438 = vcombine.low %v3350, %v3352
    %v3440 = vunpack.c.l.s4 1966171168
    %v3441 = vunpack.c.0.s8 %v3440
    %v3442 = vlaneseq
    %v3443 = vshrl.u32 %v3442, 7
    %v3444 = vsub.s32 %v3441, %v3443
    %v3445 = vrot.slane %v3435, %v3444
    %v3447 = vunpack.c.l.s4 1966171168
    %v3448 = vunpack.c.0.s8 %v3447
    %v3449 = vlaneseq
    %v3450 = vshrl.u32 %v3449, 7
    %v3451 = vsub.s32 %v3448, %v3450
    %v3452 = vrot.slane %v3436, %v3451
    %v3454 = vunpack.c.l.s4 1966171168
    %v3455 = vunpack.c.0.s8 %v3454
    %v3456 = vlaneseq
    %v3457 = vshrl.u32 %v3456, 7
    %v3458 = vsub.s32 %v3455, %v3457
    %v3459 = vrot.slane %v3437, %v3458
    %v3461 = vunpack.c.l.s4 1966171168
    %v3462 = vunpack.c.0.s8 %v3461
    %v3463 = vlaneseq
    %v3464 = vshrl.u32 %v3463, 7
    %v3465 = vsub.s32 %v3462, %v3464
    %v3466 = vrot.slane %v3438, %v3465
    %v3467 = vcombine.low %v3445, %v3452
    %v3468 = vcombine.high %v3445, %v3452
    %v3469 = vcombine.low %v3459, %v3466
    %v3470 = vcombine.high %v3459, %v3466
    %v3472 = vunpack.c.l.s4 1966171168
    %v3473 = vunpack.c.0.s8 %v3472
    %v3474 = vlaneseq
    %v3475 = vshrl.u32 %v3474, 7
    %v3476 = vsub.s32 %v3473, %v3475
    %v3477 = vrot.slane %v3467, %v3476
    %v3479 = vunpack.c.l.s4 1966171168
    %v3480 = vunpack.c.0.s8 %v3479
    %v3481 = vlaneseq
    %v3482 = vshrl.u32 %v3481, 7
    %v3483 = vsub.s32 %v3480, %v3482
    %v3484 = vrot.slane %v3468, %v3483
    %v3486 = vunpack.c.l.s4 1966171168
    %v3487 = vunpack.c.0.s8 %v3486
    %v3488 = vlaneseq
    %v3489 = vshrl.u32 %v3488, 7
    %v3490 = vsub.s32 %v3487, %v3489
    %v3491 = vrot.slane %v3469, %v3490
    %v3493 = vunpack.c.l.s4 1966171168
    %v3494 = vunpack.c.0.s8 %v3493
    %v3495 = vlaneseq
    %v3496 = vshrl.u32 %v3495, 7
    %v3497 = vsub.s32 %v3494, %v3496
    %v3498 = vrot.slane %v3470, %v3497
    %v3499 = vcombine.low %v3477, %v3491
    %v3500 = vcombine.low %v3484, %v3498
    %v3505 = vadd.f32 %v3270, %v3433
    %v3506 = vadd.f32 %v3272, %v3434
    %v3507 = vadd.f32 %v3274, %v3499
    %v3508 = vadd.f32 %v3276, %v3500
    %v3509 = vadd.f32 %v3313, %v78
    %v3510 = vadd.f32 %v3315, %v82
    %v3511 = vadd.f32 %v3317, %v78
    %v3512 = vadd.f32 %v3319, %v82
    %v3513 = vxor.u32 %v3505, 2147483648
    %v3514 = vxor.u32 %v3506, 2147483648
    %v3515 = vxor.u32 %v3507, 2147483648
    %v3516 = vxor.u32 %v3508, 2147483648
    %v3517 = vmul.f32 %v3513, 1.442695
    %v3518 = vpow.pop %v3517
    %v3519 = vmul.f32 %v3514, 1.442695
    %v3520 = vpow.pop %v3519
    %v3521 = vmul.f32 %v3515, 1.442695
    %v3522 = vpow.pop %v3521
    %v3523 = vmul.f32 %v3516, 1.442695
    %v3524 = vpow.pop %v3523
    %v3525 = vadd.f32 %v3518, 1.0
    %v3526 = vadd.f32 %v3520, 1.0
    %v3527 = vadd.f32 %v3522, 1.0
    %v3528 = vadd.f32 %v3524, 1.0
    %v3529 = vrcp.pop %v3525
    %v3530 = vmul.f32 1.0, %v3529
    %v3531 = vrcp.pop %v3526
    %v3532 = vmul.f32 1.0, %v3531
    %v3533 = vrcp.pop %v3527
    %v3534 = vmul.f32 1.0, %v3533
    %v3535 = vrcp.pop %v3528
    %v3536 = vmul.f32 1.0, %v3535
    %v3537 = vtanh.pop %v3506
    %v3538 = vtanh.pop %v3508
    %v3539 = vmul.f32 %v3530, %v3150
    %v3540 = vmul.f32 %v3534, %v3151
    %3543 = vrot.lane.b32.xlu0 %v3537, 64
    %v3544 = vpop.permute.xlu0 %3543
    %3545 = vrot.lane.b32.xlu0 %v3538, 64
    %v3546 = vpop.permute.xlu0 %3545
    %v3549 = vmul.f32 %v3530, %v3544
    %v3550 = vmul.f32 %v3534, %v3546
    %3553 = vrot.lane.b32.xlu0 %v3549, 64
    %v3554 = vpop.permute.xlu0 %3553
    %3555 = vrot.lane.b32.xlu0 %v3550, 64
    %v3556 = vpop.permute.xlu0 %3555
    %v3559 = vadd.f32 %v3539, %v3554
    %v3560 = vadd.f32 %v3540, %v3556
    %v3561 = vtanh.pop %v3559
    %v3562 = vtanh.pop %v3560
    %3565 = vrot.lane.b32.xlu0 %v3561, 64
    %v3566 = vpop.permute.xlu0 %3565
    %3567 = vrot.lane.b32.xlu0 %v3562, 64
    %v3568 = vpop.permute.xlu0 %3567
    %v3571 = vmul.f32 %v3532, %v3566
    %v3572 = vmul.f32 %v3536, %v3568
    %v3573 = vxor.u32 %v3509, 2147483648
    %v3574 = vxor.u32 %v3510, 2147483648
    %v3575 = vxor.u32 %v3511, 2147483648
    %v3576 = vxor.u32 %v3512, 2147483648
    %v3577 = vmul.f32 %v3573, 1.442695
    %v3578 = vpow.pop %v3577
    %v3579 = vmul.f32 %v3574, 1.442695
    %v3580 = vpow.pop %v3579
    %v3581 = vmul.f32 %v3575, 1.442695
    %v3582 = vpow.pop %v3581
    %v3583 = vmul.f32 %v3576, 1.442695
    %v3584 = vpow.pop %v3583
    %v3585 = vadd.f32 %v3578, 1.0
    %v3586 = vadd.f32 %v3580, 1.0
    %v3587 = vadd.f32 %v3582, 1.0
    %v3588 = vadd.f32 %v3584, 1.0
    %v3589 = vrcp.pop %v3585
    %v3590 = vmul.f32 1.0, %v3589
    %v3591 = vrcp.pop %v3586
    %v3592 = vmul.f32 1.0, %v3591
    %v3593 = vrcp.pop %v3587
    %v3594 = vmul.f32 1.0, %v3593
    %v3595 = vrcp.pop %v3588
    %v3596 = vmul.f32 1.0, %v3595
    %v3597 = vtanh.pop %v3510
    %v3598 = vtanh.pop %v3512
    %v3599 = vmul.f32 %v3590, %v3210
    %v3600 = vmul.f32 %v3594, %v3211
    %3603 = vrot.lane.b32.xlu0 %v3597, 64
    %v3604 = vpop.permute.xlu0 %3603
    %3605 = vrot.lane.b32.xlu0 %v3598, 64
    %v3606 = vpop.permute.xlu0 %3605
    %v3609 = vmul.f32 %v3590, %v3604
    %v3610 = vmul.f32 %v3594, %v3606
    %3613 = vrot.lane.b32.xlu0 %v3609, 64
    %v3614 = vpop.permute.xlu0 %3613
    %3615 = vrot.lane.b32.xlu0 %v3610, 64
    %v3616 = vpop.permute.xlu0 %3615
    %v3619 = vadd.f32 %v3599, %v3614
    %v3620 = vadd.f32 %v3600, %v3616
    %v3621 = vtanh.pop %v3619
    %v3622 = vtanh.pop %v3620
    %3625 = vrot.lane.b32.xlu0 %v3621, 64
    %v3626 = vpop.permute.xlu0 %3625
    %3627 = vrot.lane.b32.xlu0 %v3622, 64
    %v3628 = vpop.permute.xlu0 %3627
    %v3631 = vmul.f32 %v3592, %v3626
    %v3632 = vmul.f32 %v3596, %v3628
    %3635 = vrot.lane.b32.xlu0 %v3631, 64
    %v3636 = vpop.permute.xlu0 %3635
    %3637 = vrot.lane.b32.xlu0 %v3632, 64
    %v3638 = vpop.permute.xlu0 %3637
    %v3641 = vsel %vm910, %v3571, %v3636
    %v3642 = vsel %vm910, %v3572, %v3638
    %v3643 = vpack.c.bf16 %v3642, %v3641
    %3644 = vmatprep.subr.bf16.mxu0 %v1011
    %3645 = vmatpush1.bf16.msra.mxu0 %v1010
    %3646 = vmatprep.subr.bf16.mxu0 %v1015
    %3647 = vmatpush1.bf16.msra.mxu0 %v1014
    %3648 = vmatprep.subr.bf16.mxu0 %v1019
    %3649 = vmatpush1.bf16.msra.mxu0 %v1018
    %3650 = vmatprep.subr.bf16.mxu0 %v1023
    %3651 = vmatpush1.bf16.msra.mxu0 %v1022
    %3652 = vmatprep.subr.bf16.mxu0 %v1027
    %3653 = vmatpush1.bf16.msra.mxu0 %v1026
    %3654 = vmatprep.subr.bf16.mxu0 %v1031
    %3655 = vmatpush1.bf16.msra.mxu0 %v1030
    %3656 = vmatprep.subr.bf16.mxu0 %v1035
    %3657 = vmatpush1.bf16.msra.mxu0 %v1034
    %3658 = vmatprep.subr.bf16.mxu0 %v1039
    %3659 = vmatpush1.bf16.msra.mxu0 %v1038
    %3660 = vmatprep.subr.bf16.mxu0 0
    %3661 = vmatpush1.bf16.msra.mxu0 0
    %3662 = vmatprep.subr.bf16.mxu0 0
    %3663 = vmatpush1.bf16.msra.mxu0 0
    %3664 = vmatprep.subr.bf16.mxu0 0
    %3665 = vmatpush1.bf16.msra.mxu0 0
    %3666 = vmatprep.subr.bf16.mxu0 0
    %3667 = vmatpush1.bf16.msra.mxu0 0
    %3668 = vmatprep.subr.bf16.mxu0 0
    %3669 = vmatpush1.bf16.msra.mxu0 0
    %3670 = vmatprep.subr.bf16.mxu0 0
    %3671 = vmatpush1.bf16.msra.mxu0 0
    %3672 = vmatprep.subr.bf16.mxu0 0
    %3673 = vmatpush1.bf16.msra.mxu0 0
    %3674 = vmatprep.subr.bf16.mxu0 0
    %3675 = vmatpush1.bf16.msra.mxu0 0
    %3676 = vmatprep.mubr.bf16.mxu0 0
    %3677 = vmatmul.mubr.bf16.gmra.mrb[0].mxu0 %v3643
    %v3678 = vpop.f32.mrb[0].mxu0
    %v3679 = vadd.f32 0.0, %v3678
    %v3680 = vpop.f32.mrb[0].mxu0
    %v3681 = vadd.f32 0.0, %v3680
    %v3682 = vpop.f32.mrb[0].mxu0
    %v3683 = vadd.f32 0.0, %v3682
    %v3684 = vpop.f32.mrb[0].mxu0
    %v3685 = vadd.f32 0.0, %v3684
    %3686 = vdwg.mxu0
    %3687 = vmatprep.subr.bf16.mxu0 %v1013
    %3688 = vmatpush1.bf16.msra.mxu0 %v1012
    %3689 = vmatprep.subr.bf16.mxu0 %v1017
    %3690 = vmatpush1.bf16.msra.mxu0 %v1016
    %3691 = vmatprep.subr.bf16.mxu0 %v1021
    %3692 = vmatpush1.bf16.msra.mxu0 %v1020
    %3693 = vmatprep.subr.bf16.mxu0 %v1025
    %3694 = vmatpush1.bf16.msra.mxu0 %v1024
    %3695 = vmatprep.subr.bf16.mxu0 %v1029
    %3696 = vmatpush1.bf16.msra.mxu0 %v1028
    %3697 = vmatprep.subr.bf16.mxu0 %v1033
    %3698 = vmatpush1.bf16.msra.mxu0 %v1032
    %3699 = vmatprep.subr.bf16.mxu0 %v1037
    %3700 = vmatpush1.bf16.msra.mxu0 %v1036
    %3701 = vmatprep.subr.bf16.mxu0 %v1041
    %3702 = vmatpush1.bf16.msra.mxu0 %v1040
    %3703 = vmatprep.subr.bf16.mxu0 0
    %3704 = vmatpush1.bf16.msra.mxu0 0
    %3705 = vmatprep.subr.bf16.mxu0 0
    %3706 = vmatpush1.bf16.msra.mxu0 0
    %3707 = vmatprep.subr.bf16.mxu0 0
    %3708 = vmatpush1.bf16.msra.mxu0 0
    %3709 = vmatprep.subr.bf16.mxu0 0
    %3710 = vmatpush1.bf16.msra.mxu0 0
    %3711 = vmatprep.subr.bf16.mxu0 0
    %3712 = vmatpush1.bf16.msra.mxu0 0
    %3713 = vmatprep.subr.bf16.mxu0 0
    %3714 = vmatpush1.bf16.msra.mxu0 0
    %3715 = vmatprep.subr.bf16.mxu0 0
    %3716 = vmatpush1.bf16.msra.mxu0 0
    %3717 = vmatprep.subr.bf16.mxu0 0
    %3718 = vmatpush1.bf16.msra.mxu0 0
    %3719 = vmatprep.mubr.bf16.mxu0 0
    %3720 = vmatmul.mubr.bf16.gmra.mrb[0].mxu0 %v3643
    %v3721 = vpop.f32.mrb[0].mxu0
    %v3722 = vadd.f32 0.0, %v3721
    %v3723 = vpop.f32.mrb[0].mxu0
    %v3724 = vadd.f32 0.0, %v3723
    %v3725 = vpop.f32.mrb[0].mxu0
    %v3726 = vadd.f32 0.0, %v3725
    %v3727 = vpop.f32.mrb[0].mxu0
    %v3728 = vadd.f32 0.0, %v3727
    %3729 = vdwg.mxu0
    %s3730 = scalar_lea.vmem [#allocation2], 7
    %v3731 = vld [vmem:[%s3730] ss:$8 sm:$0x3]
    %s3732 = scalar_lea.vmem [#allocation2], 23
    %v3733 = vld [vmem:[%s3732] ss:$8 sm:$0x3]
    %s3734 = scalar_lea.vmem [#allocation2], 39
    %v3735 = vld [vmem:[%s3734] ss:$8 sm:$0x3]
    %s3736 = scalar_lea.vmem [#allocation2], 55
    %v3737 = vld [vmem:[%s3736] ss:$8 sm:$0x3]
    %s3738 = scalar_lea.vmem [#allocation2], 71
    %v3739 = vld [vmem:[%s3738] ss:$8 sm:$0x3]
    %s3740 = scalar_lea.vmem [#allocation2], 87
    %v3741 = vld [vmem:[%s3740] ss:$8 sm:$0x3]
    %s3742 = scalar_lea.vmem [#allocation2], 103
    %v3743 = vld [vmem:[%s3742] ss:$8 sm:$0x3]
    %s3744 = scalar_lea.vmem [#allocation2], 119
    %v3745 = vld [vmem:[%s3744] ss:$8 sm:$0x3]
    %s3746 = scalar_lea.vmem [#allocation2], 135
    %v3747 = vld [vmem:[%s3746] ss:$8 sm:$0x3]
    %s3748 = scalar_lea.vmem [#allocation2], 151
    %v3749 = vld [vmem:[%s3748] ss:$8 sm:$0x3]
    %s3750 = scalar_lea.vmem [#allocation2], 167
    %v3751 = vld [vmem:[%s3750] ss:$8 sm:$0x3]
    %s3752 = scalar_lea.vmem [#allocation2], 183
    %v3753 = vld [vmem:[%s3752] ss:$8 sm:$0x3]
    %s3754 = scalar_lea.vmem [#allocation2], 199
    %v3755 = vld [vmem:[%s3754] ss:$8 sm:$0x3]
    %s3756 = scalar_lea.vmem [#allocation2], 215
    %v3757 = vld [vmem:[%s3756] ss:$8 sm:$0x3]
    %s3758 = scalar_lea.vmem [#allocation2], 231
    %v3759 = vld [vmem:[%s3758] ss:$8 sm:$0x3]
    %s3760 = scalar_lea.vmem [#allocation2], 247
    %v3761 = vld [vmem:[%s3760] ss:$8 sm:$0x3]
    %v3778 = vcombine.low %v3731, %v3733
    %v3779 = vcombine.low %v3735, %v3737
    %v3780 = vcombine.low %v3739, %v3741
    %v3781 = vcombine.low %v3743, %v3745
    %v3783 = vunpack.c.l.s4 1966171168
    %v3784 = vunpack.c.0.s8 %v3783
    %v3785 = vlaneseq
    %v3786 = vshrl.u32 %v3785, 7
    %v3787 = vsub.s32 %v3784, %v3786
    %v3788 = vrot.slane %v3778, %v3787
    %v3790 = vunpack.c.l.s4 1966171168
    %v3791 = vunpack.c.0.s8 %v3790
    %v3792 = vlaneseq
    %v3793 = vshrl.u32 %v3792, 7
    %v3794 = vsub.s32 %v3791, %v3793
    %v3795 = vrot.slane %v3779, %v3794
    %v3797 = vunpack.c.l.s4 1966171168
    %v3798 = vunpack.c.0.s8 %v3797
    %v3799 = vlaneseq
    %v3800 = vshrl.u32 %v3799, 7
    %v3801 = vsub.s32 %v3798, %v3800
    %v3802 = vrot.slane %v3780, %v3801
    %v3804 = vunpack.c.l.s4 1966171168
    %v3805 = vunpack.c.0.s8 %v3804
    %v3806 = vlaneseq
    %v3807 = vshrl.u32 %v3806, 7
    %v3808 = vsub.s32 %v3805, %v3807
    %v3809 = vrot.slane %v3781, %v3808
    %v3810 = vcombine.low %v3788, %v3795
    %v3811 = vcombine.high %v3788, %v3795
    %v3812 = vcombine.low %v3802, %v3809
    %v3813 = vcombine.high %v3802, %v3809
    %v3815 = vunpack.c.l.s4 1966171168
    %v3816 = vunpack.c.0.s8 %v3815
    %v3817 = vlaneseq
    %v3818 = vshrl.u32 %v3817, 7
    %v3819 = vsub.s32 %v3816, %v3818
    %v3820 = vrot.slane %v3810, %v3819
    %v3822 = vunpack.c.l.s4 1966171168
    %v3823 = vunpack.c.0.s8 %v3822
    %v3824 = vlaneseq
    %v3825 = vshrl.u32 %v3824, 7
    %v3826 = vsub.s32 %v3823, %v3825
    %v3827 = vrot.slane %v3811, %v3826
    %v3829 = vunpack.c.l.s4 1966171168
    %v3830 = vunpack.c.0.s8 %v3829
    %v3831 = vlaneseq
    %v3832 = vshrl.u32 %v3831, 7
    %v3833 = vsub.s32 %v3830, %v3832
    %v3834 = vrot.slane %v3812, %v3833
    %v3836 = vunpack.c.l.s4 1966171168
    %v3837 = vunpack.c.0.s8 %v3836
    %v3838 = vlaneseq
    %v3839 = vshrl.u32 %v3838, 7
    %v3840 = vsub.s32 %v3837, %v3839
    %v3841 = vrot.slane %v3813, %v3840
    %v3842 = vcombine.low %v3820, %v3834
    %v3843 = vcombine.low %v3827, %v3841
    %v3844 = vcombine.low %v3747, %v3749
    %v3845 = vcombine.low %v3751, %v3753
    %v3846 = vcombine.low %v3755, %v3757
    %v3847 = vcombine.low %v3759, %v3761
    %v3849 = vunpack.c.l.s4 1966171168
    %v3850 = vunpack.c.0.s8 %v3849
    %v3851 = vlaneseq
    %v3852 = vshrl.u32 %v3851, 7
    %v3853 = vsub.s32 %v3850, %v3852
    %v3854 = vrot.slane %v3844, %v3853
    %v3856 = vunpack.c.l.s4 1966171168
    %v3857 = vunpack.c.0.s8 %v3856
    %v3858 = vlaneseq
    %v3859 = vshrl.u32 %v3858, 7
    %v3860 = vsub.s32 %v3857, %v3859
    %v3861 = vrot.slane %v3845, %v3860
    %v3863 = vunpack.c.l.s4 1966171168
    %v3864 = vunpack.c.0.s8 %v3863
    %v3865 = vlaneseq
    %v3866 = vshrl.u32 %v3865, 7
    %v3867 = vsub.s32 %v3864, %v3866
    %v3868 = vrot.slane %v3846, %v3867
    %v3870 = vunpack.c.l.s4 1966171168
    %v3871 = vunpack.c.0.s8 %v3870
    %v3872 = vlaneseq
    %v3873 = vshrl.u32 %v3872, 7
    %v3874 = vsub.s32 %v3871, %v3873
    %v3875 = vrot.slane %v3847, %v3874
    %v3876 = vcombine.low %v3854, %v3861
    %v3877 = vcombine.high %v3854, %v3861
    %v3878 = vcombine.low %v3868, %v3875
    %v3879 = vcombine.high %v3868, %v3875
    %v3881 = vunpack.c.l.s4 1966171168
    %v3882 = vunpack.c.0.s8 %v3881
    %v3883 = vlaneseq
    %v3884 = vshrl.u32 %v3883, 7
    %v3885 = vsub.s32 %v3882, %v3884
    %v3886 = vrot.slane %v3876, %v3885
    %v3888 = vunpack.c.l.s4 1966171168
    %v3889 = vunpack.c.0.s8 %v3888
    %v3890 = vlaneseq
    %v3891 = vshrl.u32 %v3890, 7
    %v3892 = vsub.s32 %v3889, %v3891
    %v3893 = vrot.slane %v3877, %v3892
    %v3895 = vunpack.c.l.s4 1966171168
    %v3896 = vunpack.c.0.s8 %v3895
    %v3897 = vlaneseq
    %v3898 = vshrl.u32 %v3897, 7
    %v3899 = vsub.s32 %v3896, %v3898
    %v3900 = vrot.slane %v3878, %v3899
    %v3902 = vunpack.c.l.s4 1966171168
    %v3903 = vunpack.c.0.s8 %v3902
    %v3904 = vlaneseq
    %v3905 = vshrl.u32 %v3904, 7
    %v3906 = vsub.s32 %v3903, %v3905
    %v3907 = vrot.slane %v3879, %v3906
    %v3908 = vcombine.low %v3886, %v3900
    %v3909 = vcombine.low %v3893, %v3907
    %v3914 = vadd.f32 %v3679, %v3842
    %v3915 = vadd.f32 %v3681, %v3843
    %v3916 = vadd.f32 %v3683, %v3908
    %v3917 = vadd.f32 %v3685, %v3909
    %v3918 = vadd.f32 %v3722, %v78
    %v3919 = vadd.f32 %v3724, %v82
    %v3920 = vadd.f32 %v3726, %v78
    %v3921 = vadd.f32 %v3728, %v82
    %v3922 = vxor.u32 %v3914, 2147483648
    %v3923 = vxor.u32 %v3915, 2147483648
    %v3924 = vxor.u32 %v3916, 2147483648
    %v3925 = vxor.u32 %v3917, 2147483648
    %v3926 = vmul.f32 %v3922, 1.442695
    %v3927 = vpow.pop %v3926
    %v3928 = vmul.f32 %v3923, 1.442695
    %v3929 = vpow.pop %v3928
    %v3930 = vmul.f32 %v3924, 1.442695
    %v3931 = vpow.pop %v3930
    %v3932 = vmul.f32 %v3925, 1.442695
    %v3933 = vpow.pop %v3932
    %v3934 = vadd.f32 %v3927, 1.0
    %v3935 = vadd.f32 %v3929, 1.0
    %v3936 = vadd.f32 %v3931, 1.0
    %v3937 = vadd.f32 %v3933, 1.0
    %v3938 = vrcp.pop %v3934
    %v3939 = vmul.f32 1.0, %v3938
    %v3940 = vrcp.pop %v3935
    %v3941 = vmul.f32 1.0, %v3940
    %v3942 = vrcp.pop %v3936
    %v3943 = vmul.f32 1.0, %v3942
    %v3944 = vrcp.pop %v3937
    %v3945 = vmul.f32 1.0, %v3944
    %v3946 = vtanh.pop %v3915
    %v3947 = vtanh.pop %v3917
    %v3948 = vmul.f32 %v3939, %v3559
    %v3949 = vmul.f32 %v3943, %v3560
    %3952 = vrot.lane.b32.xlu0 %v3946, 64
    %v3953 = vpop.permute.xlu0 %3952
    %3954 = vrot.lane.b32.xlu0 %v3947, 64
    %v3955 = vpop.permute.xlu0 %3954
    %v3958 = vmul.f32 %v3939, %v3953
    %v3959 = vmul.f32 %v3943, %v3955
    %3962 = vrot.lane.b32.xlu0 %v3958, 64
    %v3963 = vpop.permute.xlu0 %3962
    %3964 = vrot.lane.b32.xlu0 %v3959, 64
    %v3965 = vpop.permute.xlu0 %3964
    %v3968 = vadd.f32 %v3948, %v3963
    %v3969 = vadd.f32 %v3949, %v3965
    %v3970 = vtanh.pop %v3968
    %v3971 = vtanh.pop %v3969
    %3974 = vrot.lane.b32.xlu0 %v3970, 64
    %v3975 = vpop.permute.xlu0 %3974
    %3976 = vrot.lane.b32.xlu0 %v3971, 64
    %v3977 = vpop.permute.xlu0 %3976
    %v3980 = vmul.f32 %v3941, %v3975
    %v3981 = vmul.f32 %v3945, %v3977
    %v3982 = vxor.u32 %v3918, 2147483648
    %v3983 = vxor.u32 %v3919, 2147483648
    %v3984 = vxor.u32 %v3920, 2147483648
    %v3985 = vxor.u32 %v3921, 2147483648
    %v3986 = vmul.f32 %v3982, 1.442695
    %v3987 = vpow.pop %v3986
    %v3988 = vmul.f32 %v3983, 1.442695
    %v3989 = vpow.pop %v3988
    %v3990 = vmul.f32 %v3984, 1.442695
    %v3991 = vpow.pop %v3990
    %v3992 = vmul.f32 %v3985, 1.442695
    %v3993 = vpow.pop %v3992
    %v3994 = vadd.f32 %v3987, 1.0
    %v3995 = vadd.f32 %v3989, 1.0
    %v3996 = vadd.f32 %v3991, 1.0
    %v3997 = vadd.f32 %v3993, 1.0
    %v3998 = vrcp.pop %v3994
    %v3999 = vmul.f32 1.0, %v3998
    %v4000 = vrcp.pop %v3995
    %v4001 = vmul.f32 1.0, %v4000
    %v4002 = vrcp.pop %v3996
    %v4003 = vmul.f32 1.0, %v4002
    %v4004 = vrcp.pop %v3997
    %v4005 = vmul.f32 1.0, %v4004
    %v4006 = vtanh.pop %v3919
    %v4007 = vtanh.pop %v3921
    %v4008 = vmul.f32 %v3999, %v3619
    %v4009 = vmul.f32 %v4003, %v3620
    %4012 = vrot.lane.b32.xlu0 %v4006, 64
    %v4013 = vpop.permute.xlu0 %4012
    %4014 = vrot.lane.b32.xlu0 %v4007, 64
    %v4015 = vpop.permute.xlu0 %4014
    %v4018 = vmul.f32 %v3999, %v4013
    %v4019 = vmul.f32 %v4003, %v4015
    %4022 = vrot.lane.b32.xlu0 %v4018, 64
    %v4023 = vpop.permute.xlu0 %4022
    %4024 = vrot.lane.b32.xlu0 %v4019, 64
    %v4025 = vpop.permute.xlu0 %4024
    %v4028 = vadd.f32 %v4008, %v4023
    %v4029 = vadd.f32 %v4009, %v4025
    %v4030 = vtanh.pop %v4028
    %v4031 = vtanh.pop %v4029
    %4034 = vrot.lane.b32.xlu0 %v4030, 64
    %v4035 = vpop.permute.xlu0 %4034
    %4036 = vrot.lane.b32.xlu0 %v4031, 64
    %v4037 = vpop.permute.xlu0 %4036
    %v4040 = vmul.f32 %v4001, %v4035
    %v4041 = vmul.f32 %v4005, %v4037
    %4044 = vrot.lane.b32.xlu0 %v4040, 64
    %v4045 = vpop.permute.xlu0 %4044
    %4046 = vrot.lane.b32.xlu0 %v4041, 64
    %v4047 = vpop.permute.xlu0 %4046
    %v4050 = vsel %vm910, %v3980, %v4045
    %v4051 = vsel %vm910, %v3981, %v4047
    %v4052 = vpack.c.bf16 %v4051, %v4050
    %4053 = vmatprep.subr.bf16.mxu0 %v1013
    %4054 = vmatpush1.bf16.msra.mxu0 %v1012
    %4055 = vmatprep.subr.bf16.mxu0 %v1017
    %4056 = vmatpush1.bf16.msra.mxu0 %v1016
    %4057 = vmatprep.subr.bf16.mxu0 %v1021
    %4058 = vmatpush1.bf16.msra.mxu0 %v1020
    %4059 = vmatprep.subr.bf16.mxu0 %v1025
    %4060 = vmatpush1.bf16.msra.mxu0 %v1024
    %4061 = vmatprep.subr.bf16.mxu0 %v1029
    %4062 = vmatpush1.bf16.msra.mxu0 %v1028
    %4063 = vmatprep.subr.bf16.mxu0 %v1033
    %4064 = vmatpush1.bf16.msra.mxu0 %v1032
    %4065 = vmatprep.subr.bf16.mxu0 %v1037
    %4066 = vmatpush1.bf16.msra.mxu0 %v1036
    %4067 = vmatprep.subr.bf16.mxu0 %v1041
    %4068 = vmatpush1.bf16.msra.mxu0 %v1040
    %4069 = vmatprep.subr.bf16.mxu0 0
    %4070 = vmatpush1.bf16.msra.mxu0 0
    %4071 = vmatprep.subr.bf16.mxu0 0
    %4072 = vmatpush1.bf16.msra.mxu0 0
    %4073 = vmatprep.subr.bf16.mxu0 0
    %4074 = vmatpush1.bf16.msra.mxu0 0
    %4075 = vmatprep.subr.bf16.mxu0 0
    %4076 = vmatpush1.bf16.msra.mxu0 0
    %4077 = vmatprep.subr.bf16.mxu0 0
    %4078 = vmatpush1.bf16.msra.mxu0 0
    %4079 = vmatprep.subr.bf16.mxu0 0
    %4080 = vmatpush1.bf16.msra.mxu0 0
    %4081 = vmatprep.subr.bf16.mxu0 0
    %4082 = vmatpush1.bf16.msra.mxu0 0
    %4083 = vmatprep.subr.bf16.mxu0 0
    %4084 = vmatpush1.bf16.msra.mxu0 0
    %4085 = vmatprep.mubr.bf16.mxu0 0
    %4086 = vmatmul.mubr.bf16.gmra.mrb[0].mxu0 %v4052
    %v4087 = vpop.f32.mrb[0].mxu0
    %v4088 = vadd.f32 0.0, %v4087
    %v4089 = vpop.f32.mrb[0].mxu0
    %v4090 = vadd.f32 0.0, %v4089
    %v4091 = vpop.f32.mrb[0].mxu0
    %v4092 = vadd.f32 0.0, %v4091
    %v4093 = vpop.f32.mrb[0].mxu0
    %v4094 = vadd.f32 0.0, %v4093
    %4095 = vdwg.mxu0
    %v4096 = vadd.f32 %v4088, %v78
    %v4097 = vadd.f32 %v4090, %v82
    %v4098 = vadd.f32 %v4092, %v78
    %v4099 = vadd.f32 %v4094, %v82
    %v4100 = vxor.u32 %v4096, 2147483648
    %v4101 = vxor.u32 %v4097, 2147483648
    %v4102 = vxor.u32 %v4098, 2147483648
    %v4103 = vxor.u32 %v4099, 2147483648
    %v4104 = vmul.f32 %v4100, 1.442695
    %v4105 = vpow.pop %v4104
    %v4106 = vmul.f32 %v4101, 1.442695
    %v4107 = vpow.pop %v4106
    %v4108 = vmul.f32 %v4102, 1.442695
    %v4109 = vpow.pop %v4108
    %v4110 = vmul.f32 %v4103, 1.442695
    %v4111 = vpow.pop %v4110
    %v4112 = vadd.f32 %v4105, 1.0
    %v4113 = vadd.f32 %v4107, 1.0
    %v4114 = vadd.f32 %v4109, 1.0
    %v4115 = vadd.f32 %v4111, 1.0
    %v4116 = vrcp.pop %v4112
    %v4117 = vmul.f32 1.0, %v4116
    %v4118 = vrcp.pop %v4113
    %v4119 = vmul.f32 1.0, %v4118
    %v4120 = vrcp.pop %v4114
    %v4121 = vmul.f32 1.0, %v4120
    %v4122 = vrcp.pop %v4115
    %v4123 = vmul.f32 1.0, %v4122
    %v4124 = vtanh.pop %v4097
    %v4125 = vtanh.pop %v4099
    %v4126 = vmul.f32 %v4117, %v4028
    %v4127 = vmul.f32 %v4121, %v4029
    %4130 = vrot.lane.b32.xlu0 %v4124, 64
    %v4131 = vpop.permute.xlu0 %4130
    %4132 = vrot.lane.b32.xlu0 %v4125, 64
    %v4133 = vpop.permute.xlu0 %4132
    %v4136 = vmul.f32 %v4117, %v4131
    %v4137 = vmul.f32 %v4121, %v4133
    %4140 = vrot.lane.b32.xlu0 %v4136, 64
    %v4141 = vpop.permute.xlu0 %4140
    %4142 = vrot.lane.b32.xlu0 %v4137, 64
    %v4143 = vpop.permute.xlu0 %4142
    %v4146 = vadd.f32 %v4126, %v4141
    %v4147 = vadd.f32 %v4127, %v4143
    %v4148 = vtanh.pop %v4146
    %v4149 = vtanh.pop %v4147
    %4152 = vrot.lane.b32.xlu0 %v4148, 64
    %v4153 = vpop.permute.xlu0 %4152
    %4154 = vrot.lane.b32.xlu0 %v4149, 64
    %v4155 = vpop.permute.xlu0 %4154
    %v4158 = vmul.f32 %v4119, %v4153
    %v4159 = vmul.f32 %v4123, %v4155
    %v4160 = vpack.c.bf16 %v4159, %v4158
    %v4161 = vld [vmem:[%s5] sm:$0xf]
    %v4162 = vld [vmem:[%s5 + $0x4] sm:$0xf]
    %v4163 = vld [vmem:[%s5 + $0x8] sm:$0xf]
    %v4164 = vld [vmem:[%s5 + $0xc] sm:$0xf]
    %v4165 = vld [vmem:[%s5 + $0x10] sm:$0xf]
    %v4166 = vld [vmem:[%s5 + $0x14] sm:$0xf]
    %v4167 = vld [vmem:[%s5 + $0x18] sm:$0xf]
    %v4168 = vld [vmem:[%s5 + $0x1c] sm:$0xf]
    %v4177 = vunpack.c.l.b16 %v4161
    %v4178 = vunpack.c.l.b16 %v4162
    %v4179 = vunpack.c.l.b16 %v4163
    %v4180 = vunpack.c.l.b16 %v4164
    %v4181 = vunpack.c.l.b16 %v4165
    %v4182 = vunpack.c.l.b16 %v4166
    %v4183 = vunpack.c.l.b16 %v4167
    %v4184 = vunpack.c.l.b16 %v4168
    %v4185 = vpack.c.b16 %v4178, %v4177
    %v4186 = vpack.c.b16 %v4180, %v4179
    %v4187 = vpack.c.b16 %v4182, %v4181
    %v4188 = vpack.c.b16 %v4184, %v4183
    %v4194 = vsel %vm910, %v4160, 0
    %4196 = vmatprep.subr.bf16.mxu0 0
    %4197 = vmatpush1.bf16.msra.mxu0 %v4185
    %4198 = vmatprep.subr.bf16.mxu0 0
    %4199 = vmatpush1.bf16.msra.mxu0 %v4186
    %4200 = vmatprep.subr.bf16.mxu0 0
    %4201 = vmatpush1.bf16.msra.mxu0 %v4187
    %4202 = vmatprep.subr.bf16.mxu0 0
    %4203 = vmatpush1.bf16.msra.mxu0 %v4188
    %4204 = vmatprep.subr.bf16.mxu0 0
    %4205 = vmatpush1.bf16.msra.mxu0 0
    %4206 = vmatprep.subr.bf16.mxu0 0
    %4207 = vmatpush1.bf16.msra.mxu0 0
    %4208 = vmatprep.subr.bf16.mxu0 0
    %4209 = vmatpush1.bf16.msra.mxu0 0
    %4210 = vmatprep.subr.bf16.mxu0 0
    %4211 = vmatpush1.bf16.msra.mxu0 0
    %4212 = vmatprep.subr.bf16.mxu0 0
    %4213 = vmatpush1.bf16.msra.mxu0 0
    %4214 = vmatprep.subr.bf16.mxu0 0
    %4215 = vmatpush1.bf16.msra.mxu0 0
    %4216 = vmatprep.subr.bf16.mxu0 0
    %4217 = vmatpush1.bf16.msra.mxu0 0
    %4218 = vmatprep.subr.bf16.mxu0 0
    %4219 = vmatpush1.bf16.msra.mxu0 0
    %4220 = vmatprep.subr.bf16.mxu0 0
    %4221 = vmatpush1.bf16.msra.mxu0 0
    %4222 = vmatprep.subr.bf16.mxu0 0
    %4223 = vmatpush1.bf16.msra.mxu0 0
    %4224 = vmatprep.subr.bf16.mxu0 0
    %4225 = vmatpush1.bf16.msra.mxu0 0
    %4226 = vmatprep.subr.bf16.mxu0 0
    %4227 = vmatpush1.bf16.msra.mxu0 0
    %4228 = vmatprep.mubr.bf16.mxu0 0
    %4229 = vmatmul.mubr.bf16.gmra.mrb[0].mxu0 %v4194
    %v4230 = vpop.f32.mrb[0].mxu0
    %v4231 = vadd.f32 %v90, %v4230
    %v4232 = vpop.f32.mrb[0].mxu0
    %v4233 = vpop.f32.mrb[0].mxu0
    %v4234 = vadd.f32 %v90, %v4233
    %v4235 = vpop.f32.mrb[0].mxu0
    %4236 = vdwg.mxu0
    %4237 = vst.msk [vmem:[%s7] sm:$0xff] %vm138, %v4231
    %4238 = vst.msk [vmem:[%s7 + $0x8] sm:$0xff] %vm138, %v4234
    // Predicated region
    $region34: #{tpu_custom_call.1} parent=1 // pred_check
      _
    $region35: #{tpu_custom_call.1} parent=1 // pred_check_branch
      %4240 = sbr.rel (0) target = $region37
    $region36: #{tpu_custom_call.1} parent=1 // pred_region
      _
    $region37: #{tpu_custom_call.1} parent=1 // pred_fallthru
      _
    // Predicated region
    $region38: #{tpu_custom_call.1} parent=1 // pred_check
      _
    $region39: #{tpu_custom_call.1} parent=1 // pred_check_branch
      %4242 = sbr.rel (0) target = $region41
    $region40: #{tpu_custom_call.1} parent=1 // pred_region
      _
    $region41: #{tpu_custom_call.1} parent=1 // pred_fallthru
      _
    %4243 = vsyncpa [#allocation4], 1

</llo_original>
